<compile_context>
chip_gen: v7x
topology: tpu7x:2x2x1
jax: 0.10.0
libtpu: 0.0.40
codegen_flags: <defaults>
</compile_context>

<pallas_src>
import math
from functools import partial

import jax
import jax.numpy as jnp
from jax import lax
from jax.experimental import pallas as pl
from jax.experimental.pallas import tpu as pltpu


def _attention_kernel(xq_ref, xkv_ref, wq_ref, wk_ref, wv_ref, wout_ref,
                      bias_ref, o_ref, q_scr, m_scr, l_scr, acc_scr, *,
                      heads, dim_head):
    """Fused QKV-proj -> flash attention (online softmax over KV chunks) ->
    out-proj, for one (batch, q-tile, kv-chunk) grid step.

    xq_ref:   (tq, C)  bf16  q-row activations (constant across the KV axis)
    xkv_ref:  (tk, C)  bf16  kv-row activations for this chunk
    wq_ref:   (C, hidden) bf16  Q weight, scale pre-folded
    wk_ref:   (C, hidden) bf16
    wv_ref:   (C, hidden) bf16
    wout_ref: (hidden, C) bf16
    bias_ref: (1, C) f32
    o_ref:    (tq, C) f32    written only at the last KV step
    q_scr:    (heads, tq, dh) bf16   head-major Q tile
    m_scr:    (heads, tq, 1) f32     running row max
    l_scr:    (heads, tq, 1) f32     running row sum
    acc_scr:  (heads, tq, dh) f32    running PV accumulator
    """
    dh = dim_head
    ki = pl.program_id(2)
    nkv = pl.num_programs(2)

    @pl.when(ki == 0)
    def _init():
        # Q projection for this q-tile: one wide (lane-dense) MXU matmul, then
        # a single relayout into head-major scratch (scale folded into wq).
        qw = jnp.dot(xq_ref[...], wq_ref[...],
                     preferred_element_type=jnp.float32).astype(jnp.bfloat16)
        for h in range(heads):
            q_scr[h] = qw[:, h * dh:(h + 1) * dh]
        m_scr[...] = jnp.full(m_scr.shape, -jnp.inf, m_scr.dtype)
        l_scr[...] = jnp.zeros(l_scr.shape, l_scr.dtype)
        acc_scr[...] = jnp.zeros(acc_scr.shape, acc_scr.dtype)

    # K / V projection for this KV chunk: full-width (128-lane output) matmuls.
    kw = jnp.dot(xkv_ref[...], wk_ref[...],
                 preferred_element_type=jnp.float32).astype(jnp.bfloat16)
    vw = jnp.dot(xkv_ref[...], wv_ref[...],
                 preferred_element_type=jnp.float32).astype(jnp.bfloat16)

    # Per-head online softmax; every head's state writes through to scratch so
    # only O(tq*tk) temporaries are live at any point.
    for h in range(heads):
        lo = h * dh
        q_h = q_scr[h]                       # (tq, dh) bf16, leading-dim index
        k_h = kw[:, lo:lo + dh]              # (tk, dh) bf16
        v_h = vw[:, lo:lo + dh]              # (tk, dh) bf16

        # s[i, j] = sum_d q[i, d] * k[j, d]   ('b h d i, b h d j -> b h i j')
        s = lax.dot_general(q_h, k_h, (((1,), (1,)), ((), ())),
                            preferred_element_type=jnp.float32)   # (tq, tk) f32

        m_prev = m_scr[h]                                          # (tq, 1)
        m_new = jnp.maximum(m_prev, jnp.max(s, axis=-1, keepdims=True))
        alpha = jnp.exp(m_prev - m_new)                            # (tq, 1)
        p = jnp.exp(s - m_new)                                     # (tq, tk) f32

        l_scr[h] = alpha * l_scr[h] + jnp.sum(p, axis=-1, keepdims=True)
        acc_scr[h] = alpha * acc_scr[h] + jnp.dot(
            p.astype(jnp.bfloat16), v_h, preferred_element_type=jnp.float32)
        m_scr[h] = m_new

    @pl.when(ki == nkv - 1)
    def _finalize():
        # Normalize AFTER the PV matmul (N*dh mults instead of N^2), using the
        # EUP approximate reciprocal; concat heads (h*dh + d column order) and
        # run one dense, lane-full out-projection + bias.
        outs = []
        for h in range(heads):
            inv = pl.reciprocal(l_scr[h], approx=True)             # (tq, 1)
            outs.append((acc_scr[h] * inv).astype(jnp.bfloat16))   # (tq, dh)
        out_cat = jnp.concatenate(outs, axis=-1)                   # (tq, hidden)
        y = jnp.dot(out_cat, wout_ref[...],
                    preferred_element_type=jnp.float32)            # (tq, C)
        y = y + bias_ref[...]
        o_ref[...] = y.astype(o_ref.dtype)


def attention_forward(x, w_qkv, w_out, b_out, *, heads=4, dim_head=32,
                      q_tile=128, kv_tile=128):
    """JAX/Pallas equivalent of Attention(dim, heads, dim_head).forward(x).

    x:     (B, C, H, W) float32
    w_qkv: (3*hidden, C)  -- to_qkv 1x1-conv kernel with the 1x1 squeezed
    w_out: (C, hidden)    -- to_out 1x1-conv kernel with the 1x1 squeezed
    b_out: (C,)           -- to_out bias
    """
    B, C, H, W = x.shape
    hidden = heads * dim_head
    N = H * W
    scale = dim_head ** (-0.5)
    assert w_qkv.shape == (3 * hidden, C), w_qkv.shape
    assert w_out.shape == (C, hidden), w_out.shape

    # q/kv tiles: keep >=128 rows per matmul; fall back to the full axis when
    # it does not divide evenly.
    tq = q_tile if (q_tile is not None and N % q_tile == 0) else N
    tk = kv_tile if (kv_tile is not None and N % kv_tile == 0) else N
    nq, nkv = N // tq, N // tk

    # NCHW -> (B, N, C); n = x*W + y matches '... x y -> ... (x y)'.
    # bf16 activations/weights feed the MXU; accumulation stays f32 in-kernel.
    x_flat = jnp.transpose(x, (0, 2, 3, 1)).reshape(B, N, C).astype(jnp.bfloat16)
    wq_t = (jnp.transpose(w_qkv[:hidden]) * scale).astype(jnp.bfloat16)      # (C, hidden)
    wk_t = jnp.transpose(w_qkv[hidden:2 * hidden]).astype(jnp.bfloat16)       # (C, hidden)
    wv_t = jnp.transpose(w_qkv[2 * hidden:]).astype(jnp.bfloat16)             # (C, hidden)
    wout_t = jnp.transpose(w_out).astype(jnp.bfloat16)                        # (hidden, C)
    bias = b_out.reshape(1, C).astype(jnp.float32)

    out_flat = pl.pallas_call(
        partial(_attention_kernel, heads=heads, dim_head=dim_head),
        out_shape=jax.ShapeDtypeStruct((B, N, C), jnp.float32),
        grid_spec=pltpu.PrefetchScalarGridSpec(
            num_scalar_prefetch=0,
            grid=(B, nq, nkv),
            in_specs=[
                pl.BlockSpec((None, tq, C), lambda b, qi, ki: (b, qi, 0)),  # q rows
                pl.BlockSpec((None, tk, C), lambda b, qi, ki: (b, ki, 0)),  # kv rows
                pl.BlockSpec((C, hidden), lambda b, qi, ki: (0, 0)),        # wq (resident)
                pl.BlockSpec((C, hidden), lambda b, qi, ki: (0, 0)),        # wk
                pl.BlockSpec((C, hidden), lambda b, qi, ki: (0, 0)),        # wv
                pl.BlockSpec((hidden, C), lambda b, qi, ki: (0, 0)),        # wout
                pl.BlockSpec((1, C), lambda b, qi, ki: (0, 0)),             # bias
            ],
            out_specs=pl.BlockSpec((None, tq, C), lambda b, qi, ki: (b, qi, 0)),
            scratch_shapes=[
                pltpu.VMEM((heads, tq, dim_head), jnp.bfloat16),  # head-major Q
                pltpu.VMEM((heads, tq, 1), jnp.float32),          # running max
                pltpu.VMEM((heads, tq, 1), jnp.float32),          # running sum
                pltpu.VMEM((heads, tq, dim_head), jnp.float32),   # running PV acc
            ],
        ),
        compiler_params=pltpu.CompilerParams(
            dimension_semantics=("parallel", "parallel", "arbitrary"),
            vmem_limit_bytes=32 * 1024 * 1024,
        ),
    )(x_flat, x_flat, wq_t, wk_t, wv_t, wout_t, bias)

    out = jnp.transpose(out_flat.reshape(B, H, W, C), (0, 3, 1, 2))
    return out.astype(x.dtype)


def _reference(x, w_qkv, w_out, b_out, *, heads, dim_head):
    """Pure-JAX f32 reference mirroring the PyTorch forward pass."""
    B, C, H, W = x.shape
    hidden = heads * dim_head
    scale = dim_head ** (-0.5)
    hp = lax.Precision.HIGHEST
    qkv = jnp.einsum('oc,bchw->bohw', w_qkv, x, precision=hp)
    q, k, v = jnp.split(qkv, 3, axis=1)
    to_heads = lambda t: t.reshape(B, heads, dim_head, H * W)   # 'b (h c) x y -> b h c (x y)'
    q, k, v = map(to_heads, (q, k, v))
    q = q * scale
    sim = jnp.einsum('bhdi,bhdj->bhij', q, k, precision=hp)
    sim = sim - jnp.max(sim, axis=-1, keepdims=True)
    attn = jax.nn.softmax(sim, axis=-1)
    out = jnp.einsum('bhij,bhdj->bhid', attn, v, precision=hp)
    out = jnp.transpose(out, (0, 1, 3, 2)).reshape(B, hidden, H, W)  # 'b h (x y) d -> b (h d) x y'
    return jnp.einsum('oc,bchw->bohw', w_out, out, precision=hp) + b_out[None, :, None, None]


if __name__ == "__main__":
    # Deterministic example consistent with the module defaults:
    # heads=4, dim_head=32 (hidden=128); dim=128 channels, 16x16 feature map.
    # N = 256 with tq = tk = 128 gives grid (2, 2, 2), exercising the
    # multi-step online-softmax path.
    B, C, H, W = 2, 128, 16, 16
    HEADS, DIM_HEAD = 4, 32
    HIDDEN = HEADS * DIM_HEAD

    key = jax.random.PRNGKey(0)
    kx, kq, ko, kb = jax.random.split(key, 4)
    x = jax.random.normal(kx, (B, C, H, W), dtype=jnp.float32)
    w_qkv = jax.random.normal(kq, (3 * HIDDEN, C), dtype=jnp.float32) / math.sqrt(C)
    w_out = jax.random.normal(ko, (C, HIDDEN), dtype=jnp.float32) / math.sqrt(HIDDEN)
    b_out = 0.1 * jax.random.normal(kb, (C,), dtype=jnp.float32)

    y = attention_forward(x, w_qkv, w_out, b_out, heads=HEADS, dim_head=DIM_HEAD)
    y = jax.block_until_ready(y)

    y_ref = _reference(x, w_qkv, w_out, b_out, heads=HEADS, dim_head=DIM_HEAD)
    assert y.shape == (B, C, H, W), y.shape
    max_err = float(jnp.max(jnp.abs(y - y_ref)))
    # bf16 MXU inputs (per perf review) vs. the f32 reference -> relaxed tol.
    assert jnp.allclose(y, y_ref, atol=5e-2, rtol=5e-2), (
        f"mismatch vs reference (max abs err {max_err:.4f})")

    print("KERNEL_OK")
</pallas_src>

<mosaic_0001>
module attributes {stable_mosaic.version = 11 : i64} {
  func.func @_attention_kernel(%arg0: i32, %arg1: i32, %arg2: i32, %arg3: memref<1x128x128xbf16, #tpu.memory_space<vmem>>, %arg4: memref<1x128x128xbf16, #tpu.memory_space<vmem>>, %arg5: memref<128x128xbf16, #tpu.memory_space<vmem>>, %arg6: memref<128x128xbf16, #tpu.memory_space<vmem>>, %arg7: memref<128x128xbf16, #tpu.memory_space<vmem>>, %arg8: memref<128x128xbf16, #tpu.memory_space<vmem>>, %arg9: memref<1x128xf32, #tpu.memory_space<vmem>>, %arg10: memref<1x128x128xf32, #tpu.memory_space<vmem>>, %arg11: memref<4x128x32xbf16, #tpu.memory_space<vmem>>, %arg12: memref<4x128x1xf32, #tpu.memory_space<vmem>>, %arg13: memref<4x128x1xf32, #tpu.memory_space<vmem>>, %arg14: memref<4x128x32xf32, #tpu.memory_space<vmem>>) attributes {dimension_semantics = [#tpu.dimension_semantics<parallel>, #tpu.dimension_semantics<parallel>, #tpu.dimension_semantics<arbitrary>], iteration_bounds = array<i64: 2, 2, 2>, scalar_prefetch = 0 : i64, scratch_operands = 4 : i64, tpu.core_type = #tpu.core_type<tc>, window_params = [{transform_indices = @transform_0, window_bounds = array<i64: 1, 128, 128>}, {transform_indices = @transform_1, window_bounds = array<i64: 1, 128, 128>}, {pipeline_mode = #tpu.pipeline_mode<synchronous>, transform_indices = @transform_2, window_bounds = array<i64: 128, 128>}, {pipeline_mode = #tpu.pipeline_mode<synchronous>, transform_indices = @transform_3, window_bounds = array<i64: 128, 128>}, {pipeline_mode = #tpu.pipeline_mode<synchronous>, transform_indices = @transform_4, window_bounds = array<i64: 128, 128>}, {pipeline_mode = #tpu.pipeline_mode<synchronous>, transform_indices = @transform_5, window_bounds = array<i64: 128, 128>}, {pipeline_mode = #tpu.pipeline_mode<synchronous>, transform_indices = @transform_6, window_bounds = array<i64: 1, 128>}, {transform_indices = @transform_7, window_bounds = array<i64: 1, 128, 128>}]} {
    %c0_i32 = arith.constant 0 : i32
    %0 = arith.cmpi eq, %arg2, %c0_i32 : i32
    %1 = arith.extui %0 : i1 to i32
    %c0_i32_0 = arith.constant 0 : i32
    %2 = arith.cmpi ne, %1, %c0_i32_0 : i32
    scf.if %2 {
      %c0_109 = arith.constant 0 : index
      %c0_110 = arith.constant 0 : index
      %c0_111 = arith.constant 0 : index
      %164 = vector.load %arg3[%c0_109, %c0_110, %c0_111] : memref<1x128x128xbf16, #tpu.memory_space<vmem>>, vector<1x128x128xbf16>
      %165 = vector.shape_cast %164 : vector<1x128x128xbf16> to vector<128x128xbf16>
      %c0_112 = arith.constant 0 : index
      %c0_113 = arith.constant 0 : index
      %166 = vector.load %arg5[%c0_112, %c0_113] : memref<128x128xbf16, #tpu.memory_space<vmem>>, vector<128x128xbf16>
      %cst_114 = arith.constant dense<0.000000e+00> : vector<128x128xf32>
      %167 = tpu.matmul %165, %166, %cst_114 {dimension_numbers = #tpu.dot_dimension_numbers<[1], [0], [0], [1], [0, 0, 1, 1], [], []>} : vector<128x128xbf16>, vector<128x128xbf16>, vector<128x128xf32> -> vector<128x128xf32>
      %168 = arith.truncf %167 : vector<128x128xf32> to vector<128x128xbf16>
      %169 = vector.extract_strided_slice %168 {offsets = [0, 0], sizes = [128, 32], strides = [1, 1]} : vector<128x128xbf16> to vector<128x32xbf16>
      %c0_115 = arith.constant 0 : index
      %c0_116 = arith.constant 0 : index
      %c0_117 = arith.constant 0 : index
      %170 = vector.load %arg11[%c0_115, %c0_116, %c0_117] : memref<4x128x32xbf16, #tpu.memory_space<vmem>>, vector<1x128x32xbf16>
      %171 = vector.shape_cast %170 : vector<1x128x32xbf16> to vector<128x32xbf16>
      %172 = vector.shape_cast %169 : vector<128x32xbf16> to vector<1x128x32xbf16>
      tpu.vector_store %arg11[%c0_115, %c0_116, %c0_117], %172 {strides = array<i32>} : memref<4x128x32xbf16, #tpu.memory_space<vmem>>, vector<1x128x32xbf16>,
      %173 = vector.extract_strided_slice %168 {offsets = [0, 32], sizes = [128, 32], strides = [1, 1]} : vector<128x128xbf16> to vector<128x32xbf16>
      %c1_118 = arith.constant 1 : index
      %c0_119 = arith.constant 0 : index
      %c0_120 = arith.constant 0 : index
      %174 = vector.load %arg11[%c1_118, %c0_119, %c0_120] : memref<4x128x32xbf16, #tpu.memory_space<vmem>>, vector<1x128x32xbf16>
      %175 = vector.shape_cast %174 : vector<1x128x32xbf16> to vector<128x32xbf16>
      %176 = vector.shape_cast %173 : vector<128x32xbf16> to vector<1x128x32xbf16>
      tpu.vector_store %arg11[%c1_118, %c0_119, %c0_120], %176 {strides = array<i32>} : memref<4x128x32xbf16, #tpu.memory_space<vmem>>, vector<1x128x32xbf16>,
      %177 = vector.extract_strided_slice %168 {offsets = [0, 64], sizes = [128, 32], strides = [1, 1]} : vector<128x128xbf16> to vector<128x32xbf16>
      %c2_121 = arith.constant 2 : index
      %c0_122 = arith.constant 0 : index
      %c0_123 = arith.constant 0 : index
      %178 = vector.load %arg11[%c2_121, %c0_122, %c0_123] : memref<4x128x32xbf16, #tpu.memory_space<vmem>>, vector<1x128x32xbf16>
      %179 = vector.shape_cast %178 : vector<1x128x32xbf16> to vector<128x32xbf16>
      %180 = vector.shape_cast %177 : vector<128x32xbf16> to vector<1x128x32xbf16>
      tpu.vector_store %arg11[%c2_121, %c0_122, %c0_123], %180 {strides = array<i32>} : memref<4x128x32xbf16, #tpu.memory_space<vmem>>, vector<1x128x32xbf16>,
      %181 = vector.extract_strided_slice %168 {offsets = [0, 96], sizes = [128, 32], strides = [1, 1]} : vector<128x128xbf16> to vector<128x32xbf16>
      %c3_124 = arith.constant 3 : index
      %c0_125 = arith.constant 0 : index
      %c0_126 = arith.constant 0 : index
      %182 = vector.load %arg11[%c3_124, %c0_125, %c0_126] : memref<4x128x32xbf16, #tpu.memory_space<vmem>>, vector<1x128x32xbf16>
      %183 = vector.shape_cast %182 : vector<1x128x32xbf16> to vector<128x32xbf16>
      %184 = vector.shape_cast %181 : vector<128x32xbf16> to vector<1x128x32xbf16>
      tpu.vector_store %arg11[%c3_124, %c0_125, %c0_126], %184 {strides = array<i32>} : memref<4x128x32xbf16, #tpu.memory_space<vmem>>, vector<1x128x32xbf16>,
      %cst_127 = arith.constant 0xFF800000 : f32
      %185 = vector.broadcast %cst_127 : f32 to vector<4x128x1xf32>
      %c0_128 = arith.constant 0 : index
      %c0_129 = arith.constant 0 : index
      %c0_130 = arith.constant 0 : index
      %186 = vector.load %arg12[%c0_128, %c0_129, %c0_130] : memref<4x128x1xf32, #tpu.memory_space<vmem>>, vector<4x128x1xf32>
      tpu.vector_store %arg12[%c0_128, %c0_129, %c0_130], %185 {strides = array<i32>} : memref<4x128x1xf32, #tpu.memory_space<vmem>>, vector<4x128x1xf32>,
      %cst_131 = arith.constant 0.000000e+00 : f32
      %187 = vector.broadcast %cst_131 : f32 to vector<4x128x1xf32>
      %c0_132 = arith.constant 0 : index
      %c0_133 = arith.constant 0 : index
      %c0_134 = arith.constant 0 : index
      %188 = vector.load %arg13[%c0_132, %c0_133, %c0_134] : memref<4x128x1xf32, #tpu.memory_space<vmem>>, vector<4x128x1xf32>
      tpu.vector_store %arg13[%c0_132, %c0_133, %c0_134], %187 {strides = array<i32>} : memref<4x128x1xf32, #tpu.memory_space<vmem>>, vector<4x128x1xf32>,
      %cst_135 = arith.constant 0.000000e+00 : f32
      %189 = vector.broadcast %cst_135 : f32 to vector<4x128x32xf32>
      %c0_136 = arith.constant 0 : index
      %c0_137 = arith.constant 0 : index
      %c0_138 = arith.constant 0 : index
      %190 = vector.load %arg14[%c0_136, %c0_137, %c0_138] : memref<4x128x32xf32, #tpu.memory_space<vmem>>, vector<4x128x32xf32>
      tpu.vector_store %arg14[%c0_136, %c0_137, %c0_138], %189 {strides = array<i32>} : memref<4x128x32xf32, #tpu.memory_space<vmem>>, vector<4x128x32xf32>,
    } else {
    }
    %c0 = arith.constant 0 : index
    %c0_1 = arith.constant 0 : index
    %c0_2 = arith.constant 0 : index
    %3 = vector.load %arg4[%c0, %c0_1, %c0_2] : memref<1x128x128xbf16, #tpu.memory_space<vmem>>, vector<1x128x128xbf16>
    %4 = vector.shape_cast %3 : vector<1x128x128xbf16> to vector<128x128xbf16>
    %c0_3 = arith.constant 0 : index
    %c0_4 = arith.constant 0 : index
    %5 = vector.load %arg6[%c0_3, %c0_4] : memref<128x128xbf16, #tpu.memory_space<vmem>>, vector<128x128xbf16>
    %cst = arith.constant dense<0.000000e+00> : vector<128x128xf32>
    %6 = tpu.matmul %4, %5, %cst {dimension_numbers = #tpu.dot_dimension_numbers<[1], [0], [0], [1], [0, 0, 1, 1], [], []>} : vector<128x128xbf16>, vector<128x128xbf16>, vector<128x128xf32> -> vector<128x128xf32>
    %7 = arith.truncf %6 : vector<128x128xf32> to vector<128x128xbf16>
    %c0_5 = arith.constant 0 : index
    %c0_6 = arith.constant 0 : index
    %c0_7 = arith.constant 0 : index
    %8 = vector.load %arg4[%c0_5, %c0_6, %c0_7] : memref<1x128x128xbf16, #tpu.memory_space<vmem>>, vector<1x128x128xbf16>
    %9 = vector.shape_cast %8 : vector<1x128x128xbf16> to vector<128x128xbf16>
    %c0_8 = arith.constant 0 : index
    %c0_9 = arith.constant 0 : index
    %10 = vector.load %arg7[%c0_8, %c0_9] : memref<128x128xbf16, #tpu.memory_space<vmem>>, vector<128x128xbf16>
    %cst_10 = arith.constant dense<0.000000e+00> : vector<128x128xf32>
    %11 = tpu.matmul %9, %10, %cst_10 {dimension_numbers = #tpu.dot_dimension_numbers<[1], [0], [0], [1], [0, 0, 1, 1], [], []>} : vector<128x128xbf16>, vector<128x128xbf16>, vector<128x128xf32> -> vector<128x128xf32>
    %12 = arith.truncf %11 : vector<128x128xf32> to vector<128x128xbf16>
    %c0_11 = arith.constant 0 : index
    %c0_12 = arith.constant 0 : index
    %c0_13 = arith.constant 0 : index
    %13 = vector.load %arg11[%c0_11, %c0_12, %c0_13] : memref<4x128x32xbf16, #tpu.memory_space<vmem>>, vector<1x128x32xbf16>
    %14 = vector.shape_cast %13 : vector<1x128x32xbf16> to vector<128x32xbf16>
    %15 = vector.extract_strided_slice %7 {offsets = [0, 0], sizes = [128, 32], strides = [1, 1]} : vector<128x128xbf16> to vector<128x32xbf16>
    %16 = vector.extract_strided_slice %12 {offsets = [0, 0], sizes = [128, 32], strides = [1, 1]} : vector<128x128xbf16> to vector<128x32xbf16>
    %cst_14 = arith.constant dense<0.000000e+00> : vector<128x128xf32>
    %17 = tpu.matmul %14, %15, %cst_14 {dimension_numbers = #tpu.dot_dimension_numbers<[1], [1], [0], [0], [0, 0, 1, 0], [], []>} : vector<128x32xbf16>, vector<128x32xbf16>, vector<128x128xf32> -> vector<128x128xf32>
    %c0_15 = arith.constant 0 : index
    %c0_16 = arith.constant 0 : index
    %c0_17 = arith.constant 0 : index
    %18 = vector.load %arg12[%c0_15, %c0_16, %c0_17] : memref<4x128x1xf32, #tpu.memory_space<vmem>>, vector<1x128x1xf32>
    %19 = vector.shape_cast %18 : vector<1x128x1xf32> to vector<128x1xf32>
    %cst_18 = arith.constant dense<0xFF800000> : vector<128xf32>
    %20 = vector.multi_reduction <maximumf>, %17, %cst_18 [1] : vector<128x128xf32> to vector<128xf32>
    %21 = vector.shape_cast %20 : vector<128xf32> to vector<128x1xf32>
    %22 = arith.maximumf %19, %21 : vector<128x1xf32>
    %23 = arith.subf %19, %22 : vector<128x1xf32>
    %24 = math.exp %23 : vector<128x1xf32>
    %25 = vector.broadcast %22 : vector<128x1xf32> to vector<128x128xf32>
    %26 = arith.subf %17, %25 : vector<128x128xf32>
    %27 = math.exp %26 : vector<128x128xf32>
    %c0_19 = arith.constant 0 : index
    %c0_20 = arith.constant 0 : index
    %c0_21 = arith.constant 0 : index
    %28 = vector.load %arg13[%c0_19, %c0_20, %c0_21] : memref<4x128x1xf32, #tpu.memory_space<vmem>>, vector<1x128x1xf32>
    %29 = vector.shape_cast %28 : vector<1x128x1xf32> to vector<128x1xf32>
    %30 = arith.mulf %24, %29 : vector<128x1xf32>
    %cst_22 = arith.constant dense<0.000000e+00> : vector<128xf32>
    %31 = vector.multi_reduction <add>, %27, %cst_22 [1] : vector<128x128xf32> to vector<128xf32>
    %32 = vector.shape_cast %31 : vector<128xf32> to vector<128x1xf32>
    %33 = arith.addf %30, %32 : vector<128x1xf32>
    %c0_23 = arith.constant 0 : index
    %c0_24 = arith.constant 0 : index
    %c0_25 = arith.constant 0 : index
    %34 = vector.load %arg13[%c0_23, %c0_24, %c0_25] : memref<4x128x1xf32, #tpu.memory_space<vmem>>, vector<1x128x1xf32>
    %35 = vector.shape_cast %34 : vector<1x128x1xf32> to vector<128x1xf32>
    %36 = vector.shape_cast %33 : vector<128x1xf32> to vector<1x128x1xf32>
    tpu.vector_store %arg13[%c0_23, %c0_24, %c0_25], %36 {strides = array<i32>} : memref<4x128x1xf32, #tpu.memory_space<vmem>>, vector<1x128x1xf32>,
    %c0_26 = arith.constant 0 : index
    %c0_27 = arith.constant 0 : index
    %c0_28 = arith.constant 0 : index
    %37 = vector.load %arg14[%c0_26, %c0_27, %c0_28] : memref<4x128x32xf32, #tpu.memory_space<vmem>>, vector<1x128x32xf32>
    %38 = vector.shape_cast %37 : vector<1x128x32xf32> to vector<128x32xf32>
    %39 = vector.broadcast %24 : vector<128x1xf32> to vector<128x32xf32>
    %40 = arith.mulf %39, %38 : vector<128x32xf32>
    %41 = arith.truncf %27 : vector<128x128xf32> to vector<128x128xbf16>
    %cst_29 = arith.constant dense<0.000000e+00> : vector<128x32xf32>
    %42 = tpu.matmul %41, %16, %cst_29 {dimension_numbers = #tpu.dot_dimension_numbers<[1], [0], [0], [1], [0, 0, 1, 1], [], []>} : vector<128x128xbf16>, vector<128x32xbf16>, vector<128x32xf32> -> vector<128x32xf32>
    %43 = arith.addf %40, %42 : vector<128x32xf32>
    %c0_30 = arith.constant 0 : index
    %c0_31 = arith.constant 0 : index
    %c0_32 = arith.constant 0 : index
    %44 = vector.load %arg14[%c0_30, %c0_31, %c0_32] : memref<4x128x32xf32, #tpu.memory_space<vmem>>, vector<1x128x32xf32>
    %45 = vector.shape_cast %44 : vector<1x128x32xf32> to vector<128x32xf32>
    %46 = vector.shape_cast %43 : vector<128x32xf32> to vector<1x128x32xf32>
    tpu.vector_store %arg14[%c0_30, %c0_31, %c0_32], %46 {strides = array<i32>} : memref<4x128x32xf32, #tpu.memory_space<vmem>>, vector<1x128x32xf32>,
    %c0_33 = arith.constant 0 : index
    %c0_34 = arith.constant 0 : index
    %c0_35 = arith.constant 0 : index
    %47 = vector.load %arg12[%c0_33, %c0_34, %c0_35] : memref<4x128x1xf32, #tpu.memory_space<vmem>>, vector<1x128x1xf32>
    %48 = vector.shape_cast %47 : vector<1x128x1xf32> to vector<128x1xf32>
    %49 = vector.shape_cast %22 : vector<128x1xf32> to vector<1x128x1xf32>
    tpu.vector_store %arg12[%c0_33, %c0_34, %c0_35], %49 {strides = array<i32>} : memref<4x128x1xf32, #tpu.memory_space<vmem>>, vector<1x128x1xf32>,
    %c1 = arith.constant 1 : index
    %c0_36 = arith.constant 0 : index
    %c0_37 = arith.constant 0 : index
    %50 = vector.load %arg11[%c1, %c0_36, %c0_37] : memref<4x128x32xbf16, #tpu.memory_space<vmem>>, vector<1x128x32xbf16>
    %51 = vector.shape_cast %50 : vector<1x128x32xbf16> to vector<128x32xbf16>
    %52 = vector.extract_strided_slice %7 {offsets = [0, 32], sizes = [128, 32], strides = [1, 1]} : vector<128x128xbf16> to vector<128x32xbf16>
    %53 = vector.extract_strided_slice %12 {offsets = [0, 32], sizes = [128, 32], strides = [1, 1]} : vector<128x128xbf16> to vector<128x32xbf16>
    %cst_38 = arith.constant dense<0.000000e+00> : vector<128x128xf32>
    %54 = tpu.matmul %51, %52, %cst_38 {dimension_numbers = #tpu.dot_dimension_numbers<[1], [1], [0], [0], [0, 0, 1, 0], [], []>} : vector<128x32xbf16>, vector<128x32xbf16>, vector<128x128xf32> -> vector<128x128xf32>
    %c1_39 = arith.constant 1 : index
    %c0_40 = arith.constant 0 : index
    %c0_41 = arith.constant 0 : index
    %55 = vector.load %arg12[%c1_39, %c0_40, %c0_41] : memref<4x128x1xf32, #tpu.memory_space<vmem>>, vector<1x128x1xf32>
    %56 = vector.shape_cast %55 : vector<1x128x1xf32> to vector<128x1xf32>
    %cst_42 = arith.constant dense<0xFF800000> : vector<128xf32>
    %57 = vector.multi_reduction <maximumf>, %54, %cst_42 [1] : vector<128x128xf32> to vector<128xf32>
    %58 = vector.shape_cast %57 : vector<128xf32> to vector<128x1xf32>
    %59 = arith.maximumf %56, %58 : vector<128x1xf32>
    %60 = arith.subf %56, %59 : vector<128x1xf32>
    %61 = math.exp %60 : vector<128x1xf32>
    %62 = vector.broadcast %59 : vector<128x1xf32> to vector<128x128xf32>
    %63 = arith.subf %54, %62 : vector<128x128xf32>
    %64 = math.exp %63 : vector<128x128xf32>
    %c1_43 = arith.constant 1 : index
    %c0_44 = arith.constant 0 : index
    %c0_45 = arith.constant 0 : index
    %65 = vector.load %arg13[%c1_43, %c0_44, %c0_45] : memref<4x128x1xf32, #tpu.memory_space<vmem>>, vector<1x128x1xf32>
    %66 = vector.shape_cast %65 : vector<1x128x1xf32> to vector<128x1xf32>
    %67 = arith.mulf %61, %66 : vector<128x1xf32>
    %cst_46 = arith.constant dense<0.000000e+00> : vector<128xf32>
    %68 = vector.multi_reduction <add>, %64, %cst_46 [1] : vector<128x128xf32> to vector<128xf32>
    %69 = vector.shape_cast %68 : vector<128xf32> to vector<128x1xf32>
    %70 = arith.addf %67, %69 : vector<128x1xf32>
    %c1_47 = arith.constant 1 : index
    %c0_48 = arith.constant 0 : index
    %c0_49 = arith.constant 0 : index
    %71 = vector.load %arg13[%c1_47, %c0_48, %c0_49] : memref<4x128x1xf32, #tpu.memory_space<vmem>>, vector<1x128x1xf32>
    %72 = vector.shape_cast %71 : vector<1x128x1xf32> to vector<128x1xf32>
    %73 = vector.shape_cast %70 : vector<128x1xf32> to vector<1x128x1xf32>
    tpu.vector_store %arg13[%c1_47, %c0_48, %c0_49], %73 {strides = array<i32>} : memref<4x128x1xf32, #tpu.memory_space<vmem>>, vector<1x128x1xf32>,
    %c1_50 = arith.constant 1 : index
    %c0_51 = arith.constant 0 : index
    %c0_52 = arith.constant 0 : index
    %74 = vector.load %arg14[%c1_50, %c0_51, %c0_52] : memref<4x128x32xf32, #tpu.memory_space<vmem>>, vector<1x128x32xf32>
    %75 = vector.shape_cast %74 : vector<1x128x32xf32> to vector<128x32xf32>
    %76 = vector.broadcast %61 : vector<128x1xf32> to vector<128x32xf32>
    %77 = arith.mulf %76, %75 : vector<128x32xf32>
    %78 = arith.truncf %64 : vector<128x128xf32> to vector<128x128xbf16>
    %cst_53 = arith.constant dense<0.000000e+00> : vector<128x32xf32>
    %79 = tpu.matmul %78, %53, %cst_53 {dimension_numbers = #tpu.dot_dimension_numbers<[1], [0], [0], [1], [0, 0, 1, 1], [], []>} : vector<128x128xbf16>, vector<128x32xbf16>, vector<128x32xf32> -> vector<128x32xf32>
    %80 = arith.addf %77, %79 : vector<128x32xf32>
    %c1_54 = arith.constant 1 : index
    %c0_55 = arith.constant 0 : index
    %c0_56 = arith.constant 0 : index
    %81 = vector.load %arg14[%c1_54, %c0_55, %c0_56] : memref<4x128x32xf32, #tpu.memory_space<vmem>>, vector<1x128x32xf32>
    %82 = vector.shape_cast %81 : vector<1x128x32xf32> to vector<128x32xf32>
    %83 = vector.shape_cast %80 : vector<128x32xf32> to vector<1x128x32xf32>
    tpu.vector_store %arg14[%c1_54, %c0_55, %c0_56], %83 {strides = array<i32>} : memref<4x128x32xf32, #tpu.memory_space<vmem>>, vector<1x128x32xf32>,
    %c1_57 = arith.constant 1 : index
    %c0_58 = arith.constant 0 : index
    %c0_59 = arith.constant 0 : index
    %84 = vector.load %arg12[%c1_57, %c0_58, %c0_59] : memref<4x128x1xf32, #tpu.memory_space<vmem>>, vector<1x128x1xf32>
    %85 = vector.shape_cast %84 : vector<1x128x1xf32> to vector<128x1xf32>
    %86 = vector.shape_cast %59 : vector<128x1xf32> to vector<1x128x1xf32>
    tpu.vector_store %arg12[%c1_57, %c0_58, %c0_59], %86 {strides = array<i32>} : memref<4x128x1xf32, #tpu.memory_space<vmem>>, vector<1x128x1xf32>,
    %c2 = arith.constant 2 : index
    %c0_60 = arith.constant 0 : index
    %c0_61 = arith.constant 0 : index
    %87 = vector.load %arg11[%c2, %c0_60, %c0_61] : memref<4x128x32xbf16, #tpu.memory_space<vmem>>, vector<1x128x32xbf16>
    %88 = vector.shape_cast %87 : vector<1x128x32xbf16> to vector<128x32xbf16>
    %89 = vector.extract_strided_slice %7 {offsets = [0, 64], sizes = [128, 32], strides = [1, 1]} : vector<128x128xbf16> to vector<128x32xbf16>
    %90 = vector.extract_strided_slice %12 {offsets = [0, 64], sizes = [128, 32], strides = [1, 1]} : vector<128x128xbf16> to vector<128x32xbf16>
    %cst_62 = arith.constant dense<0.000000e+00> : vector<128x128xf32>
    %91 = tpu.matmul %88, %89, %cst_62 {dimension_numbers = #tpu.dot_dimension_numbers<[1], [1], [0], [0], [0, 0, 1, 0], [], []>} : vector<128x32xbf16>, vector<128x32xbf16>, vector<128x128xf32> -> vector<128x128xf32>
    %c2_63 = arith.constant 2 : index
    %c0_64 = arith.constant 0 : index
    %c0_65 = arith.constant 0 : index
    %92 = vector.load %arg12[%c2_63, %c0_64, %c0_65] : memref<4x128x1xf32, #tpu.memory_space<vmem>>, vector<1x128x1xf32>
    %93 = vector.shape_cast %92 : vector<1x128x1xf32> to vector<128x1xf32>
    %cst_66 = arith.constant dense<0xFF800000> : vector<128xf32>
    %94 = vector.multi_reduction <maximumf>, %91, %cst_66 [1] : vector<128x128xf32> to vector<128xf32>
    %95 = vector.shape_cast %94 : vector<128xf32> to vector<128x1xf32>
    %96 = arith.maximumf %93, %95 : vector<128x1xf32>
    %97 = arith.subf %93, %96 : vector<128x1xf32>
    %98 = math.exp %97 : vector<128x1xf32>
    %99 = vector.broadcast %96 : vector<128x1xf32> to vector<128x128xf32>
    %100 = arith.subf %91, %99 : vector<128x128xf32>
    %101 = math.exp %100 : vector<128x128xf32>
    %c2_67 = arith.constant 2 : index
    %c0_68 = arith.constant 0 : index
    %c0_69 = arith.constant 0 : index
    %102 = vector.load %arg13[%c2_67, %c0_68, %c0_69] : memref<4x128x1xf32, #tpu.memory_space<vmem>>, vector<1x128x1xf32>
    %103 = vector.shape_cast %102 : vector<1x128x1xf32> to vector<128x1xf32>
    %104 = arith.mulf %98, %103 : vector<128x1xf32>
    %cst_70 = arith.constant dense<0.000000e+00> : vector<128xf32>
    %105 = vector.multi_reduction <add>, %101, %cst_70 [1] : vector<128x128xf32> to vector<128xf32>
    %106 = vector.shape_cast %105 : vector<128xf32> to vector<128x1xf32>
    %107 = arith.addf %104, %106 : vector<128x1xf32>
    %c2_71 = arith.constant 2 : index
    %c0_72 = arith.constant 0 : index
    %c0_73 = arith.constant 0 : index
    %108 = vector.load %arg13[%c2_71, %c0_72, %c0_73] : memref<4x128x1xf32, #tpu.memory_space<vmem>>, vector<1x128x1xf32>
    %109 = vector.shape_cast %108 : vector<1x128x1xf32> to vector<128x1xf32>
    %110 = vector.shape_cast %107 : vector<128x1xf32> to vector<1x128x1xf32>
    tpu.vector_store %arg13[%c2_71, %c0_72, %c0_73], %110 {strides = array<i32>} : memref<4x128x1xf32, #tpu.memory_space<vmem>>, vector<1x128x1xf32>,
    %c2_74 = arith.constant 2 : index
    %c0_75 = arith.constant 0 : index
    %c0_76 = arith.constant 0 : index
    %111 = vector.load %arg14[%c2_74, %c0_75, %c0_76] : memref<4x128x32xf32, #tpu.memory_space<vmem>>, vector<1x128x32xf32>
    %112 = vector.shape_cast %111 : vector<1x128x32xf32> to vector<128x32xf32>
    %113 = vector.broadcast %98 : vector<128x1xf32> to vector<128x32xf32>
    %114 = arith.mulf %113, %112 : vector<128x32xf32>
    %115 = arith.truncf %101 : vector<128x128xf32> to vector<128x128xbf16>
    %cst_77 = arith.constant dense<0.000000e+00> : vector<128x32xf32>
    %116 = tpu.matmul %115, %90, %cst_77 {dimension_numbers = #tpu.dot_dimension_numbers<[1], [0], [0], [1], [0, 0, 1, 1], [], []>} : vector<128x128xbf16>, vector<128x32xbf16>, vector<128x32xf32> -> vector<128x32xf32>
    %117 = arith.addf %114, %116 : vector<128x32xf32>
    %c2_78 = arith.constant 2 : index
    %c0_79 = arith.constant 0 : index
    %c0_80 = arith.constant 0 : index
    %118 = vector.load %arg14[%c2_78, %c0_79, %c0_80] : memref<4x128x32xf32, #tpu.memory_space<vmem>>, vector<1x128x32xf32>
    %119 = vector.shape_cast %118 : vector<1x128x32xf32> to vector<128x32xf32>
    %120 = vector.shape_cast %117 : vector<128x32xf32> to vector<1x128x32xf32>
    tpu.vector_store %arg14[%c2_78, %c0_79, %c0_80], %120 {strides = array<i32>} : memref<4x128x32xf32, #tpu.memory_space<vmem>>, vector<1x128x32xf32>,
    %c2_81 = arith.constant 2 : index
    %c0_82 = arith.constant 0 : index
    %c0_83 = arith.constant 0 : index
    %121 = vector.load %arg12[%c2_81, %c0_82, %c0_83] : memref<4x128x1xf32, #tpu.memory_space<vmem>>, vector<1x128x1xf32>
    %122 = vector.shape_cast %121 : vector<1x128x1xf32> to vector<128x1xf32>
    %123 = vector.shape_cast %96 : vector<128x1xf32> to vector<1x128x1xf32>
    tpu.vector_store %arg12[%c2_81, %c0_82, %c0_83], %123 {strides = array<i32>} : memref<4x128x1xf32, #tpu.memory_space<vmem>>, vector<1x128x1xf32>,
    %c3 = arith.constant 3 : index
    %c0_84 = arith.constant 0 : index
    %c0_85 = arith.constant 0 : index
    %124 = vector.load %arg11[%c3, %c0_84, %c0_85] : memref<4x128x32xbf16, #tpu.memory_space<vmem>>, vector<1x128x32xbf16>
    %125 = vector.shape_cast %124 : vector<1x128x32xbf16> to vector<128x32xbf16>
    %126 = vector.extract_strided_slice %7 {offsets = [0, 96], sizes = [128, 32], strides = [1, 1]} : vector<128x128xbf16> to vector<128x32xbf16>
    %127 = vector.extract_strided_slice %12 {offsets = [0, 96], sizes = [128, 32], strides = [1, 1]} : vector<128x128xbf16> to vector<128x32xbf16>
    %cst_86 = arith.constant dense<0.000000e+00> : vector<128x128xf32>
    %128 = tpu.matmul %125, %126, %cst_86 {dimension_numbers = #tpu.dot_dimension_numbers<[1], [1], [0], [0], [0, 0, 1, 0], [], []>} : vector<128x32xbf16>, vector<128x32xbf16>, vector<128x128xf32> -> vector<128x128xf32>
    %c3_87 = arith.constant 3 : index
    %c0_88 = arith.constant 0 : index
    %c0_89 = arith.constant 0 : index
    %129 = vector.load %arg12[%c3_87, %c0_88, %c0_89] : memref<4x128x1xf32, #tpu.memory_space<vmem>>, vector<1x128x1xf32>
    %130 = vector.shape_cast %129 : vector<1x128x1xf32> to vector<128x1xf32>
    %cst_90 = arith.constant dense<0xFF800000> : vector<128xf32>
    %131 = vector.multi_reduction <maximumf>, %128, %cst_90 [1] : vector<128x128xf32> to vector<128xf32>
    %132 = vector.shape_cast %131 : vector<128xf32> to vector<128x1xf32>
    %133 = arith.maximumf %130, %132 : vector<128x1xf32>
    %134 = arith.subf %130, %133 : vector<128x1xf32>
    %135 = math.exp %134 : vector<128x1xf32>
    %136 = vector.broadcast %133 : vector<128x1xf32> to vector<128x128xf32>
    %137 = arith.subf %128, %136 : vector<128x128xf32>
    %138 = math.exp %137 : vector<128x128xf32>
    %c3_91 = arith.constant 3 : index
    %c0_92 = arith.constant 0 : index
    %c0_93 = arith.constant 0 : index
    %139 = vector.load %arg13[%c3_91, %c0_92, %c0_93] : memref<4x128x1xf32, #tpu.memory_space<vmem>>, vector<1x128x1xf32>
    %140 = vector.shape_cast %139 : vector<1x128x1xf32> to vector<128x1xf32>
    %141 = arith.mulf %135, %140 : vector<128x1xf32>
    %cst_94 = arith.constant dense<0.000000e+00> : vector<128xf32>
    %142 = vector.multi_reduction <add>, %138, %cst_94 [1] : vector<128x128xf32> to vector<128xf32>
    %143 = vector.shape_cast %142 : vector<128xf32> to vector<128x1xf32>
    %144 = arith.addf %141, %143 : vector<128x1xf32>
    %c3_95 = arith.constant 3 : index
    %c0_96 = arith.constant 0 : index
    %c0_97 = arith.constant 0 : index
    %145 = vector.load %arg13[%c3_95, %c0_96, %c0_97] : memref<4x128x1xf32, #tpu.memory_space<vmem>>, vector<1x128x1xf32>
    %146 = vector.shape_cast %145 : vector<1x128x1xf32> to vector<128x1xf32>
    %147 = vector.shape_cast %144 : vector<128x1xf32> to vector<1x128x1xf32>
    tpu.vector_store %arg13[%c3_95, %c0_96, %c0_97], %147 {strides = array<i32>} : memref<4x128x1xf32, #tpu.memory_space<vmem>>, vector<1x128x1xf32>,
    %c3_98 = arith.constant 3 : index
    %c0_99 = arith.constant 0 : index
    %c0_100 = arith.constant 0 : index
    %148 = vector.load %arg14[%c3_98, %c0_99, %c0_100] : memref<4x128x32xf32, #tpu.memory_space<vmem>>, vector<1x128x32xf32>
    %149 = vector.shape_cast %148 : vector<1x128x32xf32> to vector<128x32xf32>
    %150 = vector.broadcast %135 : vector<128x1xf32> to vector<128x32xf32>
    %151 = arith.mulf %150, %149 : vector<128x32xf32>
    %152 = arith.truncf %138 : vector<128x128xf32> to vector<128x128xbf16>
    %cst_101 = arith.constant dense<0.000000e+00> : vector<128x32xf32>
    %153 = tpu.matmul %152, %127, %cst_101 {dimension_numbers = #tpu.dot_dimension_numbers<[1], [0], [0], [1], [0, 0, 1, 1], [], []>} : vector<128x128xbf16>, vector<128x32xbf16>, vector<128x32xf32> -> vector<128x32xf32>
    %154 = arith.addf %151, %153 : vector<128x32xf32>
    %c3_102 = arith.constant 3 : index
    %c0_103 = arith.constant 0 : index
    %c0_104 = arith.constant 0 : index
    %155 = vector.load %arg14[%c3_102, %c0_103, %c0_104] : memref<4x128x32xf32, #tpu.memory_space<vmem>>, vector<1x128x32xf32>
    %156 = vector.shape_cast %155 : vector<1x128x32xf32> to vector<128x32xf32>
    %157 = vector.shape_cast %154 : vector<128x32xf32> to vector<1x128x32xf32>
    tpu.vector_store %arg14[%c3_102, %c0_103, %c0_104], %157 {strides = array<i32>} : memref<4x128x32xf32, #tpu.memory_space<vmem>>, vector<1x128x32xf32>,
    %c3_105 = arith.constant 3 : index
    %c0_106 = arith.constant 0 : index
    %c0_107 = arith.constant 0 : index
    %158 = vector.load %arg12[%c3_105, %c0_106, %c0_107] : memref<4x128x1xf32, #tpu.memory_space<vmem>>, vector<1x128x1xf32>
    %159 = vector.shape_cast %158 : vector<1x128x1xf32> to vector<128x1xf32>
    %160 = vector.shape_cast %133 : vector<128x1xf32> to vector<1x128x1xf32>
    tpu.vector_store %arg12[%c3_105, %c0_106, %c0_107], %160 {strides = array<i32>} : memref<4x128x1xf32, #tpu.memory_space<vmem>>, vector<1x128x1xf32>,
    %c1_i32 = arith.constant 1 : i32
    %161 = arith.cmpi eq, %arg2, %c1_i32 : i32
    %162 = arith.extui %161 : i1 to i32
    %c0_i32_108 = arith.constant 0 : i32
    %163 = arith.cmpi ne, %162, %c0_i32_108 : i32
    scf.if %163 {
      %c0_109 = arith.constant 0 : index
      %c0_110 = arith.constant 0 : index
      %c0_111 = arith.constant 0 : index
      %164 = vector.load %arg13[%c0_109, %c0_110, %c0_111] : memref<4x128x1xf32, #tpu.memory_space<vmem>>, vector<1x128x1xf32>
      %165 = vector.shape_cast %164 : vector<1x128x1xf32> to vector<128x1xf32>
      %166 = tpu.reciprocal %165 {approx = true} : vector<128x1xf32> -> vector<128x1xf32>
      %c0_112 = arith.constant 0 : index
      %c0_113 = arith.constant 0 : index
      %c0_114 = arith.constant 0 : index
      %167 = vector.load %arg14[%c0_112, %c0_113, %c0_114] : memref<4x128x32xf32, #tpu.memory_space<vmem>>, vector<1x128x32xf32>
      %168 = vector.shape_cast %167 : vector<1x128x32xf32> to vector<128x32xf32>
      %169 = vector.broadcast %166 : vector<128x1xf32> to vector<128x32xf32>
      %170 = arith.mulf %168, %169 : vector<128x32xf32>
      %171 = arith.truncf %170 : vector<128x32xf32> to vector<128x32xbf16>
      %c1_115 = arith.constant 1 : index
      %c0_116 = arith.constant 0 : index
      %c0_117 = arith.constant 0 : index
      %172 = vector.load %arg13[%c1_115, %c0_116, %c0_117] : memref<4x128x1xf32, #tpu.memory_space<vmem>>, vector<1x128x1xf32>
      %173 = vector.shape_cast %172 : vector<1x128x1xf32> to vector<128x1xf32>
      %174 = tpu.reciprocal %173 {approx = true} : vector<128x1xf32> -> vector<128x1xf32>
      %c1_118 = arith.constant 1 : index
      %c0_119 = arith.constant 0 : index
      %c0_120 = arith.constant 0 : index
      %175 = vector.load %arg14[%c1_118, %c0_119, %c0_120] : memref<4x128x32xf32, #tpu.memory_space<vmem>>, vector<1x128x32xf32>
      %176 = vector.shape_cast %175 : vector<1x128x32xf32> to vector<128x32xf32>
      %177 = vector.broadcast %174 : vector<128x1xf32> to vector<128x32xf32>
      %178 = arith.mulf %176, %177 : vector<128x32xf32>
      %179 = arith.truncf %178 : vector<128x32xf32> to vector<128x32xbf16>
      %c2_121 = arith.constant 2 : index
      %c0_122 = arith.constant 0 : index
      %c0_123 = arith.constant 0 : index
      %180 = vector.load %arg13[%c2_121, %c0_122, %c0_123] : memref<4x128x1xf32, #tpu.memory_space<vmem>>, vector<1x128x1xf32>
      %181 = vector.shape_cast %180 : vector<1x128x1xf32> to vector<128x1xf32>
      %182 = tpu.reciprocal %181 {approx = true} : vector<128x1xf32> -> vector<128x1xf32>
      %c2_124 = arith.constant 2 : index
      %c0_125 = arith.constant 0 : index
      %c0_126 = arith.constant 0 : index
      %183 = vector.load %arg14[%c2_124, %c0_125, %c0_126] : memref<4x128x32xf32, #tpu.memory_space<vmem>>, vector<1x128x32xf32>
      %184 = vector.shape_cast %183 : vector<1x128x32xf32> to vector<128x32xf32>
      %185 = vector.broadcast %182 : vector<128x1xf32> to vector<128x32xf32>
      %186 = arith.mulf %184, %185 : vector<128x32xf32>
      %187 = arith.truncf %186 : vector<128x32xf32> to vector<128x32xbf16>
      %c3_127 = arith.constant 3 : index
      %c0_128 = arith.constant 0 : index
      %c0_129 = arith.constant 0 : index
      %188 = vector.load %arg13[%c3_127, %c0_128, %c0_129] : memref<4x128x1xf32, #tpu.memory_space<vmem>>, vector<1x128x1xf32>
      %189 = vector.shape_cast %188 : vector<1x128x1xf32> to vector<128x1xf32>
      %190 = tpu.reciprocal %189 {approx = true} : vector<128x1xf32> -> vector<128x1xf32>
      %c3_130 = arith.constant 3 : index
      %c0_131 = arith.constant 0 : index
      %c0_132 = arith.constant 0 : index
      %191 = vector.load %arg14[%c3_130, %c0_131, %c0_132] : memref<4x128x32xf32, #tpu.memory_space<vmem>>, vector<1x128x32xf32>
      %192 = vector.shape_cast %191 : vector<1x128x32xf32> to vector<128x32xf32>
      %193 = vector.broadcast %190 : vector<128x1xf32> to vector<128x32xf32>
      %194 = arith.mulf %192, %193 : vector<128x32xf32>
      %195 = arith.truncf %194 : vector<128x32xf32> to vector<128x32xbf16>
      %196 = tpu.concatenate %171, %179, %187, %195 in 1 : vector<128x32xbf16>, vector<128x32xbf16>, vector<128x32xbf16>, vector<128x32xbf16> -> vector<128x128xbf16>
      %c0_133 = arith.constant 0 : index
      %c0_134 = arith.constant 0 : index
      %197 = vector.load %arg8[%c0_133, %c0_134] : memref<128x128xbf16, #tpu.memory_space<vmem>>, vector<128x128xbf16>
      %cst_135 = arith.constant dense<0.000000e+00> : vector<128x128xf32>
      %198 = tpu.matmul %196, %197, %cst_135 {dimension_numbers = #tpu.dot_dimension_numbers<[1], [0], [0], [1], [0, 0, 1, 1], [], []>} : vector<128x128xbf16>, vector<128x128xbf16>, vector<128x128xf32> -> vector<128x128xf32>
      %c0_136 = arith.constant 0 : index
      %c0_137 = arith.constant 0 : index
      %199 = vector.load %arg9[%c0_136, %c0_137] : memref<1x128xf32, #tpu.memory_space<vmem>>, vector<1x128xf32>
      %200 = vector.broadcast %199 : vector<1x128xf32> to vector<128x128xf32>
      %201 = arith.addf %198, %200 : vector<128x128xf32>
      %c0_138 = arith.constant 0 : index
      %c0_139 = arith.constant 0 : index
      %c0_140 = arith.constant 0 : index
      %202 = vector.load %arg10[%c0_138, %c0_139, %c0_140] : memref<1x128x128xf32, #tpu.memory_space<vmem>>, vector<1x128x128xf32>
      %203 = vector.shape_cast %202 : vector<1x128x128xf32> to vector<128x128xf32>
      %204 = vector.shape_cast %201 : vector<128x128xf32> to vector<1x128x128xf32>
      tpu.vector_store %arg10[%c0_138, %c0_139, %c0_140], %204 {strides = array<i32>} : memref<1x128x128xf32, #tpu.memory_space<vmem>>, vector<1x128x128xf32>,
    } else {
    }
    return
  }
  func.func @transform_0(%arg0: i32, %arg1: i32, %arg2: i32) -> (i32, i32, i32) {
    %c0_i32 = arith.constant 0 : i32
    %c0_i32_0 = arith.constant 0 : i32
    return %arg0, %arg1, %c0_i32 : i32, i32, i32
  }
  func.func @transform_1(%arg0: i32, %arg1: i32, %arg2: i32) -> (i32, i32, i32) {
    %c0_i32 = arith.constant 0 : i32
    %c0_i32_0 = arith.constant 0 : i32
    return %arg0, %arg2, %c0_i32 : i32, i32, i32
  }
  func.func @transform_2(%arg0: i32, %arg1: i32, %arg2: i32) -> (i32, i32) {
    %c0_i32 = arith.constant 0 : i32
    %c0_i32_0 = arith.constant 0 : i32
    %c0_i32_1 = arith.constant 0 : i32
    return %c0_i32, %c0_i32_0 : i32, i32
  }
  func.func @transform_3(%arg0: i32, %arg1: i32, %arg2: i32) -> (i32, i32) {
    %c0_i32 = arith.constant 0 : i32
    %c0_i32_0 = arith.constant 0 : i32
    %c0_i32_1 = arith.constant 0 : i32
    return %c0_i32, %c0_i32_0 : i32, i32
  }
  func.func @transform_4(%arg0: i32, %arg1: i32, %arg2: i32) -> (i32, i32) {
    %c0_i32 = arith.constant 0 : i32
    %c0_i32_0 = arith.constant 0 : i32
    %c0_i32_1 = arith.constant 0 : i32
    return %c0_i32, %c0_i32_0 : i32, i32
  }
  func.func @transform_5(%arg0: i32, %arg1: i32, %arg2: i32) -> (i32, i32) {
    %c0_i32 = arith.constant 0 : i32
    %c0_i32_0 = arith.constant 0 : i32
    %c0_i32_1 = arith.constant 0 : i32
    return %c0_i32, %c0_i32_0 : i32, i32
  }
  func.func @transform_6(%arg0: i32, %arg1: i32, %arg2: i32) -> (i32, i32) {
    %c0_i32 = arith.constant 0 : i32
    %c0_i32_0 = arith.constant 0 : i32
    %c0_i32_1 = arith.constant 0 : i32
    return %c0_i32, %c0_i32_0 : i32, i32
  }
  func.func @transform_7(%arg0: i32, %arg1: i32, %arg2: i32) -> (i32, i32, i32) {
    %c0_i32 = arith.constant 0 : i32
    %c0_i32_0 = arith.constant 0 : i32
    return %arg0, %arg1, %c0_i32 : i32, i32, i32
  }
}

</mosaic_0001>

<llo_original>
// kernel: tpu_custom_call.1
$region0: #{tpu_custom_call.1}
  #allocation0 [shape = 'u32[]', space=smem, size = 0x4, offset = 0x4, fixed_abs, tag = 'smem constant byte address 0x4 - core index']
  #allocation1 [shape = 'u32[144,128]{1,0:T(1,128)}', space=vmem, size = 0x12000, scoped, tag = 'internal scratch']
  #allocation2 [shape = 'bf16[4,128,32]{2,1,0:T(16,128)(2,1)}', space=vmem, size = 0x20000, scoped, tag = 'scratch operand']
  #allocation3 [shape = 'f32[4,128,1]{2,1,0:T(8,128)}', space=vmem, size = 0x40000, scoped, tag = 'scratch operand']
  #allocation4 [shape = 'f32[4,128,1]{2,1,0:T(8,128)}', space=vmem, size = 0x40000, scoped, tag = 'scratch operand']
  #allocation5 [shape = 'f32[4,128,32]{2,1,0:T(8,128)}', space=vmem, size = 0x40000, scoped, tag = 'scratch operand']
  %s0 = inlined_call_operand.hbm [shape: bf16[2,256,128], index: 0, kind: input, shape index: {}]
  %s1 = inlined_call_operand.hbm [shape: bf16[2,256,128], index: 1, kind: input, shape index: {}]
  %s2 = inlined_call_operand.hbm [shape: bf16[128,128], index: 2, kind: input, shape index: {}]
  %s3 = inlined_call_operand.hbm [shape: bf16[128,128], index: 3, kind: input, shape index: {}]
  %s4 = inlined_call_operand.hbm [shape: bf16[128,128], index: 4, kind: input, shape index: {}]
  %s5 = inlined_call_operand.hbm [shape: bf16[128,128], index: 5, kind: input, shape index: {}]
  %s6 = inlined_call_operand.vmem [shape: f32[1,128], index: 6, kind: input, shape index: {}]
  %s7 = inlined_call_operand.hbm [shape: f32[2,256,128], index: 7, kind: output, shape index: {}]
  %s8 = sld [smem:[#allocation0]]
  $region93: #{tpu_custom_call.1} parent=0
    _
  %s10 = ssub.s32 1, %s8
  %s11 = scalar_select 0, %s10, %s8
  $region1: #{tpu_custom_call.1} parent=0
    #allocation6 [shape = 'u8[65536]{0}', space=vmem, size = 0x10000, scoped, tag = 'input window, operand 0']
    #allocation7 [shape = 's32[2]{0}', space=sflag, size = 0x8, scoped, tag = 'scoped memory for tpu_custom_call.1']
    #allocation8 [shape = 's32[2]{0}', space=sflag, size = 0x8, scoped, tag = 'scoped memory for tpu_custom_call.1']
    #allocation9 [shape = 'u8[65536]{0}', space=vmem, size = 0x10000, scoped, tag = 'input window, operand 1']
    #allocation10 [shape = 's32[2]{0}', space=sflag, size = 0x8, scoped, tag = 'scoped memory for tpu_custom_call.1']
    #allocation11 [shape = 'u8[32768]{0}', space=vmem, size = 0x8000, scoped, tag = 'input window, operand 2, single buffered']
    #allocation12 [shape = 'u8[32768]{0}', space=vmem, size = 0x8000, scoped, tag = 'input window, operand 3, single buffered']
    #allocation13 [shape = 's32[1]{0}', space=sflag, size = 0x4, scoped, tag = 'scoped memory for tpu_custom_call.1']
    #allocation14 [shape = 'u8[32768]{0}', space=vmem, size = 0x8000, scoped, tag = 'input window, operand 4, single buffered']
    #allocation15 [shape = 'u8[32768]{0}', space=vmem, size = 0x8000, scoped, tag = 'input window, operand 5, single buffered']
    #allocation16 [shape = 's32[1]{0}', space=sflag, size = 0x4, scoped, tag = 'scoped memory for tpu_custom_call.1']
    #allocation17 [shape = 'u8[131072]{0}', space=vmem, size = 0x20000, scoped, tag = 'output window, operand 0']
    %12 = vsyncpa [#allocation7], 0
    %s13 = scalar_lea.sflag [#allocation7], 1
    %14 = vsyncpa %s13, 0
    %15 = vsyncpa [#allocation10], 0
    %s16 = scalar_lea.sflag [#allocation10], 1
    %17 = vsyncpa %s16, 0
    %18 = vsyncpa [#allocation13], 0
    %19 = vsyncpa [#allocation16], 0
    %20 = vsyncpa [#allocation8], 0
    %s21 = scalar_lea.sflag [#allocation8], 1
    %22 = vsyncpa %s21, 0
    loop: start=0, step=1, limit=10
    $region2: #{tpu_custom_call.1} parent=1 // loop_pre_header
      _
    $region3: #{tpu_custom_call.1} parent=1 // loop_header
      %s24 = sphi 0, %s28
      %p25 = scmp.ge.s32.totalorder %s24, 10
      %s31 = sphi 0, %s50
      %s32 = sphi 0, %s46
      %s33 = sphi 0, %s42
      %s34 = sphi 0, %s31
      %s35 = sphi 0, %s32
      %s36 = sphi 0, %s33
      %s37 = sphi 0, %s34
      %s38 = sphi 0, %s35
      %s39 = sphi 0, %s36
      %s55 = sphi 0, %s57
      %s58 = sphi 0, %s55
      %s59 = sphi 0, %s58
      %s75 = sphi 0, %s59
      %s83 = sphi 0, %s85
      %s86 = sphi 0, %s83
      %s87 = sphi 0, %s86
      %s103 = sphi 0, %s87
      %s107 = sphi 0, %s107
      %s109 = sphi 0, %s107
      %s110 = sphi 0, %s109
      %s124 = sphi 0, %s110
      %s128 = sphi 0, %s128
      %s130 = sphi 0, %s128
      %s131 = sphi 0, %s130
      %s145 = sphi 0, %s131
      %s149 = sphi 0, %s149
      %s151 = sphi 0, %s149
      %s152 = sphi 0, %s151
      %s166 = sphi 0, %s152
      %s170 = sphi 0, %s170
      %s172 = sphi 0, %s170
      %s173 = sphi 0, %s172
      %s187 = sphi 0, %s173
      %s191 = sphi 0, %s191
      %s193 = sphi 0, %s191
      %s194 = sphi 0, %s193
      %s208 = sphi 0, %s194
      %s216 = sphi 0, %s218
      %s219 = sphi 0, %s216
      %s220 = sphi 0, %s219
      %s236 = sphi 0, %s220
    $region4: #{tpu_custom_call.1} parent=1 // loop_header_branch
      %27 = sbr.rel (%p25) target = $region8
    $region5: #{tpu_custom_call.1} parent=1 // loop_body
      %s29 = ssub.s32 %s24, 1
      %s30 = ssub.s32 %s24, 2
      %s40 = sadd.s32 1, %s33
      %p41 = scmp.ge.s32.totalorder %s40, 2
      %s42 = scalar_select %p41, 0, %s40
      %s43 = sadd.s32 1, %s32
      %s44 = scalar_select %p41, %s43, %s32
      %p45 = scmp.ge.s32.totalorder %s44, 2
      %s46 = scalar_select %p45, 0, %s44
      %s47 = sadd.s32 1, %s31
      %s48 = scalar_select %p45, %s47, %s31
      %p49 = scmp.ge.s32.totalorder %s48, 2
      %s50 = scalar_select %p49, 0, %s48
      %s51 = ssub.s32 %s31, %s50
      %s52 = ssub.s32 %s32, %s46
      %s53 = sor.u32 %s51, %s52
      %p54 = scmp.eq.s32.totalorder %s53, 0
      %s56 = sadd.s32 %s55, 1
      %s57 = scalar_select %p54, %s55, %s56
      %p60 = pneg %p54
      %p61 = scmp.eq.s32.totalorder %s24, 7
      %p62 = por %p60, %p61
      %p63 = scmp.ne.s32.totalorder %s55, %s58
      %p64 = scmp.eq.s32.totalorder %s24, 0
      %p65 = por %p63, %p64
      %p66 = scmp.ne.s32.totalorder %s55, %s58
      %p67 = scmp.eq.s32.totalorder %s29, 7
      %p68 = por %p66, %p67
      %p69 = scmp.ne.s32.totalorder %s58, %s59
      %p70 = scmp.eq.s32.totalorder %s29, 0
      %p71 = por %p69, %p70
      %p72 = scmp.ne.s32.totalorder %s58, %s59
      %p73 = scmp.eq.s32.totalorder %s30, 7
      %p74 = por %p72, %p73
      %p76 = scmp.ne.s32.totalorder %s59, %s75
      %p77 = scmp.eq.s32.totalorder %s30, 0
      %p78 = por %p76, %p77
      %s79 = ssub.s32 %s31, %s50
      %s80 = ssub.s32 %s33, %s42
      %s81 = sor.u32 %s79, %s80
      %p82 = scmp.eq.s32.totalorder %s81, 0
      %s84 = sadd.s32 %s83, 1
      %s85 = scalar_select %p82, %s83, %s84
      %p88 = pneg %p82
      %p89 = scmp.eq.s32.totalorder %s24, 7
      %p90 = por %p88, %p89
      %p91 = scmp.ne.s32.totalorder %s83, %s86
      %p92 = scmp.eq.s32.totalorder %s24, 0
      %p93 = por %p91, %p92
      %p94 = scmp.ne.s32.totalorder %s83, %s86
      %p95 = scmp.eq.s32.totalorder %s29, 7
      %p96 = por %p94, %p95
      %p97 = scmp.ne.s32.totalorder %s86, %s87
      %p98 = scmp.eq.s32.totalorder %s29, 0
      %p99 = por %p97, %p98
      %p100 = scmp.ne.s32.totalorder %s86, %s87
      %p101 = scmp.eq.s32.totalorder %s30, 7
      %p102 = por %p100, %p101
      %p104 = scmp.ne.s32.totalorder %s87, %s103
      %p105 = scmp.eq.s32.totalorder %s30, 0
      %p106 = por %p104, %p105
      %s108 = sadd.s32 %s107, 1
      %p111 = scmp.eq.s32.totalorder %s24, 7
      %p112 = scmp.ne.s32.totalorder %s107, %s109
      %p113 = scmp.eq.s32.totalorder %s24, 0
      %p114 = por %p112, %p113
      %p115 = scmp.ne.s32.totalorder %s107, %s109
      %p116 = scmp.eq.s32.totalorder %s29, 7
      %p117 = por %p115, %p116
      %p118 = scmp.ne.s32.totalorder %s109, %s110
      %p119 = scmp.eq.s32.totalorder %s29, 0
      %p120 = por %p118, %p119
      %p121 = scmp.ne.s32.totalorder %s109, %s110
      %p122 = scmp.eq.s32.totalorder %s30, 7
      %p123 = por %p121, %p122
      %p125 = scmp.ne.s32.totalorder %s110, %s124
      %p126 = scmp.eq.s32.totalorder %s30, 0
      %p127 = por %p125, %p126
      %s129 = sadd.s32 %s128, 1
      %p132 = scmp.eq.s32.totalorder %s24, 7
      %p133 = scmp.ne.s32.totalorder %s128, %s130
      %p134 = scmp.eq.s32.totalorder %s24, 0
      %p135 = por %p133, %p134
      %p136 = scmp.ne.s32.totalorder %s128, %s130
      %p137 = scmp.eq.s32.totalorder %s29, 7
      %p138 = por %p136, %p137
      %p139 = scmp.ne.s32.totalorder %s130, %s131
      %p140 = scmp.eq.s32.totalorder %s29, 0
      %p141 = por %p139, %p140
      %p142 = scmp.ne.s32.totalorder %s130, %s131
      %p143 = scmp.eq.s32.totalorder %s30, 7
      %p144 = por %p142, %p143
      %p146 = scmp.ne.s32.totalorder %s131, %s145
      %p147 = scmp.eq.s32.totalorder %s30, 0
      %p148 = por %p146, %p147
      %s150 = sadd.s32 %s149, 1
      %p153 = scmp.eq.s32.totalorder %s24, 7
      %p154 = scmp.ne.s32.totalorder %s149, %s151
      %p155 = scmp.eq.s32.totalorder %s24, 0
      %p156 = por %p154, %p155
      %p157 = scmp.ne.s32.totalorder %s149, %s151
      %p158 = scmp.eq.s32.totalorder %s29, 7
      %p159 = por %p157, %p158
      %p160 = scmp.ne.s32.totalorder %s151, %s152
      %p161 = scmp.eq.s32.totalorder %s29, 0
      %p162 = por %p160, %p161
      %p163 = scmp.ne.s32.totalorder %s151, %s152
      %p164 = scmp.eq.s32.totalorder %s30, 7
      %p165 = por %p163, %p164
      %p167 = scmp.ne.s32.totalorder %s152, %s166
      %p168 = scmp.eq.s32.totalorder %s30, 0
      %p169 = por %p167, %p168
      %s171 = sadd.s32 %s170, 1
      %p174 = scmp.eq.s32.totalorder %s24, 7
      %p175 = scmp.ne.s32.totalorder %s170, %s172
      %p176 = scmp.eq.s32.totalorder %s24, 0
      %p177 = por %p175, %p176
      %p178 = scmp.ne.s32.totalorder %s170, %s172
      %p179 = scmp.eq.s32.totalorder %s29, 7
      %p180 = por %p178, %p179
      %p181 = scmp.ne.s32.totalorder %s172, %s173
      %p182 = scmp.eq.s32.totalorder %s29, 0
      %p183 = por %p181, %p182
      %p184 = scmp.ne.s32.totalorder %s172, %s173
      %p185 = scmp.eq.s32.totalorder %s30, 7
      %p186 = por %p184, %p185
      %p188 = scmp.ne.s32.totalorder %s173, %s187
      %p189 = scmp.eq.s32.totalorder %s30, 0
      %p190 = por %p188, %p189
      %s192 = sadd.s32 %s191, 1
      %p195 = scmp.eq.s32.totalorder %s24, 7
      %p196 = scmp.ne.s32.totalorder %s191, %s193
      %p197 = scmp.eq.s32.totalorder %s24, 0
      %p198 = por %p196, %p197
      %p199 = scmp.ne.s32.totalorder %s191, %s193
      %p200 = scmp.eq.s32.totalorder %s29, 7
      %p201 = por %p199, %p200
      %p202 = scmp.ne.s32.totalorder %s193, %s194
      %p203 = scmp.eq.s32.totalorder %s29, 0
      %p204 = por %p202, %p203
      %p205 = scmp.ne.s32.totalorder %s193, %s194
      %p206 = scmp.eq.s32.totalorder %s30, 7
      %p207 = por %p205, %p206
      %p209 = scmp.ne.s32.totalorder %s194, %s208
      %p210 = scmp.eq.s32.totalorder %s30, 0
      %p211 = por %p209, %p210
      %s212 = ssub.s32 %s31, %s50
      %s213 = ssub.s32 %s32, %s46
      %s214 = sor.u32 %s212, %s213
      %p215 = scmp.eq.s32.totalorder %s214, 0
      %s217 = sadd.s32 %s216, 1
      %s218 = scalar_select %p215, %s216, %s217
      %p221 = pneg %p215
      %p222 = scmp.eq.s32.totalorder %s24, 7
      %p223 = por %p221, %p222
      %p224 = scmp.ne.s32.totalorder %s216, %s219
      %p225 = scmp.eq.s32.totalorder %s24, 0
      %p226 = por %p224, %p225
      %p227 = scmp.ne.s32.totalorder %s216, %s219
      %p228 = scmp.eq.s32.totalorder %s29, 7
      %p229 = por %p227, %p228
      %p230 = scmp.ne.s32.totalorder %s219, %s220
      %p231 = scmp.eq.s32.totalorder %s29, 0
      %p232 = por %p230, %p231
      %p233 = scmp.ne.s32.totalorder %s219, %s220
      %p234 = scmp.eq.s32.totalorder %s30, 7
      %p235 = por %p233, %p234
      %p237 = scmp.ne.s32.totalorder %s220, %s236
      %p238 = scmp.eq.s32.totalorder %s30, 0
      %p239 = por %p237, %p238
      %p240 = scmp.le.s32.totalorder 1, %s24
      %p241 = scmp.lt.s32.totalorder %s24, 9
      %p242 = pnand %p240, %p241
      %p243 = pneg %p242
      // Predicated region
      $region9: #{tpu_custom_call.1} parent=5 // pred_check
        _
      $region10: #{tpu_custom_call.1} parent=5 // pred_check_branch
        %245 = sbr.rel (%p242) target = $region12
      $region11: #{tpu_custom_call.1} parent=5 // pred_region
        %s246 = ssub.s32 %s24, 1
        // Predicated region
        $region13: #{tpu_custom_call.1} parent=11 // pred_check
          %p247 = pneg %p120
        $region14: #{tpu_custom_call.1} parent=11 // pred_check_branch
          %249 = sbr.rel (%p247) target = $region16
        $region15: #{tpu_custom_call.1} parent=11 // pred_region
          %s251 = ssub.s32 1024, 1024
          %252 = vsyncadd [#allocation10], %s251
          %s253 = sshll.u32 [#allocation11], 4
          %s254 = int_to_ptr.vmem [resolvable:$true] %s253
          %259 = dma.hbm_to_vmem [thread:$0]  %s2, 1024, %s254, [#allocation10], 64, 64, 4
        $region16: #{tpu_custom_call.1} parent=11 // pred_fallthru
          _
        // Predicated region
        $region17: #{tpu_custom_call.1} parent=11 // pred_check
          %p260 = pneg %p141
        $region18: #{tpu_custom_call.1} parent=11 // pred_check_branch
          %262 = sbr.rel (%p260) target = $region20
        $region19: #{tpu_custom_call.1} parent=11 // pred_region
          %s264 = ssub.s32 1024, 1024
          %265 = vsyncadd [#allocation13], %s264
          %s266 = sshll.u32 [#allocation12], 4
          %s267 = int_to_ptr.vmem [resolvable:$true] %s266
          %272 = dma.hbm_to_vmem [thread:$0]  %s3, 1024, %s267, [#allocation13], 64, 64, 4
        $region20: #{tpu_custom_call.1} parent=11 // pred_fallthru
          _
        // Predicated region
        $region21: #{tpu_custom_call.1} parent=11 // pred_check
          %p273 = pneg %p162
        $region22: #{tpu_custom_call.1} parent=11 // pred_check_branch
          %275 = sbr.rel (%p273) target = $region24
        $region23: #{tpu_custom_call.1} parent=11 // pred_region
          %s277 = ssub.s32 1024, 1024
          %278 = vsyncadd [#allocation13], %s277
          %s279 = sshll.u32 [#allocation14], 4
          %s280 = int_to_ptr.vmem [resolvable:$true] %s279
          %285 = dma.hbm_to_vmem [thread:$0]  %s4, 1024, %s280, [#allocation13], 64, 64, 4
        $region24: #{tpu_custom_call.1} parent=11 // pred_fallthru
          _
        // Predicated region
        $region25: #{tpu_custom_call.1} parent=11 // pred_check
          %p286 = pneg %p183
        $region26: #{tpu_custom_call.1} parent=11 // pred_check_branch
          %288 = sbr.rel (%p286) target = $region28
        $region27: #{tpu_custom_call.1} parent=11 // pred_region
          %s290 = ssub.s32 1024, 1024
          %291 = vsyncadd [#allocation16], %s290
          %s292 = sshll.u32 [#allocation15], 4
          %s293 = int_to_ptr.vmem [resolvable:$true] %s292
          %298 = dma.hbm_to_vmem [thread:$0]  %s5, 1024, %s293, [#allocation16], 64, 64, 4
        $region28: #{tpu_custom_call.1} parent=11 // pred_fallthru
          _
        // Predicated region
        $region29: #{tpu_custom_call.1} parent=11 // pred_check
          %p299 = pneg %p204
        $region30: #{tpu_custom_call.1} parent=11 // pred_check_branch
          %301 = sbr.rel (%p299) target = $region32
        $region31: #{tpu_custom_call.1} parent=11 // pred_region
          _
        $region32: #{tpu_custom_call.1} parent=11 // pred_fallthru
          _
      $region12: #{tpu_custom_call.1} parent=5 // pred_fallthru
        _
      %p302 = scmp.lt.s32.totalorder %s24, 8
      // Predicated region
      $region33: #{tpu_custom_call.1} parent=5 // pred_check
        %p303 = pneg %p302
      $region34: #{tpu_custom_call.1} parent=5 // pred_check_branch
        %305 = sbr.rel (%p303) target = $region36
      $region35: #{tpu_custom_call.1} parent=5 // pred_region
        // Predicated region
        $region37: #{tpu_custom_call.1} parent=35 // pred_check
          %p306 = pneg %p65
        $region38: #{tpu_custom_call.1} parent=35 // pred_check_branch
          %308 = sbr.rel (%p306) target = $region40
        $region39: #{tpu_custom_call.1} parent=35 // pred_region
          %s309 = sand.u32 %s55, 1
          %s310 = scalar_lea.sflag [#allocation7], %s309
          %s311 = sand.u32 %s55, 1
          %s312 = smul.addr %s311, 64
          %s313 = scalar_lea.vmem [#allocation6], %s312
          %s314 = smul.u32 16, %s32
          %s316 = ssub.s32 1024, 1024
          %317 = vsyncadd %s310, %s316
          %s318 = smul.addr %s31, 32
          %s319 = sadd.s32 %s314, %s318
          %s320 = smul.addr %s319, 64
          %s321 = scalar_lea.hbm %s0, %s320
          %s322 = sshll.u32 %s313, 4
          %s323 = int_to_ptr.vmem [resolvable:$true] %s322
          %328 = dma.hbm_to_vmem [thread:$0]  %s321, 1024, %s323, %s310, 64, 64, 4
        $region40: #{tpu_custom_call.1} parent=35 // pred_fallthru
          _
        // Predicated region
        $region41: #{tpu_custom_call.1} parent=35 // pred_check
          %p329 = pneg %p93
        $region42: #{tpu_custom_call.1} parent=35 // pred_check_branch
          %331 = sbr.rel (%p329) target = $region44
        $region43: #{tpu_custom_call.1} parent=35 // pred_region
          %s332 = sand.u32 %s24, 1
          %s333 = scalar_lea.sflag [#allocation10], %s332
          %s334 = sand.u32 %s83, 1
          %s335 = smul.addr %s334, 64
          %s336 = scalar_lea.vmem [#allocation9], %s335
          %s337 = smul.u32 16, %s33
          %s339 = ssub.s32 1024, 1024
          %340 = vsyncadd %s333, %s339
          %s341 = smul.addr %s31, 32
          %s342 = sadd.s32 %s337, %s341
          %s343 = smul.addr %s342, 64
          %s344 = scalar_lea.hbm %s1, %s343
          %s345 = sshll.u32 %s336, 4
          %s346 = int_to_ptr.vmem [resolvable:$true] %s345
          %351 = dma.hbm_to_vmem [thread:$0]  %s344, 1024, %s346, %s333, 64, 64, 4
        $region44: #{tpu_custom_call.1} parent=35 // pred_fallthru
          _
      $region36: #{tpu_custom_call.1} parent=5 // pred_fallthru
        _
      %p352 = scmp.le.s32.totalorder 1, %s24
      %p353 = scmp.lt.s32.totalorder %s24, 9
      %p354 = pnand %p352, %p353
      %p355 = pneg %p354
      // Predicated region
      $region45: #{tpu_custom_call.1} parent=5 // pred_check
        _
      $region46: #{tpu_custom_call.1} parent=5 // pred_check_branch
        %357 = sbr.rel (%p354) target = $region48
      $region47: #{tpu_custom_call.1} parent=5 // pred_region
        %s358 = ssub.s32 %s24, 1
        %s359 = sand.u32 %s58, 1
        %s360 = scalar_lea.sflag [#allocation7], %s359
        %s361 = sand.u32 %s58, 1
        %s362 = smul.addr %s361, 64
        %s363 = scalar_lea.vmem [#allocation6], %s362
        // Predicated region
        $region49: #{tpu_custom_call.1} parent=47 // pred_check
          %p364 = pneg %p71
        $region50: #{tpu_custom_call.1} parent=47 // pred_check_branch
          %366 = sbr.rel (%p364) target = $region52
        $region51: #{tpu_custom_call.1} parent=47 // pred_region
          %367 = dma.done %s360, 1024
        $region52: #{tpu_custom_call.1} parent=47 // pred_fallthru
          _
        %s368 = sand.u32 %s29, 1
        %s369 = scalar_lea.sflag [#allocation10], %s368
        %s370 = sand.u32 %s86, 1
        %s371 = smul.addr %s370, 64
        %s372 = scalar_lea.vmem [#allocation9], %s371
        // Predicated region
        $region53: #{tpu_custom_call.1} parent=47 // pred_check
          %p373 = pneg %p99
        $region54: #{tpu_custom_call.1} parent=47 // pred_check_branch
          %375 = sbr.rel (%p373) target = $region56
        $region55: #{tpu_custom_call.1} parent=47 // pred_region
          %376 = dma.done %s369, 1024
        $region56: #{tpu_custom_call.1} parent=47 // pred_fallthru
          _
        // Predicated region
        $region57: #{tpu_custom_call.1} parent=47 // pred_check
          %p377 = pneg %p120
        $region58: #{tpu_custom_call.1} parent=47 // pred_check_branch
          %379 = sbr.rel (%p377) target = $region60
        $region59: #{tpu_custom_call.1} parent=47 // pred_region
          %380 = dma.done [#allocation10], 1024
        $region60: #{tpu_custom_call.1} parent=47 // pred_fallthru
          _
        // Predicated region
        $region61: #{tpu_custom_call.1} parent=47 // pred_check
          %p381 = pneg %p141
        $region62: #{tpu_custom_call.1} parent=47 // pred_check_branch
          %383 = sbr.rel (%p381) target = $region64
        $region63: #{tpu_custom_call.1} parent=47 // pred_region
          %384 = dma.done [#allocation13], 1024
        $region64: #{tpu_custom_call.1} parent=47 // pred_fallthru
          _
        // Predicated region
        $region65: #{tpu_custom_call.1} parent=47 // pred_check
          %p385 = pneg %p162
        $region66: #{tpu_custom_call.1} parent=47 // pred_check_branch
          %387 = sbr.rel (%p385) target = $region68
        $region67: #{tpu_custom_call.1} parent=47 // pred_region
          %388 = dma.done [#allocation13], 1024
        $region68: #{tpu_custom_call.1} parent=47 // pred_fallthru
          _
        // Predicated region
        $region69: #{tpu_custom_call.1} parent=47 // pred_check
          %p389 = pneg %p183
        $region70: #{tpu_custom_call.1} parent=47 // pred_check_branch
          %391 = sbr.rel (%p389) target = $region72
        $region71: #{tpu_custom_call.1} parent=47 // pred_region
          %392 = dma.done [#allocation16], 1024
        $region72: #{tpu_custom_call.1} parent=47 // pred_fallthru
          _
        %s393 = sand.u32 %s58, 1
        %s394 = scalar_lea.sflag [#allocation7], %s393
        %s395 = sand.u32 %s58, 1
        %s396 = smul.addr %s395, 64
        %s397 = scalar_lea.vmem [#allocation6], %s396
        %p398 = pneg %p71
        %p399 = pneg %p68
        %s400 = sand.u32 %s29, 1
        %s401 = scalar_lea.sflag [#allocation10], %s400
        %s402 = sand.u32 %s86, 1
        %s403 = smul.addr %s402, 64
        %s404 = scalar_lea.vmem [#allocation9], %s403
        %p405 = pneg %p99
        %p406 = pneg %p96
        %p407 = pneg %p120
        %p408 = pneg %p117
        %p409 = pneg %p141
        %p410 = pneg %p138
        %p411 = pneg %p162
        %p412 = pneg %p159
        %p413 = pneg %p183
        %p414 = pneg %p180
        %p415 = pneg %p204
        %p416 = pneg %p201
        %p417 = pneg %p232
        %p418 = pneg %p229
        %s419 = sand.u32 %s219, 1
        %s420 = scalar_lea.sflag [#allocation8], %s419
        %s421 = sand.u32 %s219, 1
        %s422 = smul.addr %s421, 128
        %s423 = scalar_lea.vmem [#allocation17], %s422
        %s424 = smul.u32 16, %s35
        %s425 = smul.u32 16, %s36
        %s426 = smul.u32 16, %s35
        %p428 = scmp.eq.s32.totalorder %s36, 0
        // Predicated region
        $region73: #{tpu_custom_call.1} parent=47 // pred_check
          %p429 = pneg %p428
        $region74: #{tpu_custom_call.1} parent=47 // pred_check_branch
          %431 = sbr.rel (%p429) target = $region76
        $region75: #{tpu_custom_call.1} parent=47 // pred_region
          %v432 = vld [vmem:[%s363] sm:$0xf]
          %v433 = vld [vmem:[%s363 + $0x4] sm:$0xf]
          %v434 = vld [vmem:[%s363 + $0x8] sm:$0xf]
          %v435 = vld [vmem:[%s363 + $0xc] sm:$0xf]
          %v436 = vld [vmem:[%s363 + $0x10] sm:$0xf]
          %v437 = vld [vmem:[%s363 + $0x14] sm:$0xf]
          %v438 = vld [vmem:[%s363 + $0x18] sm:$0xf]
          %v439 = vld [vmem:[%s363 + $0x1c] sm:$0xf]
          %v440 = vld [vmem:[%s363 + $0x20] sm:$0xf]
          %v441 = vld [vmem:[%s363 + $0x24] sm:$0xf]
          %v442 = vld [vmem:[%s363 + $0x28] sm:$0xf]
          %v443 = vld [vmem:[%s363 + $0x2c] sm:$0xf]
          %v444 = vld [vmem:[%s363 + $0x30] sm:$0xf]
          %v445 = vld [vmem:[%s363 + $0x34] sm:$0xf]
          %v446 = vld [vmem:[%s363 + $0x38] sm:$0xf]
          %v447 = vld [vmem:[%s363 + $0x3c] sm:$0xf]
          %v448 = vld [vmem:[#allocation11] sm:$0xf]
          %v449 = vld [vmem:[#allocation11 + $0x4] sm:$0xf]
          %v450 = vld [vmem:[#allocation11 + $0x8] sm:$0xf]
          %v451 = vld [vmem:[#allocation11 + $0xc] sm:$0xf]
          %v452 = vld [vmem:[#allocation11 + $0x10] sm:$0xf]
          %v453 = vld [vmem:[#allocation11 + $0x14] sm:$0xf]
          %v454 = vld [vmem:[#allocation11 + $0x18] sm:$0xf]
          %v455 = vld [vmem:[#allocation11 + $0x1c] sm:$0xf]
          %v456 = vld [vmem:[#allocation11 + $0x20] sm:$0xf]
          %v457 = vld [vmem:[#allocation11 + $0x24] sm:$0xf]
          %v458 = vld [vmem:[#allocation11 + $0x28] sm:$0xf]
          %v459 = vld [vmem:[#allocation11 + $0x2c] sm:$0xf]
          %v460 = vld [vmem:[#allocation11 + $0x30] sm:$0xf]
          %v461 = vld [vmem:[#allocation11 + $0x34] sm:$0xf]
          %v462 = vld [vmem:[#allocation11 + $0x38] sm:$0xf]
          %v463 = vld [vmem:[#allocation11 + $0x3c] sm:$0xf]
          %v480 = vunpack.c.l.b16 %v432
          %v481 = vunpack.c.l.b16 %v433
          %v482 = vunpack.c.l.b16 %v434
          %v483 = vunpack.c.l.b16 %v435
          %v484 = vunpack.c.l.b16 %v436
          %v485 = vunpack.c.l.b16 %v437
          %v486 = vunpack.c.l.b16 %v438
          %v487 = vunpack.c.l.b16 %v439
          %v488 = vunpack.c.l.b16 %v440
          %v489 = vunpack.c.l.b16 %v441
          %v490 = vunpack.c.l.b16 %v442
          %v491 = vunpack.c.l.b16 %v443
          %v492 = vunpack.c.l.b16 %v444
          %v493 = vunpack.c.l.b16 %v445
          %v494 = vunpack.c.l.b16 %v446
          %v495 = vunpack.c.l.b16 %v447
          %v496 = vpack.c.b16 %v481, %v480
          %v497 = vpack.c.b16 %v483, %v482
          %v498 = vpack.c.b16 %v485, %v484
          %v499 = vpack.c.b16 %v487, %v486
          %v500 = vpack.c.b16 %v489, %v488
          %v501 = vpack.c.b16 %v491, %v490
          %v502 = vpack.c.b16 %v493, %v492
          %v503 = vpack.c.b16 %v495, %v494
          %v528 = vunpack.c.l.b16 %v448
          %v529 = vunpack.c.l.b16 %v449
          %v530 = vunpack.c.l.b16 %v450
          %v531 = vunpack.c.l.b16 %v451
          %v532 = vunpack.c.l.b16 %v452
          %v533 = vunpack.c.l.b16 %v453
          %v534 = vunpack.c.l.b16 %v454
          %v535 = vunpack.c.l.b16 %v455
          %v536 = vunpack.c.l.b16 %v456
          %v537 = vunpack.c.l.b16 %v457
          %v538 = vunpack.c.l.b16 %v458
          %v539 = vunpack.c.l.b16 %v459
          %v540 = vunpack.c.l.b16 %v460
          %v541 = vunpack.c.l.b16 %v461
          %v542 = vunpack.c.l.b16 %v462
          %v543 = vunpack.c.l.b16 %v463
          %v544 = vpack.c.b16 %v529, %v528
          %v545 = vpack.c.b16 %v531, %v530
          %v546 = vpack.c.b16 %v533, %v532
          %v547 = vpack.c.b16 %v535, %v534
          %v548 = vpack.c.b16 %v537, %v536
          %v549 = vpack.c.b16 %v539, %v538
          %v550 = vpack.c.b16 %v541, %v540
          %v551 = vpack.c.b16 %v543, %v542
          %560 = vmatprep.subr.bf16.mxu0 0
          %561 = vmatpush1.bf16.msra.mxu0 %v544
          %562 = vmatprep.subr.bf16.mxu0 0
          %563 = vmatpush1.bf16.msra.mxu0 %v545
          %564 = vmatprep.subr.bf16.mxu0 0
          %565 = vmatpush1.bf16.msra.mxu0 %v546
          %566 = vmatprep.subr.bf16.mxu0 0
          %567 = vmatpush1.bf16.msra.mxu0 %v547
          %568 = vmatprep.subr.bf16.mxu0 0
          %569 = vmatpush1.bf16.msra.mxu0 %v548
          %570 = vmatprep.subr.bf16.mxu0 0
          %571 = vmatpush1.bf16.msra.mxu0 %v549
          %572 = vmatprep.subr.bf16.mxu0 0
          %573 = vmatpush1.bf16.msra.mxu0 %v550
          %574 = vmatprep.subr.bf16.mxu0 0
          %575 = vmatpush1.bf16.msra.mxu0 %v551
          %576 = vmatprep.subr.bf16.mxu0 0
          %577 = vmatpush1.bf16.msra.mxu0 0
          %578 = vmatprep.subr.bf16.mxu0 0
          %579 = vmatpush1.bf16.msra.mxu0 0
          %580 = vmatprep.subr.bf16.mxu0 0
          %581 = vmatpush1.bf16.msra.mxu0 0
          %582 = vmatprep.subr.bf16.mxu0 0
          %583 = vmatpush1.bf16.msra.mxu0 0
          %584 = vmatprep.subr.bf16.mxu0 0
          %585 = vmatpush1.bf16.msra.mxu0 0
          %586 = vmatprep.subr.bf16.mxu0 0
          %587 = vmatpush1.bf16.msra.mxu0 0
          %588 = vmatprep.subr.bf16.mxu0 0
          %589 = vmatpush1.bf16.msra.mxu0 0
          %590 = vmatprep.subr.bf16.mxu0 0
          %591 = vmatpush1.bf16.msra.mxu0 0
          %592 = vmatprep.mubr.bf16.mxu0 0
          %593 = vmatmul.mubr.bf16.gmra.mrb[0].mxu0 %v496
          %v594 = vpop.f32.mrb[0].mxu0
          %v595 = vadd.f32 0.0, %v594
          %v596 = vpop.f32.mrb[0].mxu0
          %v597 = vpop.f32.mrb[0].mxu0
          %v598 = vadd.f32 0.0, %v597
          %v599 = vpop.f32.mrb[0].mxu0
          %600 = vmatprep.mubr.bf16.mxu0 0
          %601 = vmatmul.mubr.bf16.gmra.mrb[0].mxu0 %v497
          %v602 = vpop.f32.mrb[0].mxu0
          %v603 = vadd.f32 0.0, %v602
          %v604 = vpop.f32.mrb[0].mxu0
          %v605 = vpop.f32.mrb[0].mxu0
          %v606 = vadd.f32 0.0, %v605
          %v607 = vpop.f32.mrb[0].mxu0
          %608 = vmatprep.mubr.bf16.mxu0 0
          %609 = vmatmul.mubr.bf16.gmra.mrb[0].mxu0 %v498
          %v610 = vpop.f32.mrb[0].mxu0
          %v611 = vadd.f32 0.0, %v610
          %v612 = vpop.f32.mrb[0].mxu0
          %v613 = vpop.f32.mrb[0].mxu0
          %v614 = vadd.f32 0.0, %v613
          %v615 = vpop.f32.mrb[0].mxu0
          %616 = vmatprep.mubr.bf16.mxu0 0
          %617 = vmatmul.mubr.bf16.gmra.mrb[0].mxu0 %v499
          %v618 = vpop.f32.mrb[0].mxu0
          %v619 = vadd.f32 0.0, %v618
          %v620 = vpop.f32.mrb[0].mxu0
          %v621 = vpop.f32.mrb[0].mxu0
          %v622 = vadd.f32 0.0, %v621
          %v623 = vpop.f32.mrb[0].mxu0
          %624 = vmatprep.mubr.bf16.mxu0 0
          %625 = vmatmul.mubr.bf16.gmra.mrb[0].mxu0 %v500
          %v626 = vpop.f32.mrb[0].mxu0
          %v627 = vadd.f32 0.0, %v626
          %v628 = vpop.f32.mrb[0].mxu0
          %v629 = vpop.f32.mrb[0].mxu0
          %v630 = vadd.f32 0.0, %v629
          %v631 = vpop.f32.mrb[0].mxu0
          %632 = vmatprep.mubr.bf16.mxu0 0
          %633 = vmatmul.mubr.bf16.gmra.mrb[0].mxu0 %v501
          %v634 = vpop.f32.mrb[0].mxu0
          %v635 = vadd.f32 0.0, %v634
          %v636 = vpop.f32.mrb[0].mxu0
          %v637 = vpop.f32.mrb[0].mxu0
          %v638 = vadd.f32 0.0, %v637
          %v639 = vpop.f32.mrb[0].mxu0
          %640 = vmatprep.mubr.bf16.mxu0 0
          %641 = vmatmul.mubr.bf16.gmra.mrb[0].mxu0 %v502
          %v642 = vpop.f32.mrb[0].mxu0
          %v643 = vadd.f32 0.0, %v642
          %v644 = vpop.f32.mrb[0].mxu0
          %v645 = vpop.f32.mrb[0].mxu0
          %v646 = vadd.f32 0.0, %v645
          %v647 = vpop.f32.mrb[0].mxu0
          %648 = vmatprep.mubr.bf16.mxu0 0
          %649 = vmatmul.mubr.bf16.gmra.mrb[0].mxu0 %v503
          %v650 = vpop.f32.mrb[0].mxu0
          %v651 = vadd.f32 0.0, %v650
          %v652 = vpop.f32.mrb[0].mxu0
          %v653 = vpop.f32.mrb[0].mxu0
          %v654 = vadd.f32 0.0, %v653
          %v655 = vpop.f32.mrb[0].mxu0
          %656 = vdwg.mxu0
          %v657 = vpack.c.bf16 %v598, %v595
          %v658 = vpack.c.bf16 %v606, %v603
          %v659 = vpack.c.bf16 %v614, %v611
          %v660 = vpack.c.bf16 %v622, %v619
          %v661 = vpack.c.bf16 %v630, %v627
          %v662 = vpack.c.bf16 %v638, %v635
          %v663 = vpack.c.bf16 %v646, %v643
          %v664 = vpack.c.bf16 %v654, %v651
          %vm665 = vcmask 261120
          %666 = vst.msk [vmem:[#allocation2] sm:$0xff] %vm665, %v657
          %667 = vst.msk [vmem:[#allocation2 + $0x8] sm:$0xff] %vm665, %v658
          %668 = vst.msk [vmem:[#allocation2 + $0x10] sm:$0xff] %vm665, %v659
          %669 = vst.msk [vmem:[#allocation2 + $0x18] sm:$0xff] %vm665, %v660
          %670 = vst.msk [vmem:[#allocation2 + $0x20] sm:$0xff] %vm665, %v661
          %671 = vst.msk [vmem:[#allocation2 + $0x28] sm:$0xff] %vm665, %v662
          %672 = vst.msk [vmem:[#allocation2 + $0x30] sm:$0xff] %vm665, %v663
          %673 = vst.msk [vmem:[#allocation2 + $0x38] sm:$0xff] %vm665, %v664
          %682 = vrot.lane.b32.xlu0 %v657, 96
          %v683 = vpop.permute.xlu0 %682
          %684 = vrot.lane.b32.xlu0 %v658, 96
          %v685 = vpop.permute.xlu0 %684
          %686 = vrot.lane.b32.xlu0 %v659, 96
          %v687 = vpop.permute.xlu0 %686
          %688 = vrot.lane.b32.xlu0 %v660, 96
          %v689 = vpop.permute.xlu0 %688
          %690 = vrot.lane.b32.xlu0 %v661, 96
          %v691 = vpop.permute.xlu0 %690
          %692 = vrot.lane.b32.xlu0 %v662, 96
          %v693 = vpop.permute.xlu0 %692
          %694 = vrot.lane.b32.xlu0 %v663, 96
          %v695 = vpop.permute.xlu0 %694
          %696 = vrot.lane.b32.xlu0 %v664, 96
          %v697 = vpop.permute.xlu0 %696
          %s706 = scalar_lea.vmem [#allocation2], 64
          %707 = vst.msk [vmem:[%s706] sm:$0xff] %vm665, %v683
          %708 = vst.msk [vmem:[%s706 + $0x8] sm:$0xff] %vm665, %v685
          %709 = vst.msk [vmem:[%s706 + $0x10] sm:$0xff] %vm665, %v687
          %710 = vst.msk [vmem:[%s706 + $0x18] sm:$0xff] %vm665, %v689
          %711 = vst.msk [vmem:[%s706 + $0x20] sm:$0xff] %vm665, %v691
          %712 = vst.msk [vmem:[%s706 + $0x28] sm:$0xff] %vm665, %v693
          %713 = vst.msk [vmem:[%s706 + $0x30] sm:$0xff] %vm665, %v695
          %714 = vst.msk [vmem:[%s706 + $0x38] sm:$0xff] %vm665, %v697
          %715 = vrot.lane.b32.xlu0 %v657, 64
          %v716 = vpop.permute.xlu0 %715
          %717 = vrot.lane.b32.xlu0 %v658, 64
          %v718 = vpop.permute.xlu0 %717
          %719 = vrot.lane.b32.xlu0 %v659, 64
          %v720 = vpop.permute.xlu0 %719
          %721 = vrot.lane.b32.xlu0 %v660, 64
          %v722 = vpop.permute.xlu0 %721
          %723 = vrot.lane.b32.xlu0 %v661, 64
          %v724 = vpop.permute.xlu0 %723
          %725 = vrot.lane.b32.xlu0 %v662, 64
          %v726 = vpop.permute.xlu0 %725
          %727 = vrot.lane.b32.xlu0 %v663, 64
          %v728 = vpop.permute.xlu0 %727
          %729 = vrot.lane.b32.xlu0 %v664, 64
          %v730 = vpop.permute.xlu0 %729
          %s739 = scalar_lea.vmem [#allocation2], 128
          %740 = vst.msk [vmem:[%s739] sm:$0xff] %vm665, %v716
          %741 = vst.msk [vmem:[%s739 + $0x8] sm:$0xff] %vm665, %v718
          %742 = vst.msk [vmem:[%s739 + $0x10] sm:$0xff] %vm665, %v720
          %743 = vst.msk [vmem:[%s739 + $0x18] sm:$0xff] %vm665, %v722
          %744 = vst.msk [vmem:[%s739 + $0x20] sm:$0xff] %vm665, %v724
          %745 = vst.msk [vmem:[%s739 + $0x28] sm:$0xff] %vm665, %v726
          %746 = vst.msk [vmem:[%s739 + $0x30] sm:$0xff] %vm665, %v728
          %747 = vst.msk [vmem:[%s739 + $0x38] sm:$0xff] %vm665, %v730
          %748 = vrot.lane.b32.xlu0 %v657, 32
          %v749 = vpop.permute.xlu0 %748
          %750 = vrot.lane.b32.xlu0 %v658, 32
          %v751 = vpop.permute.xlu0 %750
          %752 = vrot.lane.b32.xlu0 %v659, 32
          %v753 = vpop.permute.xlu0 %752
          %754 = vrot.lane.b32.xlu0 %v660, 32
          %v755 = vpop.permute.xlu0 %754
          %756 = vrot.lane.b32.xlu0 %v661, 32
          %v757 = vpop.permute.xlu0 %756
          %758 = vrot.lane.b32.xlu0 %v662, 32
          %v759 = vpop.permute.xlu0 %758
          %760 = vrot.lane.b32.xlu0 %v663, 32
          %v761 = vpop.permute.xlu0 %760
          %762 = vrot.lane.b32.xlu0 %v664, 32
          %v763 = vpop.permute.xlu0 %762
          %s772 = scalar_lea.vmem [#allocation2], 192
          %773 = vst.msk [vmem:[%s772] sm:$0xff] %vm665, %v749
          %774 = vst.msk [vmem:[%s772 + $0x8] sm:$0xff] %vm665, %v751
          %775 = vst.msk [vmem:[%s772 + $0x10] sm:$0xff] %vm665, %v753
          %776 = vst.msk [vmem:[%s772 + $0x18] sm:$0xff] %vm665, %v755
          %777 = vst.msk [vmem:[%s772 + $0x20] sm:$0xff] %vm665, %v757
          %778 = vst.msk [vmem:[%s772 + $0x28] sm:$0xff] %vm665, %v759
          %779 = vst.msk [vmem:[%s772 + $0x30] sm:$0xff] %vm665, %v761
          %780 = vst.msk [vmem:[%s772 + $0x38] sm:$0xff] %vm665, %v763
          %vm781 = vcmask 7168
          %782 = vst.msk [vmem:[#allocation3] sm:$0xff] %vm781, -inf
          %783 = vst.msk [vmem:[#allocation3 + $0x8] sm:$0xff] %vm781, -inf
          %784 = vst.msk [vmem:[#allocation3 + $0x10] sm:$0xff] %vm781, -inf
          %785 = vst.msk [vmem:[#allocation3 + $0x18] sm:$0xff] %vm781, -inf
          %786 = vst.msk [vmem:[#allocation3 + $0x20] sm:$0xff] %vm781, -inf
          %787 = vst.msk [vmem:[#allocation3 + $0x28] sm:$0xff] %vm781, -inf
          %788 = vst.msk [vmem:[#allocation3 + $0x30] sm:$0xff] %vm781, -inf
          %789 = vst.msk [vmem:[#allocation3 + $0x38] sm:$0xff] %vm781, -inf
          %790 = vst.msk [vmem:[#allocation3 + $0x40] sm:$0xff] %vm781, -inf
          %791 = vst.msk [vmem:[#allocation3 + $0x48] sm:$0xff] %vm781, -inf
          %792 = vst.msk [vmem:[#allocation3 + $0x50] sm:$0xff] %vm781, -inf
          %793 = vst.msk [vmem:[#allocation3 + $0x58] sm:$0xff] %vm781, -inf
          %794 = vst.msk [vmem:[#allocation3 + $0x60] sm:$0xff] %vm781, -inf
          %795 = vst.msk [vmem:[#allocation3 + $0x68] sm:$0xff] %vm781, -inf
          %796 = vst.msk [vmem:[#allocation3 + $0x70] sm:$0xff] %vm781, -inf
          %797 = vst.msk [vmem:[#allocation3 + $0x78] sm:$0xff] %vm781, -inf
          %798 = vst.msk [vmem:[#allocation3 + $0x80] sm:$0xff] %vm781, -inf
          %799 = vst.msk [vmem:[#allocation3 + $0x88] sm:$0xff] %vm781, -inf
          %800 = vst.msk [vmem:[#allocation3 + $0x90] sm:$0xff] %vm781, -inf
          %801 = vst.msk [vmem:[#allocation3 + $0x98] sm:$0xff] %vm781, -inf
          %802 = vst.msk [vmem:[#allocation3 + $0xa0] sm:$0xff] %vm781, -inf
          %803 = vst.msk [vmem:[#allocation3 + $0xa8] sm:$0xff] %vm781, -inf
          %804 = vst.msk [vmem:[#allocation3 + $0xb0] sm:$0xff] %vm781, -inf
          %805 = vst.msk [vmem:[#allocation3 + $0xb8] sm:$0xff] %vm781, -inf
          %806 = vst.msk [vmem:[#allocation3 + $0xc0] sm:$0xff] %vm781, -inf
          %807 = vst.msk [vmem:[#allocation3 + $0xc8] sm:$0xff] %vm781, -inf
          %808 = vst.msk [vmem:[#allocation3 + $0xd0] sm:$0xff] %vm781, -inf
          %809 = vst.msk [vmem:[#allocation3 + $0xd8] sm:$0xff] %vm781, -inf
          %810 = vst.msk [vmem:[#allocation3 + $0xe0] sm:$0xff] %vm781, -inf
          %811 = vst.msk [vmem:[#allocation3 + $0xe8] sm:$0xff] %vm781, -inf
          %812 = vst.msk [vmem:[#allocation3 + $0xf0] sm:$0xff] %vm781, -inf
          %813 = vst.msk [vmem:[#allocation3 + $0xf8] sm:$0xff] %vm781, -inf
          %814 = vst.msk [vmem:[#allocation3 + $0x100] sm:$0xff] %vm781, -inf
          %815 = vst.msk [vmem:[#allocation3 + $0x108] sm:$0xff] %vm781, -inf
          %816 = vst.msk [vmem:[#allocation3 + $0x110] sm:$0xff] %vm781, -inf
          %817 = vst.msk [vmem:[#allocation3 + $0x118] sm:$0xff] %vm781, -inf
          %818 = vst.msk [vmem:[#allocation3 + $0x120] sm:$0xff] %vm781, -inf
          %819 = vst.msk [vmem:[#allocation3 + $0x128] sm:$0xff] %vm781, -inf
          %820 = vst.msk [vmem:[#allocation3 + $0x130] sm:$0xff] %vm781, -inf
          %821 = vst.msk [vmem:[#allocation3 + $0x138] sm:$0xff] %vm781, -inf
          %822 = vst.msk [vmem:[#allocation3 + $0x140] sm:$0xff] %vm781, -inf
          %823 = vst.msk [vmem:[#allocation3 + $0x148] sm:$0xff] %vm781, -inf
          %824 = vst.msk [vmem:[#allocation3 + $0x150] sm:$0xff] %vm781, -inf
          %825 = vst.msk [vmem:[#allocation3 + $0x158] sm:$0xff] %vm781, -inf
          %826 = vst.msk [vmem:[#allocation3 + $0x160] sm:$0xff] %vm781, -inf
          %827 = vst.msk [vmem:[#allocation3 + $0x168] sm:$0xff] %vm781, -inf
          %828 = vst.msk [vmem:[#allocation3 + $0x170] sm:$0xff] %vm781, -inf
          %829 = vst.msk [vmem:[#allocation3 + $0x178] sm:$0xff] %vm781, -inf
          %830 = vst.msk [vmem:[#allocation3 + $0x180] sm:$0xff] %vm781, -inf
          %831 = vst.msk [vmem:[#allocation3 + $0x188] sm:$0xff] %vm781, -inf
          %832 = vst.msk [vmem:[#allocation3 + $0x190] sm:$0xff] %vm781, -inf
          %833 = vst.msk [vmem:[#allocation3 + $0x198] sm:$0xff] %vm781, -inf
          %834 = vst.msk [vmem:[#allocation3 + $0x1a0] sm:$0xff] %vm781, -inf
          %835 = vst.msk [vmem:[#allocation3 + $0x1a8] sm:$0xff] %vm781, -inf
          %836 = vst.msk [vmem:[#allocation3 + $0x1b0] sm:$0xff] %vm781, -inf
          %837 = vst.msk [vmem:[#allocation3 + $0x1b8] sm:$0xff] %vm781, -inf
          %838 = vst.msk [vmem:[#allocation3 + $0x1c0] sm:$0xff] %vm781, -inf
          %839 = vst.msk [vmem:[#allocation3 + $0x1c8] sm:$0xff] %vm781, -inf
          %840 = vst.msk [vmem:[#allocation3 + $0x1d0] sm:$0xff] %vm781, -inf
          %841 = vst.msk [vmem:[#allocation3 + $0x1d8] sm:$0xff] %vm781, -inf
          %842 = vst.msk [vmem:[#allocation3 + $0x1e0] sm:$0xff] %vm781, -inf
          %843 = vst.msk [vmem:[#allocation3 + $0x1e8] sm:$0xff] %vm781, -inf
          %844 = vst.msk [vmem:[#allocation3 + $0x1f0] sm:$0xff] %vm781, -inf
          %845 = vst.msk [vmem:[#allocation3 + $0x1f8] sm:$0xff] %vm781, -inf
          %846 = vst.msk [vmem:[#allocation4] sm:$0xff] %vm781, 0.0
          %847 = vst.msk [vmem:[#allocation4 + $0x8] sm:$0xff] %vm781, 0.0
          %848 = vst.msk [vmem:[#allocation4 + $0x10] sm:$0xff] %vm781, 0.0
          %849 = vst.msk [vmem:[#allocation4 + $0x18] sm:$0xff] %vm781, 0.0
          %850 = vst.msk [vmem:[#allocation4 + $0x20] sm:$0xff] %vm781, 0.0
          %851 = vst.msk [vmem:[#allocation4 + $0x28] sm:$0xff] %vm781, 0.0
          %852 = vst.msk [vmem:[#allocation4 + $0x30] sm:$0xff] %vm781, 0.0
          %853 = vst.msk [vmem:[#allocation4 + $0x38] sm:$0xff] %vm781, 0.0
          %854 = vst.msk [vmem:[#allocation4 + $0x40] sm:$0xff] %vm781, 0.0
          %855 = vst.msk [vmem:[#allocation4 + $0x48] sm:$0xff] %vm781, 0.0
          %856 = vst.msk [vmem:[#allocation4 + $0x50] sm:$0xff] %vm781, 0.0
          %857 = vst.msk [vmem:[#allocation4 + $0x58] sm:$0xff] %vm781, 0.0
          %858 = vst.msk [vmem:[#allocation4 + $0x60] sm:$0xff] %vm781, 0.0
          %859 = vst.msk [vmem:[#allocation4 + $0x68] sm:$0xff] %vm781, 0.0
          %860 = vst.msk [vmem:[#allocation4 + $0x70] sm:$0xff] %vm781, 0.0
          %861 = vst.msk [vmem:[#allocation4 + $0x78] sm:$0xff] %vm781, 0.0
          %862 = vst.msk [vmem:[#allocation4 + $0x80] sm:$0xff] %vm781, 0.0
          %863 = vst.msk [vmem:[#allocation4 + $0x88] sm:$0xff] %vm781, 0.0
          %864 = vst.msk [vmem:[#allocation4 + $0x90] sm:$0xff] %vm781, 0.0
          %865 = vst.msk [vmem:[#allocation4 + $0x98] sm:$0xff] %vm781, 0.0
          %866 = vst.msk [vmem:[#allocation4 + $0xa0] sm:$0xff] %vm781, 0.0
          %867 = vst.msk [vmem:[#allocation4 + $0xa8] sm:$0xff] %vm781, 0.0
          %868 = vst.msk [vmem:[#allocation4 + $0xb0] sm:$0xff] %vm781, 0.0
          %869 = vst.msk [vmem:[#allocation4 + $0xb8] sm:$0xff] %vm781, 0.0
          %870 = vst.msk [vmem:[#allocation4 + $0xc0] sm:$0xff] %vm781, 0.0
          %871 = vst.msk [vmem:[#allocation4 + $0xc8] sm:$0xff] %vm781, 0.0
          %872 = vst.msk [vmem:[#allocation4 + $0xd0] sm:$0xff] %vm781, 0.0
          %873 = vst.msk [vmem:[#allocation4 + $0xd8] sm:$0xff] %vm781, 0.0
          %874 = vst.msk [vmem:[#allocation4 + $0xe0] sm:$0xff] %vm781, 0.0
          %875 = vst.msk [vmem:[#allocation4 + $0xe8] sm:$0xff] %vm781, 0.0
          %876 = vst.msk [vmem:[#allocation4 + $0xf0] sm:$0xff] %vm781, 0.0
          %877 = vst.msk [vmem:[#allocation4 + $0xf8] sm:$0xff] %vm781, 0.0
          %878 = vst.msk [vmem:[#allocation4 + $0x100] sm:$0xff] %vm781, 0.0
          %879 = vst.msk [vmem:[#allocation4 + $0x108] sm:$0xff] %vm781, 0.0
          %880 = vst.msk [vmem:[#allocation4 + $0x110] sm:$0xff] %vm781, 0.0
          %881 = vst.msk [vmem:[#allocation4 + $0x118] sm:$0xff] %vm781, 0.0
          %882 = vst.msk [vmem:[#allocation4 + $0x120] sm:$0xff] %vm781, 0.0
          %883 = vst.msk [vmem:[#allocation4 + $0x128] sm:$0xff] %vm781, 0.0
          %884 = vst.msk [vmem:[#allocation4 + $0x130] sm:$0xff] %vm781, 0.0
          %885 = vst.msk [vmem:[#allocation4 + $0x138] sm:$0xff] %vm781, 0.0
          %886 = vst.msk [vmem:[#allocation4 + $0x140] sm:$0xff] %vm781, 0.0
          %887 = vst.msk [vmem:[#allocation4 + $0x148] sm:$0xff] %vm781, 0.0
          %888 = vst.msk [vmem:[#allocation4 + $0x150] sm:$0xff] %vm781, 0.0
          %889 = vst.msk [vmem:[#allocation4 + $0x158] sm:$0xff] %vm781, 0.0
          %890 = vst.msk [vmem:[#allocation4 + $0x160] sm:$0xff] %vm781, 0.0
          %891 = vst.msk [vmem:[#allocation4 + $0x168] sm:$0xff] %vm781, 0.0
          %892 = vst.msk [vmem:[#allocation4 + $0x170] sm:$0xff] %vm781, 0.0
          %893 = vst.msk [vmem:[#allocation4 + $0x178] sm:$0xff] %vm781, 0.0
          %894 = vst.msk [vmem:[#allocation4 + $0x180] sm:$0xff] %vm781, 0.0
          %895 = vst.msk [vmem:[#allocation4 + $0x188] sm:$0xff] %vm781, 0.0
          %896 = vst.msk [vmem:[#allocation4 + $0x190] sm:$0xff] %vm781, 0.0
          %897 = vst.msk [vmem:[#allocation4 + $0x198] sm:$0xff] %vm781, 0.0
          %898 = vst.msk [vmem:[#allocation4 + $0x1a0] sm:$0xff] %vm781, 0.0
          %899 = vst.msk [vmem:[#allocation4 + $0x1a8] sm:$0xff] %vm781, 0.0
          %900 = vst.msk [vmem:[#allocation4 + $0x1b0] sm:$0xff] %vm781, 0.0
          %901 = vst.msk [vmem:[#allocation4 + $0x1b8] sm:$0xff] %vm781, 0.0
          %902 = vst.msk [vmem:[#allocation4 + $0x1c0] sm:$0xff] %vm781, 0.0
          %903 = vst.msk [vmem:[#allocation4 + $0x1c8] sm:$0xff] %vm781, 0.0
          %904 = vst.msk [vmem:[#allocation4 + $0x1d0] sm:$0xff] %vm781, 0.0
          %905 = vst.msk [vmem:[#allocation4 + $0x1d8] sm:$0xff] %vm781, 0.0
          %906 = vst.msk [vmem:[#allocation4 + $0x1e0] sm:$0xff] %vm781, 0.0
          %907 = vst.msk [vmem:[#allocation4 + $0x1e8] sm:$0xff] %vm781, 0.0
          %908 = vst.msk [vmem:[#allocation4 + $0x1f0] sm:$0xff] %vm781, 0.0
          %909 = vst.msk [vmem:[#allocation4 + $0x1f8] sm:$0xff] %vm781, 0.0
          %910 = vst.msk [vmem:[#allocation5] sm:$0xff] %vm665, 0.0
          %911 = vst.msk [vmem:[#allocation5 + $0x8] sm:$0xff] %vm665, 0.0
          %912 = vst.msk [vmem:[#allocation5 + $0x10] sm:$0xff] %vm665, 0.0
          %913 = vst.msk [vmem:[#allocation5 + $0x18] sm:$0xff] %vm665, 0.0
          %914 = vst.msk [vmem:[#allocation5 + $0x20] sm:$0xff] %vm665, 0.0
          %915 = vst.msk [vmem:[#allocation5 + $0x28] sm:$0xff] %vm665, 0.0
          %916 = vst.msk [vmem:[#allocation5 + $0x30] sm:$0xff] %vm665, 0.0
          %917 = vst.msk [vmem:[#allocation5 + $0x38] sm:$0xff] %vm665, 0.0
          %918 = vst.msk [vmem:[#allocation5 + $0x40] sm:$0xff] %vm665, 0.0
          %919 = vst.msk [vmem:[#allocation5 + $0x48] sm:$0xff] %vm665, 0.0
          %920 = vst.msk [vmem:[#allocation5 + $0x50] sm:$0xff] %vm665, 0.0
          %921 = vst.msk [vmem:[#allocation5 + $0x58] sm:$0xff] %vm665, 0.0
          %922 = vst.msk [vmem:[#allocation5 + $0x60] sm:$0xff] %vm665, 0.0
          %923 = vst.msk [vmem:[#allocation5 + $0x68] sm:$0xff] %vm665, 0.0
          %924 = vst.msk [vmem:[#allocation5 + $0x70] sm:$0xff] %vm665, 0.0
          %925 = vst.msk [vmem:[#allocation5 + $0x78] sm:$0xff] %vm665, 0.0
          %926 = vst.msk [vmem:[#allocation5 + $0x80] sm:$0xff] %vm665, 0.0
          %927 = vst.msk [vmem:[#allocation5 + $0x88] sm:$0xff] %vm665, 0.0
          %928 = vst.msk [vmem:[#allocation5 + $0x90] sm:$0xff] %vm665, 0.0
          %929 = vst.msk [vmem:[#allocation5 + $0x98] sm:$0xff] %vm665, 0.0
          %930 = vst.msk [vmem:[#allocation5 + $0xa0] sm:$0xff] %vm665, 0.0
          %931 = vst.msk [vmem:[#allocation5 + $0xa8] sm:$0xff] %vm665, 0.0
          %932 = vst.msk [vmem:[#allocation5 + $0xb0] sm:$0xff] %vm665, 0.0
          %933 = vst.msk [vmem:[#allocation5 + $0xb8] sm:$0xff] %vm665, 0.0
          %934 = vst.msk [vmem:[#allocation5 + $0xc0] sm:$0xff] %vm665, 0.0
          %935 = vst.msk [vmem:[#allocation5 + $0xc8] sm:$0xff] %vm665, 0.0
          %936 = vst.msk [vmem:[#allocation5 + $0xd0] sm:$0xff] %vm665, 0.0
          %937 = vst.msk [vmem:[#allocation5 + $0xd8] sm:$0xff] %vm665, 0.0
          %938 = vst.msk [vmem:[#allocation5 + $0xe0] sm:$0xff] %vm665, 0.0
          %939 = vst.msk [vmem:[#allocation5 + $0xe8] sm:$0xff] %vm665, 0.0
          %940 = vst.msk [vmem:[#allocation5 + $0xf0] sm:$0xff] %vm665, 0.0
          %941 = vst.msk [vmem:[#allocation5 + $0xf8] sm:$0xff] %vm665, 0.0
          %942 = vst.msk [vmem:[#allocation5 + $0x100] sm:$0xff] %vm665, 0.0
          %943 = vst.msk [vmem:[#allocation5 + $0x108] sm:$0xff] %vm665, 0.0
          %944 = vst.msk [vmem:[#allocation5 + $0x110] sm:$0xff] %vm665, 0.0
          %945 = vst.msk [vmem:[#allocation5 + $0x118] sm:$0xff] %vm665, 0.0
          %946 = vst.msk [vmem:[#allocation5 + $0x120] sm:$0xff] %vm665, 0.0
          %947 = vst.msk [vmem:[#allocation5 + $0x128] sm:$0xff] %vm665, 0.0
          %948 = vst.msk [vmem:[#allocation5 + $0x130] sm:$0xff] %vm665, 0.0
          %949 = vst.msk [vmem:[#allocation5 + $0x138] sm:$0xff] %vm665, 0.0
          %950 = vst.msk [vmem:[#allocation5 + $0x140] sm:$0xff] %vm665, 0.0
          %951 = vst.msk [vmem:[#allocation5 + $0x148] sm:$0xff] %vm665, 0.0
          %952 = vst.msk [vmem:[#allocation5 + $0x150] sm:$0xff] %vm665, 0.0
          %953 = vst.msk [vmem:[#allocation5 + $0x158] sm:$0xff] %vm665, 0.0
          %954 = vst.msk [vmem:[#allocation5 + $0x160] sm:$0xff] %vm665, 0.0
          %955 = vst.msk [vmem:[#allocation5 + $0x168] sm:$0xff] %vm665, 0.0
          %956 = vst.msk [vmem:[#allocation5 + $0x170] sm:$0xff] %vm665, 0.0
          %957 = vst.msk [vmem:[#allocation5 + $0x178] sm:$0xff] %vm665, 0.0
          %958 = vst.msk [vmem:[#allocation5 + $0x180] sm:$0xff] %vm665, 0.0
          %959 = vst.msk [vmem:[#allocation5 + $0x188] sm:$0xff] %vm665, 0.0
          %960 = vst.msk [vmem:[#allocation5 + $0x190] sm:$0xff] %vm665, 0.0
          %961 = vst.msk [vmem:[#allocation5 + $0x198] sm:$0xff] %vm665, 0.0
          %962 = vst.msk [vmem:[#allocation5 + $0x1a0] sm:$0xff] %vm665, 0.0
          %963 = vst.msk [vmem:[#allocation5 + $0x1a8] sm:$0xff] %vm665, 0.0
          %964 = vst.msk [vmem:[#allocation5 + $0x1b0] sm:$0xff] %vm665, 0.0
          %965 = vst.msk [vmem:[#allocation5 + $0x1b8] sm:$0xff] %vm665, 0.0
          %966 = vst.msk [vmem:[#allocation5 + $0x1c0] sm:$0xff] %vm665, 0.0
          %967 = vst.msk [vmem:[#allocation5 + $0x1c8] sm:$0xff] %vm665, 0.0
          %968 = vst.msk [vmem:[#allocation5 + $0x1d0] sm:$0xff] %vm665, 0.0
          %969 = vst.msk [vmem:[#allocation5 + $0x1d8] sm:$0xff] %vm665, 0.0
          %970 = vst.msk [vmem:[#allocation5 + $0x1e0] sm:$0xff] %vm665, 0.0
          %971 = vst.msk [vmem:[#allocation5 + $0x1e8] sm:$0xff] %vm665, 0.0
          %972 = vst.msk [vmem:[#allocation5 + $0x1f0] sm:$0xff] %vm665, 0.0
          %973 = vst.msk [vmem:[#allocation5 + $0x1f8] sm:$0xff] %vm665, 0.0
        $region76: #{tpu_custom_call.1} parent=47 // pred_fallthru
          _
        %v974 = vld [vmem:[%s372] sm:$0xf]
        %v975 = vld [vmem:[%s372 + $0x4] sm:$0xf]
        %v976 = vld [vmem:[%s372 + $0x8] sm:$0xf]
        %v977 = vld [vmem:[%s372 + $0xc] sm:$0xf]
        %v978 = vld [vmem:[%s372 + $0x10] sm:$0xf]
        %v979 = vld [vmem:[%s372 + $0x14] sm:$0xf]
        %v980 = vld [vmem:[%s372 + $0x18] sm:$0xf]
        %v981 = vld [vmem:[%s372 + $0x1c] sm:$0xf]
        %v982 = vld [vmem:[%s372 + $0x20] sm:$0xf]
        %v983 = vld [vmem:[%s372 + $0x24] sm:$0xf]
        %v984 = vld [vmem:[%s372 + $0x28] sm:$0xf]
        %v985 = vld [vmem:[%s372 + $0x2c] sm:$0xf]
        %v986 = vld [vmem:[%s372 + $0x30] sm:$0xf]
        %v987 = vld [vmem:[%s372 + $0x34] sm:$0xf]
        %v988 = vld [vmem:[%s372 + $0x38] sm:$0xf]
        %v989 = vld [vmem:[%s372 + $0x3c] sm:$0xf]
        %v990 = vld [vmem:[#allocation12] sm:$0xf]
        %v991 = vld [vmem:[#allocation12 + $0x4] sm:$0xf]
        %v992 = vld [vmem:[#allocation12 + $0x8] sm:$0xf]
        %v993 = vld [vmem:[#allocation12 + $0xc] sm:$0xf]
        %v994 = vld [vmem:[#allocation12 + $0x10] sm:$0xf]
        %v995 = vld [vmem:[#allocation12 + $0x14] sm:$0xf]
        %v996 = vld [vmem:[#allocation12 + $0x18] sm:$0xf]
        %v997 = vld [vmem:[#allocation12 + $0x1c] sm:$0xf]
        %v998 = vld [vmem:[#allocation12 + $0x20] sm:$0xf]
        %v999 = vld [vmem:[#allocation12 + $0x24] sm:$0xf]
        %v1000 = vld [vmem:[#allocation12 + $0x28] sm:$0xf]
        %v1001 = vld [vmem:[#allocation12 + $0x2c] sm:$0xf]
        %v1002 = vld [vmem:[#allocation12 + $0x30] sm:$0xf]
        %v1003 = vld [vmem:[#allocation12 + $0x34] sm:$0xf]
        %v1004 = vld [vmem:[#allocation12 + $0x38] sm:$0xf]
        %v1005 = vld [vmem:[#allocation12 + $0x3c] sm:$0xf]
        %v1022 = vunpack.c.l.b16 %v974
        %v1023 = vunpack.c.l.b16 %v975
        %v1024 = vunpack.c.l.b16 %v976
        %v1025 = vunpack.c.l.b16 %v977
        %v1026 = vunpack.c.l.b16 %v978
        %v1027 = vunpack.c.l.b16 %v979
        %v1028 = vunpack.c.l.b16 %v980
        %v1029 = vunpack.c.l.b16 %v981
        %v1030 = vunpack.c.l.b16 %v982
        %v1031 = vunpack.c.l.b16 %v983
        %v1032 = vunpack.c.l.b16 %v984
        %v1033 = vunpack.c.l.b16 %v985
        %v1034 = vunpack.c.l.b16 %v986
        %v1035 = vunpack.c.l.b16 %v987
        %v1036 = vunpack.c.l.b16 %v988
        %v1037 = vunpack.c.l.b16 %v989
        %v1038 = vpack.c.b16 %v1023, %v1022
        %v1039 = vpack.c.b16 %v1025, %v1024
        %v1040 = vpack.c.b16 %v1027, %v1026
        %v1041 = vpack.c.b16 %v1029, %v1028
        %v1042 = vpack.c.b16 %v1031, %v1030
        %v1043 = vpack.c.b16 %v1033, %v1032
        %v1044 = vpack.c.b16 %v1035, %v1034
        %v1045 = vpack.c.b16 %v1037, %v1036
        %v1070 = vunpack.c.l.b16 %v990
        %v1071 = vunpack.c.l.b16 %v991
        %v1072 = vunpack.c.l.b16 %v992
        %v1073 = vunpack.c.l.b16 %v993
        %v1074 = vunpack.c.l.b16 %v994
        %v1075 = vunpack.c.l.b16 %v995
        %v1076 = vunpack.c.l.b16 %v996
        %v1077 = vunpack.c.l.b16 %v997
        %v1078 = vunpack.c.l.b16 %v998
        %v1079 = vunpack.c.l.b16 %v999
        %v1080 = vunpack.c.l.b16 %v1000
        %v1081 = vunpack.c.l.b16 %v1001
        %v1082 = vunpack.c.l.b16 %v1002
        %v1083 = vunpack.c.l.b16 %v1003
        %v1084 = vunpack.c.l.b16 %v1004
        %v1085 = vunpack.c.l.b16 %v1005
        %v1086 = vpack.c.b16 %v1071, %v1070
        %v1087 = vpack.c.b16 %v1073, %v1072
        %v1088 = vpack.c.b16 %v1075, %v1074
        %v1089 = vpack.c.b16 %v1077, %v1076
        %v1090 = vpack.c.b16 %v1079, %v1078
        %v1091 = vpack.c.b16 %v1081, %v1080
        %v1092 = vpack.c.b16 %v1083, %v1082
        %v1093 = vpack.c.b16 %v1085, %v1084
        %1102 = vmatprep.subr.bf16.mxu0 0
        %1103 = vmatpush1.bf16.msra.mxu0 %v1086
        %1104 = vmatprep.subr.bf16.mxu0 0
        %1105 = vmatpush1.bf16.msra.mxu0 %v1087
        %1106 = vmatprep.subr.bf16.mxu0 0
        %1107 = vmatpush1.bf16.msra.mxu0 %v1088
        %1108 = vmatprep.subr.bf16.mxu0 0
        %1109 = vmatpush1.bf16.msra.mxu0 %v1089
        %1110 = vmatprep.subr.bf16.mxu0 0
        %1111 = vmatpush1.bf16.msra.mxu0 %v1090
        %1112 = vmatprep.subr.bf16.mxu0 0
        %1113 = vmatpush1.bf16.msra.mxu0 %v1091
        %1114 = vmatprep.subr.bf16.mxu0 0
        %1115 = vmatpush1.bf16.msra.mxu0 %v1092
        %1116 = vmatprep.subr.bf16.mxu0 0
        %1117 = vmatpush1.bf16.msra.mxu0 %v1093
        %1118 = vmatprep.subr.bf16.mxu0 0
        %1119 = vmatpush1.bf16.msra.mxu0 0
        %1120 = vmatprep.subr.bf16.mxu0 0
        %1121 = vmatpush1.bf16.msra.mxu0 0
        %1122 = vmatprep.subr.bf16.mxu0 0
        %1123 = vmatpush1.bf16.msra.mxu0 0
        %1124 = vmatprep.subr.bf16.mxu0 0
        %1125 = vmatpush1.bf16.msra.mxu0 0
        %1126 = vmatprep.subr.bf16.mxu0 0
        %1127 = vmatpush1.bf16.msra.mxu0 0
        %1128 = vmatprep.subr.bf16.mxu0 0
        %1129 = vmatpush1.bf16.msra.mxu0 0
        %1130 = vmatprep.subr.bf16.mxu0 0
        %1131 = vmatpush1.bf16.msra.mxu0 0
        %1132 = vmatprep.subr.bf16.mxu0 0
        %1133 = vmatpush1.bf16.msra.mxu0 0
        %1134 = vmatprep.mubr.bf16.mxu0 0
        %1135 = vmatmul.mubr.bf16.gmra.mrb[0].mxu0 %v1038
        %v1136 = vpop.f32.mrb[0].mxu0
        %v1137 = vadd.f32 0.0, %v1136
        %v1138 = vpop.f32.mrb[0].mxu0
        %v1139 = vpop.f32.mrb[0].mxu0
        %v1140 = vadd.f32 0.0, %v1139
        %v1141 = vpop.f32.mrb[0].mxu0
        %1142 = vmatprep.mubr.bf16.mxu0 0
        %1143 = vmatmul.mubr.bf16.gmra.mrb[0].mxu0 %v1039
        %v1144 = vpop.f32.mrb[0].mxu0
        %v1145 = vadd.f32 0.0, %v1144
        %v1146 = vpop.f32.mrb[0].mxu0
        %v1147 = vpop.f32.mrb[0].mxu0
        %v1148 = vadd.f32 0.0, %v1147
        %v1149 = vpop.f32.mrb[0].mxu0
        %1150 = vmatprep.mubr.bf16.mxu0 0
        %1151 = vmatmul.mubr.bf16.gmra.mrb[0].mxu0 %v1040
        %v1152 = vpop.f32.mrb[0].mxu0
        %v1153 = vadd.f32 0.0, %v1152
        %v1154 = vpop.f32.mrb[0].mxu0
        %v1155 = vpop.f32.mrb[0].mxu0
        %v1156 = vadd.f32 0.0, %v1155
        %v1157 = vpop.f32.mrb[0].mxu0
        %1158 = vmatprep.mubr.bf16.mxu0 0
        %1159 = vmatmul.mubr.bf16.gmra.mrb[0].mxu0 %v1041
        %v1160 = vpop.f32.mrb[0].mxu0
        %v1161 = vadd.f32 0.0, %v1160
        %v1162 = vpop.f32.mrb[0].mxu0
        %v1163 = vpop.f32.mrb[0].mxu0
        %v1164 = vadd.f32 0.0, %v1163
        %v1165 = vpop.f32.mrb[0].mxu0
        %1166 = vmatprep.mubr.bf16.mxu0 0
        %1167 = vmatmul.mubr.bf16.gmra.mrb[0].mxu0 %v1042
        %v1168 = vpop.f32.mrb[0].mxu0
        %v1169 = vadd.f32 0.0, %v1168
        %v1170 = vpop.f32.mrb[0].mxu0
        %v1171 = vpop.f32.mrb[0].mxu0
        %v1172 = vadd.f32 0.0, %v1171
        %v1173 = vpop.f32.mrb[0].mxu0
        %1174 = vmatprep.mubr.bf16.mxu0 0
        %1175 = vmatmul.mubr.bf16.gmra.mrb[0].mxu0 %v1043
        %v1176 = vpop.f32.mrb[0].mxu0
        %v1177 = vadd.f32 0.0, %v1176
        %v1178 = vpop.f32.mrb[0].mxu0
        %v1179 = vpop.f32.mrb[0].mxu0
        %v1180 = vadd.f32 0.0, %v1179
        %v1181 = vpop.f32.mrb[0].mxu0
        %1182 = vmatprep.mubr.bf16.mxu0 0
        %1183 = vmatmul.mubr.bf16.gmra.mrb[0].mxu0 %v1044
        %v1184 = vpop.f32.mrb[0].mxu0
        %v1185 = vadd.f32 0.0, %v1184
        %v1186 = vpop.f32.mrb[0].mxu0
        %v1187 = vpop.f32.mrb[0].mxu0
        %v1188 = vadd.f32 0.0, %v1187
        %v1189 = vpop.f32.mrb[0].mxu0
        %1190 = vmatprep.mubr.bf16.mxu0 0
        %1191 = vmatmul.mubr.bf16.gmra.mrb[0].mxu0 %v1045
        %v1192 = vpop.f32.mrb[0].mxu0
        %v1193 = vadd.f32 0.0, %v1192
        %v1194 = vpop.f32.mrb[0].mxu0
        %v1195 = vpop.f32.mrb[0].mxu0
        %v1196 = vadd.f32 0.0, %v1195
        %v1197 = vpop.f32.mrb[0].mxu0
        %1198 = vdwg.mxu0
        %v1199 = vpack.c.bf16 %v1140, %v1137
        %v1200 = vpack.c.bf16 %v1148, %v1145
        %v1201 = vpack.c.bf16 %v1156, %v1153
        %v1202 = vpack.c.bf16 %v1164, %v1161
        %v1203 = vpack.c.bf16 %v1172, %v1169
        %v1204 = vpack.c.bf16 %v1180, %v1177
        %v1205 = vpack.c.bf16 %v1188, %v1185
        %v1206 = vpack.c.bf16 %v1196, %v1193
        %v1207 = vld [vmem:[#allocation14] sm:$0xf]
        %v1208 = vld [vmem:[#allocation14 + $0x4] sm:$0xf]
        %v1209 = vld [vmem:[#allocation14 + $0x8] sm:$0xf]
        %v1210 = vld [vmem:[#allocation14 + $0xc] sm:$0xf]
        %v1211 = vld [vmem:[#allocation14 + $0x10] sm:$0xf]
        %v1212 = vld [vmem:[#allocation14 + $0x14] sm:$0xf]
        %v1213 = vld [vmem:[#allocation14 + $0x18] sm:$0xf]
        %v1214 = vld [vmem:[#allocation14 + $0x1c] sm:$0xf]
        %v1215 = vld [vmem:[#allocation14 + $0x20] sm:$0xf]
        %v1216 = vld [vmem:[#allocation14 + $0x24] sm:$0xf]
        %v1217 = vld [vmem:[#allocation14 + $0x28] sm:$0xf]
        %v1218 = vld [vmem:[#allocation14 + $0x2c] sm:$0xf]
        %v1219 = vld [vmem:[#allocation14 + $0x30] sm:$0xf]
        %v1220 = vld [vmem:[#allocation14 + $0x34] sm:$0xf]
        %v1221 = vld [vmem:[#allocation14 + $0x38] sm:$0xf]
        %v1222 = vld [vmem:[#allocation14 + $0x3c] sm:$0xf]
        %v1239 = vunpack.c.l.b16 %v1207
        %v1240 = vunpack.c.l.b16 %v1208
        %v1241 = vunpack.c.l.b16 %v1209
        %v1242 = vunpack.c.l.b16 %v1210
        %v1243 = vunpack.c.l.b16 %v1211
        %v1244 = vunpack.c.l.b16 %v1212
        %v1245 = vunpack.c.l.b16 %v1213
        %v1246 = vunpack.c.l.b16 %v1214
        %v1247 = vunpack.c.l.b16 %v1215
        %v1248 = vunpack.c.l.b16 %v1216
        %v1249 = vunpack.c.l.b16 %v1217
        %v1250 = vunpack.c.l.b16 %v1218
        %v1251 = vunpack.c.l.b16 %v1219
        %v1252 = vunpack.c.l.b16 %v1220
        %v1253 = vunpack.c.l.b16 %v1221
        %v1254 = vunpack.c.l.b16 %v1222
        %v1255 = vpack.c.b16 %v1240, %v1239
        %v1256 = vpack.c.b16 %v1242, %v1241
        %v1257 = vpack.c.b16 %v1244, %v1243
        %v1258 = vpack.c.b16 %v1246, %v1245
        %v1259 = vpack.c.b16 %v1248, %v1247
        %v1260 = vpack.c.b16 %v1250, %v1249
        %v1261 = vpack.c.b16 %v1252, %v1251
        %v1262 = vpack.c.b16 %v1254, %v1253
        %1271 = vmatprep.subr.bf16.mxu0 0
        %1272 = vmatpush1.bf16.msra.mxu0 %v1255
        %1273 = vmatprep.subr.bf16.mxu0 0
        %1274 = vmatpush1.bf16.msra.mxu0 %v1256
        %1275 = vmatprep.subr.bf16.mxu0 0
        %1276 = vmatpush1.bf16.msra.mxu0 %v1257
        %1277 = vmatprep.subr.bf16.mxu0 0
        %1278 = vmatpush1.bf16.msra.mxu0 %v1258
        %1279 = vmatprep.subr.bf16.mxu0 0
        %1280 = vmatpush1.bf16.msra.mxu0 %v1259
        %1281 = vmatprep.subr.bf16.mxu0 0
        %1282 = vmatpush1.bf16.msra.mxu0 %v1260
        %1283 = vmatprep.subr.bf16.mxu0 0
        %1284 = vmatpush1.bf16.msra.mxu0 %v1261
        %1285 = vmatprep.subr.bf16.mxu0 0
        %1286 = vmatpush1.bf16.msra.mxu0 %v1262
        %1287 = vmatprep.subr.bf16.mxu0 0
        %1288 = vmatpush1.bf16.msra.mxu0 0
        %1289 = vmatprep.subr.bf16.mxu0 0
        %1290 = vmatpush1.bf16.msra.mxu0 0
        %1291 = vmatprep.subr.bf16.mxu0 0
        %1292 = vmatpush1.bf16.msra.mxu0 0
        %1293 = vmatprep.subr.bf16.mxu0 0
        %1294 = vmatpush1.bf16.msra.mxu0 0
        %1295 = vmatprep.subr.bf16.mxu0 0
        %1296 = vmatpush1.bf16.msra.mxu0 0
        %1297 = vmatprep.subr.bf16.mxu0 0
        %1298 = vmatpush1.bf16.msra.mxu0 0
        %1299 = vmatprep.subr.bf16.mxu0 0
        %1300 = vmatpush1.bf16.msra.mxu0 0
        %1301 = vmatprep.subr.bf16.mxu0 0
        %1302 = vmatpush1.bf16.msra.mxu0 0
        %1303 = vmatprep.mubr.bf16.mxu0 0
        %1304 = vmatmul.mubr.bf16.gmra.mrb[0].mxu0 %v1038
        %v1305 = vpop.f32.mrb[0].mxu0
        %v1306 = vadd.f32 0.0, %v1305
        %v1307 = vpop.f32.mrb[0].mxu0
        %v1308 = vpop.f32.mrb[0].mxu0
        %v1309 = vadd.f32 0.0, %v1308
        %v1310 = vpop.f32.mrb[0].mxu0
        %1311 = vmatprep.mubr.bf16.mxu0 0
        %1312 = vmatmul.mubr.bf16.gmra.mrb[0].mxu0 %v1039
        %v1313 = vpop.f32.mrb[0].mxu0
        %v1314 = vadd.f32 0.0, %v1313
        %v1315 = vpop.f32.mrb[0].mxu0
        %v1316 = vpop.f32.mrb[0].mxu0
        %v1317 = vadd.f32 0.0, %v1316
        %v1318 = vpop.f32.mrb[0].mxu0
        %1319 = vmatprep.mubr.bf16.mxu0 0
        %1320 = vmatmul.mubr.bf16.gmra.mrb[0].mxu0 %v1040
        %v1321 = vpop.f32.mrb[0].mxu0
        %v1322 = vadd.f32 0.0, %v1321
        %v1323 = vpop.f32.mrb[0].mxu0
        %v1324 = vpop.f32.mrb[0].mxu0
        %v1325 = vadd.f32 0.0, %v1324
        %v1326 = vpop.f32.mrb[0].mxu0
        %1327 = vmatprep.mubr.bf16.mxu0 0
        %1328 = vmatmul.mubr.bf16.gmra.mrb[0].mxu0 %v1041
        %v1329 = vpop.f32.mrb[0].mxu0
        %v1330 = vadd.f32 0.0, %v1329
        %v1331 = vpop.f32.mrb[0].mxu0
        %v1332 = vpop.f32.mrb[0].mxu0
        %v1333 = vadd.f32 0.0, %v1332
        %v1334 = vpop.f32.mrb[0].mxu0
        %1335 = vmatprep.mubr.bf16.mxu0 0
        %1336 = vmatmul.mubr.bf16.gmra.mrb[0].mxu0 %v1042
        %v1337 = vpop.f32.mrb[0].mxu0
        %v1338 = vadd.f32 0.0, %v1337
        %v1339 = vpop.f32.mrb[0].mxu0
        %v1340 = vpop.f32.mrb[0].mxu0
        %v1341 = vadd.f32 0.0, %v1340
        %v1342 = vpop.f32.mrb[0].mxu0
        %1343 = vmatprep.mubr.bf16.mxu0 0
        %1344 = vmatmul.mubr.bf16.gmra.mrb[0].mxu0 %v1043
        %v1345 = vpop.f32.mrb[0].mxu0
        %v1346 = vadd.f32 0.0, %v1345
        %v1347 = vpop.f32.mrb[0].mxu0
        %v1348 = vpop.f32.mrb[0].mxu0
        %v1349 = vadd.f32 0.0, %v1348
        %v1350 = vpop.f32.mrb[0].mxu0
        %1351 = vmatprep.mubr.bf16.mxu0 0
        %1352 = vmatmul.mubr.bf16.gmra.mrb[0].mxu0 %v1044
        %v1353 = vpop.f32.mrb[0].mxu0
        %v1354 = vadd.f32 0.0, %v1353
        %v1355 = vpop.f32.mrb[0].mxu0
        %v1356 = vpop.f32.mrb[0].mxu0
        %v1357 = vadd.f32 0.0, %v1356
        %v1358 = vpop.f32.mrb[0].mxu0
        %1359 = vmatprep.mubr.bf16.mxu0 0
        %1360 = vmatmul.mubr.bf16.gmra.mrb[0].mxu0 %v1045
        %v1361 = vpop.f32.mrb[0].mxu0
        %v1362 = vadd.f32 0.0, %v1361
        %v1363 = vpop.f32.mrb[0].mxu0
        %v1364 = vpop.f32.mrb[0].mxu0
        %v1365 = vadd.f32 0.0, %v1364
        %v1366 = vpop.f32.mrb[0].mxu0
        %1367 = vdwg.mxu0
        %v1368 = vpack.c.bf16 %v1309, %v1306
        %v1369 = vpack.c.bf16 %v1317, %v1314
        %v1370 = vpack.c.bf16 %v1325, %v1322
        %v1371 = vpack.c.bf16 %v1333, %v1330
        %v1372 = vpack.c.bf16 %v1341, %v1338
        %v1373 = vpack.c.bf16 %v1349, %v1346
        %v1374 = vpack.c.bf16 %v1357, %v1354
        %v1375 = vpack.c.bf16 %v1365, %v1362
        %v1376 = vld [vmem:[#allocation2] sm:$0xff]
        %v1377 = vld [vmem:[#allocation2 + $0x8] sm:$0xff]
        %v1378 = vld [vmem:[#allocation2 + $0x10] sm:$0xff]
        %v1379 = vld [vmem:[#allocation2 + $0x18] sm:$0xff]
        %v1380 = vld [vmem:[#allocation2 + $0x20] sm:$0xff]
        %v1381 = vld [vmem:[#allocation2 + $0x28] sm:$0xff]
        %v1382 = vld [vmem:[#allocation2 + $0x30] sm:$0xff]
        %v1383 = vld [vmem:[#allocation2 + $0x38] sm:$0xff]
        %vm1384 = vcmask 261120
        %v1386 = vsel %vm1384, %v1376, 0
        %v1389 = vsel %vm1384, %v1377, 0
        %v1392 = vsel %vm1384, %v1378, 0
        %v1395 = vsel %vm1384, %v1379, 0
        %v1398 = vsel %vm1384, %v1380, 0
        %v1401 = vsel %vm1384, %v1381, 0
        %v1404 = vsel %vm1384, %v1382, 0
        %v1407 = vsel %vm1384, %v1383, 0
        %v1410 = vsel %vm1384, %v1199, 0
        %v1413 = vsel %vm1384, %v1200, 0
        %v1416 = vsel %vm1384, %v1201, 0
        %v1419 = vsel %vm1384, %v1202, 0
        %v1422 = vsel %vm1384, %v1203, 0
        %v1425 = vsel %vm1384, %v1204, 0
        %v1428 = vsel %vm1384, %v1205, 0
        %v1431 = vsel %vm1384, %v1206, 0
        %1433 = vmatprep.subr.bf16.mxu0 0
        %1434 = vmatpush1.bf16.xpose.msra.mxu0 %v1410
        %1435 = vmatprep.subr.bf16.mxu0 0
        %1436 = vmatpush1.bf16.xpose.msra.mxu0 %v1413
        %1437 = vmatprep.subr.bf16.mxu0 0
        %1438 = vmatpush1.bf16.xpose.msra.mxu0 %v1416
        %1439 = vmatprep.subr.bf16.mxu0 0
        %1440 = vmatpush1.bf16.xpose.msra.mxu0 %v1419
        %1441 = vmatprep.subr.bf16.mxu0 0
        %1442 = vmatpush1.bf16.xpose.msra.mxu0 %v1422
        %1443 = vmatprep.subr.bf16.mxu0 0
        %1444 = vmatpush1.bf16.xpose.msra.mxu0 %v1425
        %1445 = vmatprep.subr.bf16.mxu0 0
        %1446 = vmatpush1.bf16.xpose.msra.mxu0 %v1428
        %1447 = vmatprep.subr.bf16.mxu0 0
        %1448 = vmatpush1.bf16.xpose.msra.mxu0 %v1431
        %1449 = vmatprep.subr.bf16.mxu0 0
        %1450 = vmatpush1.bf16.xpose.msra.mxu0 0
        %1451 = vmatprep.subr.bf16.mxu0 0
        %1452 = vmatpush1.bf16.xpose.msra.mxu0 0
        %1453 = vmatprep.subr.bf16.mxu0 0
        %1454 = vmatpush1.bf16.xpose.msra.mxu0 0
        %1455 = vmatprep.subr.bf16.mxu0 0
        %1456 = vmatpush1.bf16.xpose.msra.mxu0 0
        %1457 = vmatprep.subr.bf16.mxu0 0
        %1458 = vmatpush1.bf16.xpose.msra.mxu0 0
        %1459 = vmatprep.subr.bf16.mxu0 0
        %1460 = vmatpush1.bf16.xpose.msra.mxu0 0
        %1461 = vmatprep.subr.bf16.mxu0 0
        %1462 = vmatpush1.bf16.xpose.msra.mxu0 0
        %1463 = vmatprep.subr.bf16.mxu0 0
        %1464 = vmatpush1.bf16.xpose.msra.mxu0 0
        %1465 = vmatprep.mubr.bf16.mxu0 0
        %1466 = vmatmul.mubr.bf16.gmra.mrb[0].mxu0 %v1386
        %v1467 = vpop.f32.mrb[0].mxu0
        %v1468 = vadd.f32 0.0, %v1467
        %v1469 = vpop.f32.mrb[0].mxu0
        %v1470 = vpop.f32.mrb[0].mxu0
        %v1471 = vadd.f32 0.0, %v1470
        %v1472 = vpop.f32.mrb[0].mxu0
        %1473 = vmatprep.mubr.bf16.mxu0 0
        %1474 = vmatmul.mubr.bf16.gmra.mrb[0].mxu0 %v1389
        %v1475 = vpop.f32.mrb[0].mxu0
        %v1476 = vadd.f32 0.0, %v1475
        %v1477 = vpop.f32.mrb[0].mxu0
        %v1478 = vpop.f32.mrb[0].mxu0
        %v1479 = vadd.f32 0.0, %v1478
        %v1480 = vpop.f32.mrb[0].mxu0
        %1481 = vmatprep.mubr.bf16.mxu0 0
        %1482 = vmatmul.mubr.bf16.gmra.mrb[0].mxu0 %v1392
        %v1483 = vpop.f32.mrb[0].mxu0
        %v1484 = vadd.f32 0.0, %v1483
        %v1485 = vpop.f32.mrb[0].mxu0
        %v1486 = vpop.f32.mrb[0].mxu0
        %v1487 = vadd.f32 0.0, %v1486
        %v1488 = vpop.f32.mrb[0].mxu0
        %1489 = vmatprep.mubr.bf16.mxu0 0
        %1490 = vmatmul.mubr.bf16.gmra.mrb[0].mxu0 %v1395
        %v1491 = vpop.f32.mrb[0].mxu0
        %v1492 = vadd.f32 0.0, %v1491
        %v1493 = vpop.f32.mrb[0].mxu0
        %v1494 = vpop.f32.mrb[0].mxu0
        %v1495 = vadd.f32 0.0, %v1494
        %v1496 = vpop.f32.mrb[0].mxu0
        %1497 = vmatprep.mubr.bf16.mxu0 0
        %1498 = vmatmul.mubr.bf16.gmra.mrb[0].mxu0 %v1398
        %v1499 = vpop.f32.mrb[0].mxu0
        %v1500 = vadd.f32 0.0, %v1499
        %v1501 = vpop.f32.mrb[0].mxu0
        %v1502 = vpop.f32.mrb[0].mxu0
        %v1503 = vadd.f32 0.0, %v1502
        %v1504 = vpop.f32.mrb[0].mxu0
        %1505 = vmatprep.mubr.bf16.mxu0 0
        %1506 = vmatmul.mubr.bf16.gmra.mrb[0].mxu0 %v1401
        %v1507 = vpop.f32.mrb[0].mxu0
        %v1508 = vadd.f32 0.0, %v1507
        %v1509 = vpop.f32.mrb[0].mxu0
        %v1510 = vpop.f32.mrb[0].mxu0
        %v1511 = vadd.f32 0.0, %v1510
        %v1512 = vpop.f32.mrb[0].mxu0
        %1513 = vmatprep.mubr.bf16.mxu0 0
        %1514 = vmatmul.mubr.bf16.gmra.mrb[0].mxu0 %v1404
        %v1515 = vpop.f32.mrb[0].mxu0
        %v1516 = vadd.f32 0.0, %v1515
        %v1517 = vpop.f32.mrb[0].mxu0
        %v1518 = vpop.f32.mrb[0].mxu0
        %v1519 = vadd.f32 0.0, %v1518
        %v1520 = vpop.f32.mrb[0].mxu0
        %1521 = vmatprep.mubr.bf16.mxu0 0
        %1522 = vmatmul.mubr.bf16.gmra.mrb[0].mxu0 %v1407
        %v1523 = vpop.f32.mrb[0].mxu0
        %v1524 = vadd.f32 0.0, %v1523
        %v1525 = vpop.f32.mrb[0].mxu0
        %v1526 = vpop.f32.mrb[0].mxu0
        %v1527 = vadd.f32 0.0, %v1526
        %v1528 = vpop.f32.mrb[0].mxu0
        %1529 = vdwg.mxu0
        %v1530 = vld [vmem:[#allocation3] sm:$0xff]
        %v1531 = vld [vmem:[#allocation3 + $0x8] sm:$0xff]
        %v1532 = vld [vmem:[#allocation3 + $0x10] sm:$0xff]
        %v1533 = vld [vmem:[#allocation3 + $0x18] sm:$0xff]
        %v1534 = vld [vmem:[#allocation3 + $0x20] sm:$0xff]
        %v1535 = vld [vmem:[#allocation3 + $0x28] sm:$0xff]
        %v1536 = vld [vmem:[#allocation3 + $0x30] sm:$0xff]
        %v1537 = vld [vmem:[#allocation3 + $0x38] sm:$0xff]
        %v1538 = vld [vmem:[#allocation3 + $0x40] sm:$0xff]
        %v1539 = vld [vmem:[#allocation3 + $0x48] sm:$0xff]
        %v1540 = vld [vmem:[#allocation3 + $0x50] sm:$0xff]
        %v1541 = vld [vmem:[#allocation3 + $0x58] sm:$0xff]
        %v1542 = vld [vmem:[#allocation3 + $0x60] sm:$0xff]
        %v1543 = vld [vmem:[#allocation3 + $0x68] sm:$0xff]
        %v1544 = vld [vmem:[#allocation3 + $0x70] sm:$0xff]
        %v1545 = vld [vmem:[#allocation3 + $0x78] sm:$0xff]
        %1546 = vmax.xlane.f32.xlu0 %v1468
        %v1547 = vpop.xlane.xlu0 %1546
        %1548 = vmax.xlane.f32.xlu0 %v1471
        %v1549 = vpop.xlane.xlu0 %1548
        %1550 = vmax.xlane.f32.xlu0 %v1476
        %v1551 = vpop.xlane.xlu0 %1550
        %1552 = vmax.xlane.f32.xlu0 %v1479
        %v1553 = vpop.xlane.xlu0 %1552
        %1554 = vmax.xlane.f32.xlu0 %v1484
        %v1555 = vpop.xlane.xlu0 %1554
        %1556 = vmax.xlane.f32.xlu0 %v1487
        %v1557 = vpop.xlane.xlu0 %1556
        %1558 = vmax.xlane.f32.xlu0 %v1492
        %v1559 = vpop.xlane.xlu0 %1558
        %1560 = vmax.xlane.f32.xlu0 %v1495
        %v1561 = vpop.xlane.xlu0 %1560
        %1562 = vmax.xlane.f32.xlu0 %v1500
        %v1563 = vpop.xlane.xlu0 %1562
        %1564 = vmax.xlane.f32.xlu0 %v1503
        %v1565 = vpop.xlane.xlu0 %1564
        %1566 = vmax.xlane.f32.xlu0 %v1508
        %v1567 = vpop.xlane.xlu0 %1566
        %1568 = vmax.xlane.f32.xlu0 %v1511
        %v1569 = vpop.xlane.xlu0 %1568
        %1570 = vmax.xlane.f32.xlu0 %v1516
        %v1571 = vpop.xlane.xlu0 %1570
        %1572 = vmax.xlane.f32.xlu0 %v1519
        %v1573 = vpop.xlane.xlu0 %1572
        %1574 = vmax.xlane.f32.xlu0 %v1524
        %v1575 = vpop.xlane.xlu0 %1574
        %1576 = vmax.xlane.f32.xlu0 %v1527
        %v1577 = vpop.xlane.xlu0 %1576
        %v1578 = vmax.f32 %v1530, %v1547
        %v1579 = vmax.f32 %v1531, %v1549
        %v1580 = vmax.f32 %v1532, %v1551
        %v1581 = vmax.f32 %v1533, %v1553
        %v1582 = vmax.f32 %v1534, %v1555
        %v1583 = vmax.f32 %v1535, %v1557
        %v1584 = vmax.f32 %v1536, %v1559
        %v1585 = vmax.f32 %v1537, %v1561
        %v1586 = vmax.f32 %v1538, %v1563
        %v1587 = vmax.f32 %v1539, %v1565
        %v1588 = vmax.f32 %v1540, %v1567
        %v1589 = vmax.f32 %v1541, %v1569
        %v1590 = vmax.f32 %v1542, %v1571
        %v1591 = vmax.f32 %v1543, %v1573
        %v1592 = vmax.f32 %v1544, %v1575
        %v1593 = vmax.f32 %v1545, %v1577
        %v1594 = vsub.f32 %v1530, %v1578
        %v1595 = vsub.f32 %v1531, %v1579
        %v1596 = vsub.f32 %v1532, %v1580
        %v1597 = vsub.f32 %v1533, %v1581
        %v1598 = vsub.f32 %v1534, %v1582
        %v1599 = vsub.f32 %v1535, %v1583
        %v1600 = vsub.f32 %v1536, %v1584
        %v1601 = vsub.f32 %v1537, %v1585
        %v1602 = vsub.f32 %v1538, %v1586
        %v1603 = vsub.f32 %v1539, %v1587
        %v1604 = vsub.f32 %v1540, %v1588
        %v1605 = vsub.f32 %v1541, %v1589
        %v1606 = vsub.f32 %v1542, %v1590
        %v1607 = vsub.f32 %v1543, %v1591
        %v1608 = vsub.f32 %v1544, %v1592
        %v1609 = vsub.f32 %v1545, %v1593
        %v1610 = vmul.f32 %v1594, 1.442695
        %v1611 = vpow.pop %v1610
        %v1612 = vmul.f32 %v1595, 1.442695
        %v1613 = vpow.pop %v1612
        %v1614 = vmul.f32 %v1596, 1.442695
        %v1615 = vpow.pop %v1614
        %v1616 = vmul.f32 %v1597, 1.442695
        %v1617 = vpow.pop %v1616
        %v1618 = vmul.f32 %v1598, 1.442695
        %v1619 = vpow.pop %v1618
        %v1620 = vmul.f32 %v1599, 1.442695
        %v1621 = vpow.pop %v1620
        %v1622 = vmul.f32 %v1600, 1.442695
        %v1623 = vpow.pop %v1622
        %v1624 = vmul.f32 %v1601, 1.442695
        %v1625 = vpow.pop %v1624
        %v1626 = vmul.f32 %v1602, 1.442695
        %v1627 = vpow.pop %v1626
        %v1628 = vmul.f32 %v1603, 1.442695
        %v1629 = vpow.pop %v1628
        %v1630 = vmul.f32 %v1604, 1.442695
        %v1631 = vpow.pop %v1630
        %v1632 = vmul.f32 %v1605, 1.442695
        %v1633 = vpow.pop %v1632
        %v1634 = vmul.f32 %v1606, 1.442695
        %v1635 = vpow.pop %v1634
        %v1636 = vmul.f32 %v1607, 1.442695
        %v1637 = vpow.pop %v1636
        %v1638 = vmul.f32 %v1608, 1.442695
        %v1639 = vpow.pop %v1638
        %v1640 = vmul.f32 %v1609, 1.442695
        %v1641 = vpow.pop %v1640
        %1643 = vset.pattern.permute.xlu0 0
        %1644 = vperm.xlu0 %1643, %v1578
        %v1645 = vpop.permute.xlu0 %1644
        %1648 = vset.pattern.permute.xlu0 0
        %1649 = vperm.xlu0 %1648, %v1579
        %v1650 = vpop.permute.xlu0 %1649
        %1653 = vset.pattern.permute.xlu0 0
        %1654 = vperm.xlu0 %1653, %v1580
        %v1655 = vpop.permute.xlu0 %1654
        %1658 = vset.pattern.permute.xlu0 0
        %1659 = vperm.xlu0 %1658, %v1581
        %v1660 = vpop.permute.xlu0 %1659
        %1663 = vset.pattern.permute.xlu0 0
        %1664 = vperm.xlu0 %1663, %v1582
        %v1665 = vpop.permute.xlu0 %1664
        %1668 = vset.pattern.permute.xlu0 0
        %1669 = vperm.xlu0 %1668, %v1583
        %v1670 = vpop.permute.xlu0 %1669
        %1673 = vset.pattern.permute.xlu0 0
        %1674 = vperm.xlu0 %1673, %v1584
        %v1675 = vpop.permute.xlu0 %1674
        %1678 = vset.pattern.permute.xlu0 0
        %1679 = vperm.xlu0 %1678, %v1585
        %v1680 = vpop.permute.xlu0 %1679
        %1683 = vset.pattern.permute.xlu0 0
        %1684 = vperm.xlu0 %1683, %v1586
        %v1685 = vpop.permute.xlu0 %1684
        %1688 = vset.pattern.permute.xlu0 0
        %1689 = vperm.xlu0 %1688, %v1587
        %v1690 = vpop.permute.xlu0 %1689
        %1693 = vset.pattern.permute.xlu0 0
        %1694 = vperm.xlu0 %1693, %v1588
        %v1695 = vpop.permute.xlu0 %1694
        %1698 = vset.pattern.permute.xlu0 0
        %1699 = vperm.xlu0 %1698, %v1589
        %v1700 = vpop.permute.xlu0 %1699
        %1703 = vset.pattern.permute.xlu0 0
        %1704 = vperm.xlu0 %1703, %v1590
        %v1705 = vpop.permute.xlu0 %1704
        %1708 = vset.pattern.permute.xlu0 0
        %1709 = vperm.xlu0 %1708, %v1591
        %v1710 = vpop.permute.xlu0 %1709
        %1713 = vset.pattern.permute.xlu0 0
        %1714 = vperm.xlu0 %1713, %v1592
        %v1715 = vpop.permute.xlu0 %1714
        %1718 = vset.pattern.permute.xlu0 0
        %1719 = vperm.xlu0 %1718, %v1593
        %v1720 = vpop.permute.xlu0 %1719
        %v1722 = vsub.f32 %v1468, %v1645
        %v1723 = vsub.f32 %v1471, %v1650
        %v1724 = vsub.f32 %v1476, %v1655
        %v1725 = vsub.f32 %v1479, %v1660
        %v1726 = vsub.f32 %v1484, %v1665
        %v1727 = vsub.f32 %v1487, %v1670
        %v1728 = vsub.f32 %v1492, %v1675
        %v1729 = vsub.f32 %v1495, %v1680
        %v1730 = vsub.f32 %v1500, %v1685
        %v1731 = vsub.f32 %v1503, %v1690
        %v1732 = vsub.f32 %v1508, %v1695
        %v1733 = vsub.f32 %v1511, %v1700
        %v1734 = vsub.f32 %v1516, %v1705
        %v1735 = vsub.f32 %v1519, %v1710
        %v1736 = vsub.f32 %v1524, %v1715
        %v1737 = vsub.f32 %v1527, %v1720
        %v1738 = vmul.f32 %v1722, 1.442695
        %v1739 = vpow.pop %v1738
        %v1740 = vmul.f32 %v1723, 1.442695
        %v1741 = vpow.pop %v1740
        %v1742 = vmul.f32 %v1724, 1.442695
        %v1743 = vpow.pop %v1742
        %v1744 = vmul.f32 %v1725, 1.442695
        %v1745 = vpow.pop %v1744
        %v1746 = vmul.f32 %v1726, 1.442695
        %v1747 = vpow.pop %v1746
        %v1748 = vmul.f32 %v1727, 1.442695
        %v1749 = vpow.pop %v1748
        %v1750 = vmul.f32 %v1728, 1.442695
        %v1751 = vpow.pop %v1750
        %v1752 = vmul.f32 %v1729, 1.442695
        %v1753 = vpow.pop %v1752
        %v1754 = vmul.f32 %v1730, 1.442695
        %v1755 = vpow.pop %v1754
        %v1756 = vmul.f32 %v1731, 1.442695
        %v1757 = vpow.pop %v1756
        %v1758 = vmul.f32 %v1732, 1.442695
        %v1759 = vpow.pop %v1758
        %v1760 = vmul.f32 %v1733, 1.442695
        %v1761 = vpow.pop %v1760
        %v1762 = vmul.f32 %v1734, 1.442695
        %v1763 = vpow.pop %v1762
        %v1764 = vmul.f32 %v1735, 1.442695
        %v1765 = vpow.pop %v1764
        %v1766 = vmul.f32 %v1736, 1.442695
        %v1767 = vpow.pop %v1766
        %v1768 = vmul.f32 %v1737, 1.442695
        %v1769 = vpow.pop %v1768
        %v1770 = vld [vmem:[#allocation4] sm:$0xff]
        %v1771 = vld [vmem:[#allocation4 + $0x8] sm:$0xff]
        %v1772 = vld [vmem:[#allocation4 + $0x10] sm:$0xff]
        %v1773 = vld [vmem:[#allocation4 + $0x18] sm:$0xff]
        %v1774 = vld [vmem:[#allocation4 + $0x20] sm:$0xff]
        %v1775 = vld [vmem:[#allocation4 + $0x28] sm:$0xff]
        %v1776 = vld [vmem:[#allocation4 + $0x30] sm:$0xff]
        %v1777 = vld [vmem:[#allocation4 + $0x38] sm:$0xff]
        %v1778 = vld [vmem:[#allocation4 + $0x40] sm:$0xff]
        %v1779 = vld [vmem:[#allocation4 + $0x48] sm:$0xff]
        %v1780 = vld [vmem:[#allocation4 + $0x50] sm:$0xff]
        %v1781 = vld [vmem:[#allocation4 + $0x58] sm:$0xff]
        %v1782 = vld [vmem:[#allocation4 + $0x60] sm:$0xff]
        %v1783 = vld [vmem:[#allocation4 + $0x68] sm:$0xff]
        %v1784 = vld [vmem:[#allocation4 + $0x70] sm:$0xff]
        %v1785 = vld [vmem:[#allocation4 + $0x78] sm:$0xff]
        %v1786 = vmul.f32 %v1611, %v1770
        %v1787 = vmul.f32 %v1613, %v1771
        %v1788 = vmul.f32 %v1615, %v1772
        %v1789 = vmul.f32 %v1617, %v1773
        %v1790 = vmul.f32 %v1619, %v1774
        %v1791 = vmul.f32 %v1621, %v1775
        %v1792 = vmul.f32 %v1623, %v1776
        %v1793 = vmul.f32 %v1625, %v1777
        %v1794 = vmul.f32 %v1627, %v1778
        %v1795 = vmul.f32 %v1629, %v1779
        %v1796 = vmul.f32 %v1631, %v1780
        %v1797 = vmul.f32 %v1633, %v1781
        %v1798 = vmul.f32 %v1635, %v1782
        %v1799 = vmul.f32 %v1637, %v1783
        %v1800 = vmul.f32 %v1639, %v1784
        %v1801 = vmul.f32 %v1641, %v1785
        %1802 = vadd.xlane.f32.xlu0 %v1739
        %v1803 = vpop.xlane.xlu0 %1802
        %1804 = vadd.xlane.f32.xlu0 %v1741
        %v1805 = vpop.xlane.xlu0 %1804
        %1806 = vadd.xlane.f32.xlu0 %v1743
        %v1807 = vpop.xlane.xlu0 %1806
        %1808 = vadd.xlane.f32.xlu0 %v1745
        %v1809 = vpop.xlane.xlu0 %1808
        %1810 = vadd.xlane.f32.xlu0 %v1747
        %v1811 = vpop.xlane.xlu0 %1810
        %1812 = vadd.xlane.f32.xlu0 %v1749
        %v1813 = vpop.xlane.xlu0 %1812
        %1814 = vadd.xlane.f32.xlu0 %v1751
        %v1815 = vpop.xlane.xlu0 %1814
        %1816 = vadd.xlane.f32.xlu0 %v1753
        %v1817 = vpop.xlane.xlu0 %1816
        %1818 = vadd.xlane.f32.xlu0 %v1755
        %v1819 = vpop.xlane.xlu0 %1818
        %1820 = vadd.xlane.f32.xlu0 %v1757
        %v1821 = vpop.xlane.xlu0 %1820
        %1822 = vadd.xlane.f32.xlu0 %v1759
        %v1823 = vpop.xlane.xlu0 %1822
        %1824 = vadd.xlane.f32.xlu0 %v1761
        %v1825 = vpop.xlane.xlu0 %1824
        %1826 = vadd.xlane.f32.xlu0 %v1763
        %v1827 = vpop.xlane.xlu0 %1826
        %1828 = vadd.xlane.f32.xlu0 %v1765
        %v1829 = vpop.xlane.xlu0 %1828
        %1830 = vadd.xlane.f32.xlu0 %v1767
        %v1831 = vpop.xlane.xlu0 %1830
        %1832 = vadd.xlane.f32.xlu0 %v1769
        %v1833 = vpop.xlane.xlu0 %1832
        %v1834 = vadd.f32 %v1786, %v1803
        %v1835 = vadd.f32 %v1787, %v1805
        %v1836 = vadd.f32 %v1788, %v1807
        %v1837 = vadd.f32 %v1789, %v1809
        %v1838 = vadd.f32 %v1790, %v1811
        %v1839 = vadd.f32 %v1791, %v1813
        %v1840 = vadd.f32 %v1792, %v1815
        %v1841 = vadd.f32 %v1793, %v1817
        %v1842 = vadd.f32 %v1794, %v1819
        %v1843 = vadd.f32 %v1795, %v1821
        %v1844 = vadd.f32 %v1796, %v1823
        %v1845 = vadd.f32 %v1797, %v1825
        %v1846 = vadd.f32 %v1798, %v1827
        %v1847 = vadd.f32 %v1799, %v1829
        %v1848 = vadd.f32 %v1800, %v1831
        %v1849 = vadd.f32 %v1801, %v1833
        %vm1850 = vcmask 7168
        %1851 = vst.msk [vmem:[#allocation4] sm:$0xff] %vm1850, %v1834
        %1852 = vst.msk [vmem:[#allocation4 + $0x8] sm:$0xff] %vm1850, %v1835
        %1853 = vst.msk [vmem:[#allocation4 + $0x10] sm:$0xff] %vm1850, %v1836
        %1854 = vst.msk [vmem:[#allocation4 + $0x18] sm:$0xff] %vm1850, %v1837
        %1855 = vst.msk [vmem:[#allocation4 + $0x20] sm:$0xff] %vm1850, %v1838
        %1856 = vst.msk [vmem:[#allocation4 + $0x28] sm:$0xff] %vm1850, %v1839
        %1857 = vst.msk [vmem:[#allocation4 + $0x30] sm:$0xff] %vm1850, %v1840
        %1858 = vst.msk [vmem:[#allocation4 + $0x38] sm:$0xff] %vm1850, %v1841
        %1859 = vst.msk [vmem:[#allocation4 + $0x40] sm:$0xff] %vm1850, %v1842
        %1860 = vst.msk [vmem:[#allocation4 + $0x48] sm:$0xff] %vm1850, %v1843
        %1861 = vst.msk [vmem:[#allocation4 + $0x50] sm:$0xff] %vm1850, %v1844
        %1862 = vst.msk [vmem:[#allocation4 + $0x58] sm:$0xff] %vm1850, %v1845
        %1863 = vst.msk [vmem:[#allocation4 + $0x60] sm:$0xff] %vm1850, %v1846
        %1864 = vst.msk [vmem:[#allocation4 + $0x68] sm:$0xff] %vm1850, %v1847
        %1865 = vst.msk [vmem:[#allocation4 + $0x70] sm:$0xff] %vm1850, %v1848
        %1866 = vst.msk [vmem:[#allocation4 + $0x78] sm:$0xff] %vm1850, %v1849
        %v1867 = vld [vmem:[#allocation5] sm:$0xff]
        %v1868 = vld [vmem:[#allocation5 + $0x8] sm:$0xff]
        %v1869 = vld [vmem:[#allocation5 + $0x10] sm:$0xff]
        %v1870 = vld [vmem:[#allocation5 + $0x18] sm:$0xff]
        %v1871 = vld [vmem:[#allocation5 + $0x20] sm:$0xff]
        %v1872 = vld [vmem:[#allocation5 + $0x28] sm:$0xff]
        %v1873 = vld [vmem:[#allocation5 + $0x30] sm:$0xff]
        %v1874 = vld [vmem:[#allocation5 + $0x38] sm:$0xff]
        %v1875 = vld [vmem:[#allocation5 + $0x40] sm:$0xff]
        %v1876 = vld [vmem:[#allocation5 + $0x48] sm:$0xff]
        %v1877 = vld [vmem:[#allocation5 + $0x50] sm:$0xff]
        %v1878 = vld [vmem:[#allocation5 + $0x58] sm:$0xff]
        %v1879 = vld [vmem:[#allocation5 + $0x60] sm:$0xff]
        %v1880 = vld [vmem:[#allocation5 + $0x68] sm:$0xff]
        %v1881 = vld [vmem:[#allocation5 + $0x70] sm:$0xff]
        %v1882 = vld [vmem:[#allocation5 + $0x78] sm:$0xff]
        %1884 = vset.pattern.permute.xlu0 0
        %1885 = vperm.xlu0 %1884, %v1611
        %v1886 = vpop.permute.xlu0 %1885
        %1889 = vset.pattern.permute.xlu0 0
        %1890 = vperm.xlu0 %1889, %v1613
        %v1891 = vpop.permute.xlu0 %1890
        %1894 = vset.pattern.permute.xlu0 0
        %1895 = vperm.xlu0 %1894, %v1615
        %v1896 = vpop.permute.xlu0 %1895
        %1899 = vset.pattern.permute.xlu0 0
        %1900 = vperm.xlu0 %1899, %v1617
        %v1901 = vpop.permute.xlu0 %1900
        %1904 = vset.pattern.permute.xlu0 0
        %1905 = vperm.xlu0 %1904, %v1619
        %v1906 = vpop.permute.xlu0 %1905
        %1909 = vset.pattern.permute.xlu0 0
        %1910 = vperm.xlu0 %1909, %v1621
        %v1911 = vpop.permute.xlu0 %1910
        %1914 = vset.pattern.permute.xlu0 0
        %1915 = vperm.xlu0 %1914, %v1623
        %v1916 = vpop.permute.xlu0 %1915
        %1919 = vset.pattern.permute.xlu0 0
        %1920 = vperm.xlu0 %1919, %v1625
        %v1921 = vpop.permute.xlu0 %1920
        %1924 = vset.pattern.permute.xlu0 0
        %1925 = vperm.xlu0 %1924, %v1627
        %v1926 = vpop.permute.xlu0 %1925
        %1929 = vset.pattern.permute.xlu0 0
        %1930 = vperm.xlu0 %1929, %v1629
        %v1931 = vpop.permute.xlu0 %1930
        %1934 = vset.pattern.permute.xlu0 0
        %1935 = vperm.xlu0 %1934, %v1631
        %v1936 = vpop.permute.xlu0 %1935
        %1939 = vset.pattern.permute.xlu0 0
        %1940 = vperm.xlu0 %1939, %v1633
        %v1941 = vpop.permute.xlu0 %1940
        %1944 = vset.pattern.permute.xlu0 0
        %1945 = vperm.xlu0 %1944, %v1635
        %v1946 = vpop.permute.xlu0 %1945
        %1949 = vset.pattern.permute.xlu0 0
        %1950 = vperm.xlu0 %1949, %v1637
        %v1951 = vpop.permute.xlu0 %1950
        %1954 = vset.pattern.permute.xlu0 0
        %1955 = vperm.xlu0 %1954, %v1639
        %v1956 = vpop.permute.xlu0 %1955
        %1959 = vset.pattern.permute.xlu0 0
        %1960 = vperm.xlu0 %1959, %v1641
        %v1961 = vpop.permute.xlu0 %1960
        %v1963 = vmul.f32 %v1886, %v1867
        %v1964 = vmul.f32 %v1891, %v1868
        %v1965 = vmul.f32 %v1896, %v1869
        %v1966 = vmul.f32 %v1901, %v1870
        %v1967 = vmul.f32 %v1906, %v1871
        %v1968 = vmul.f32 %v1911, %v1872
        %v1969 = vmul.f32 %v1916, %v1873
        %v1970 = vmul.f32 %v1921, %v1874
        %v1971 = vmul.f32 %v1926, %v1875
        %v1972 = vmul.f32 %v1931, %v1876
        %v1973 = vmul.f32 %v1936, %v1877
        %v1974 = vmul.f32 %v1941, %v1878
        %v1975 = vmul.f32 %v1946, %v1879
        %v1976 = vmul.f32 %v1951, %v1880
        %v1977 = vmul.f32 %v1956, %v1881
        %v1978 = vmul.f32 %v1961, %v1882
        %v1979 = vpack.c.bf16 %v1741, %v1739
        %v1980 = vpack.c.bf16 %v1745, %v1743
        %v1981 = vpack.c.bf16 %v1749, %v1747
        %v1982 = vpack.c.bf16 %v1753, %v1751
        %v1983 = vpack.c.bf16 %v1757, %v1755
        %v1984 = vpack.c.bf16 %v1761, %v1759
        %v1985 = vpack.c.bf16 %v1765, %v1763
        %v1986 = vpack.c.bf16 %v1769, %v1767
        %1987 = vmatprep.subr.bf16.mxu0 0
        %1988 = vmatpush1.bf16.msra.mxu0 %v1368
        %1989 = vmatprep.subr.bf16.mxu0 0
        %1990 = vmatpush1.bf16.msra.mxu0 %v1369
        %1991 = vmatprep.subr.bf16.mxu0 0
        %1992 = vmatpush1.bf16.msra.mxu0 %v1370
        %1993 = vmatprep.subr.bf16.mxu0 0
        %1994 = vmatpush1.bf16.msra.mxu0 %v1371
        %1995 = vmatprep.subr.bf16.mxu0 0
        %1996 = vmatpush1.bf16.msra.mxu0 %v1372
        %1997 = vmatprep.subr.bf16.mxu0 0
        %1998 = vmatpush1.bf16.msra.mxu0 %v1373
        %1999 = vmatprep.subr.bf16.mxu0 0
        %2000 = vmatpush1.bf16.msra.mxu0 %v1374
        %2001 = vmatprep.subr.bf16.mxu0 0
        %2002 = vmatpush1.bf16.msra.mxu0 %v1375
        %2003 = vmatprep.subr.bf16.mxu0 0
        %2004 = vmatpush1.bf16.msra.mxu0 0
        %2005 = vmatprep.subr.bf16.mxu0 0
        %2006 = vmatpush1.bf16.msra.mxu0 0
        %2007 = vmatprep.subr.bf16.mxu0 0
        %2008 = vmatpush1.bf16.msra.mxu0 0
        %2009 = vmatprep.subr.bf16.mxu0 0
        %2010 = vmatpush1.bf16.msra.mxu0 0
        %2011 = vmatprep.subr.bf16.mxu0 0
        %2012 = vmatpush1.bf16.msra.mxu0 0
        %2013 = vmatprep.subr.bf16.mxu0 0
        %2014 = vmatpush1.bf16.msra.mxu0 0
        %2015 = vmatprep.subr.bf16.mxu0 0
        %2016 = vmatpush1.bf16.msra.mxu0 0
        %2017 = vmatprep.subr.bf16.mxu0 0
        %2018 = vmatpush1.bf16.msra.mxu0 0
        %2019 = vmatprep.mubr.bf16.mxu0 0
        %2020 = vmatmul.mubr.bf16.gmra.mrb[0].mxu0 %v1979
        %v2021 = vpop.f32.mrb[0].mxu0
        %v2022 = vadd.f32 0.0, %v2021
        %v2023 = vpop.f32.mrb[0].mxu0
        %v2024 = vpop.f32.mrb[0].mxu0
        %v2025 = vadd.f32 0.0, %v2024
        %v2026 = vpop.f32.mrb[0].mxu0
        %2027 = vmatprep.mubr.bf16.mxu0 0
        %2028 = vmatmul.mubr.bf16.gmra.mrb[0].mxu0 %v1980
        %v2029 = vpop.f32.mrb[0].mxu0
        %v2030 = vadd.f32 0.0, %v2029
        %v2031 = vpop.f32.mrb[0].mxu0
        %v2032 = vpop.f32.mrb[0].mxu0
        %v2033 = vadd.f32 0.0, %v2032
        %v2034 = vpop.f32.mrb[0].mxu0
        %2035 = vmatprep.mubr.bf16.mxu0 0
        %2036 = vmatmul.mubr.bf16.gmra.mrb[0].mxu0 %v1981
        %v2037 = vpop.f32.mrb[0].mxu0
        %v2038 = vadd.f32 0.0, %v2037
        %v2039 = vpop.f32.mrb[0].mxu0
        %v2040 = vpop.f32.mrb[0].mxu0
        %v2041 = vadd.f32 0.0, %v2040
        %v2042 = vpop.f32.mrb[0].mxu0
        %2043 = vmatprep.mubr.bf16.mxu0 0
        %2044 = vmatmul.mubr.bf16.gmra.mrb[0].mxu0 %v1982
        %v2045 = vpop.f32.mrb[0].mxu0
        %v2046 = vadd.f32 0.0, %v2045
        %v2047 = vpop.f32.mrb[0].mxu0
        %v2048 = vpop.f32.mrb[0].mxu0
        %v2049 = vadd.f32 0.0, %v2048
        %v2050 = vpop.f32.mrb[0].mxu0
        %2051 = vmatprep.mubr.bf16.mxu0 0
        %2052 = vmatmul.mubr.bf16.gmra.mrb[0].mxu0 %v1983
        %v2053 = vpop.f32.mrb[0].mxu0
        %v2054 = vadd.f32 0.0, %v2053
        %v2055 = vpop.f32.mrb[0].mxu0
        %v2056 = vpop.f32.mrb[0].mxu0
        %v2057 = vadd.f32 0.0, %v2056
        %v2058 = vpop.f32.mrb[0].mxu0
        %2059 = vmatprep.mubr.bf16.mxu0 0
        %2060 = vmatmul.mubr.bf16.gmra.mrb[0].mxu0 %v1984
        %v2061 = vpop.f32.mrb[0].mxu0
        %v2062 = vadd.f32 0.0, %v2061
        %v2063 = vpop.f32.mrb[0].mxu0
        %v2064 = vpop.f32.mrb[0].mxu0
        %v2065 = vadd.f32 0.0, %v2064
        %v2066 = vpop.f32.mrb[0].mxu0
        %2067 = vmatprep.mubr.bf16.mxu0 0
        %2068 = vmatmul.mubr.bf16.gmra.mrb[0].mxu0 %v1985
        %v2069 = vpop.f32.mrb[0].mxu0
        %v2070 = vadd.f32 0.0, %v2069
        %v2071 = vpop.f32.mrb[0].mxu0
        %v2072 = vpop.f32.mrb[0].mxu0
        %v2073 = vadd.f32 0.0, %v2072
        %v2074 = vpop.f32.mrb[0].mxu0
        %2075 = vmatprep.mubr.bf16.mxu0 0
        %2076 = vmatmul.mubr.bf16.gmra.mrb[0].mxu0 %v1986
        %v2077 = vpop.f32.mrb[0].mxu0
        %v2078 = vadd.f32 0.0, %v2077
        %v2079 = vpop.f32.mrb[0].mxu0
        %v2080 = vpop.f32.mrb[0].mxu0
        %v2081 = vadd.f32 0.0, %v2080
        %v2082 = vpop.f32.mrb[0].mxu0
        %2083 = vdwg.mxu0
        %v2084 = vadd.f32 %v1963, %v2022
        %v2085 = vadd.f32 %v1964, %v2025
        %v2086 = vadd.f32 %v1965, %v2030
        %v2087 = vadd.f32 %v1966, %v2033
        %v2088 = vadd.f32 %v1967, %v2038
        %v2089 = vadd.f32 %v1968, %v2041
        %v2090 = vadd.f32 %v1969, %v2046
        %v2091 = vadd.f32 %v1970, %v2049
        %v2092 = vadd.f32 %v1971, %v2054
        %v2093 = vadd.f32 %v1972, %v2057
        %v2094 = vadd.f32 %v1973, %v2062
        %v2095 = vadd.f32 %v1974, %v2065
        %v2096 = vadd.f32 %v1975, %v2070
        %v2097 = vadd.f32 %v1976, %v2073
        %v2098 = vadd.f32 %v1977, %v2078
        %v2099 = vadd.f32 %v1978, %v2081
        %2100 = vst.msk [vmem:[#allocation5] sm:$0xff] %vm1384, %v2084
        %2101 = vst.msk [vmem:[#allocation5 + $0x8] sm:$0xff] %vm1384, %v2085
        %2102 = vst.msk [vmem:[#allocation5 + $0x10] sm:$0xff] %vm1384, %v2086
        %2103 = vst.msk [vmem:[#allocation5 + $0x18] sm:$0xff] %vm1384, %v2087
        %2104 = vst.msk [vmem:[#allocation5 + $0x20] sm:$0xff] %vm1384, %v2088
        %2105 = vst.msk [vmem:[#allocation5 + $0x28] sm:$0xff] %vm1384, %v2089
        %2106 = vst.msk [vmem:[#allocation5 + $0x30] sm:$0xff] %vm1384, %v2090
        %2107 = vst.msk [vmem:[#allocation5 + $0x38] sm:$0xff] %vm1384, %v2091
        %2108 = vst.msk [vmem:[#allocation5 + $0x40] sm:$0xff] %vm1384, %v2092
        %2109 = vst.msk [vmem:[#allocation5 + $0x48] sm:$0xff] %vm1384, %v2093
        %2110 = vst.msk [vmem:[#allocation5 + $0x50] sm:$0xff] %vm1384, %v2094
        %2111 = vst.msk [vmem:[#allocation5 + $0x58] sm:$0xff] %vm1384, %v2095
        %2112 = vst.msk [vmem:[#allocation5 + $0x60] sm:$0xff] %vm1384, %v2096
        %2113 = vst.msk [vmem:[#allocation5 + $0x68] sm:$0xff] %vm1384, %v2097
        %2114 = vst.msk [vmem:[#allocation5 + $0x70] sm:$0xff] %vm1384, %v2098
        %2115 = vst.msk [vmem:[#allocation5 + $0x78] sm:$0xff] %vm1384, %v2099
        %2116 = vst.msk [vmem:[#allocation3] sm:$0xff] %vm1850, %v1578
        %2117 = vst.msk [vmem:[#allocation3 + $0x8] sm:$0xff] %vm1850, %v1579
        %2118 = vst.msk [vmem:[#allocation3 + $0x10] sm:$0xff] %vm1850, %v1580
        %2119 = vst.msk [vmem:[#allocation3 + $0x18] sm:$0xff] %vm1850, %v1581
        %2120 = vst.msk [vmem:[#allocation3 + $0x20] sm:$0xff] %vm1850, %v1582
        %2121 = vst.msk [vmem:[#allocation3 + $0x28] sm:$0xff] %vm1850, %v1583
        %2122 = vst.msk [vmem:[#allocation3 + $0x30] sm:$0xff] %vm1850, %v1584
        %2123 = vst.msk [vmem:[#allocation3 + $0x38] sm:$0xff] %vm1850, %v1585
        %2124 = vst.msk [vmem:[#allocation3 + $0x40] sm:$0xff] %vm1850, %v1586
        %2125 = vst.msk [vmem:[#allocation3 + $0x48] sm:$0xff] %vm1850, %v1587
        %2126 = vst.msk [vmem:[#allocation3 + $0x50] sm:$0xff] %vm1850, %v1588
        %2127 = vst.msk [vmem:[#allocation3 + $0x58] sm:$0xff] %vm1850, %v1589
        %2128 = vst.msk [vmem:[#allocation3 + $0x60] sm:$0xff] %vm1850, %v1590
        %2129 = vst.msk [vmem:[#allocation3 + $0x68] sm:$0xff] %vm1850, %v1591
        %2130 = vst.msk [vmem:[#allocation3 + $0x70] sm:$0xff] %vm1850, %v1592
        %2131 = vst.msk [vmem:[#allocation3 + $0x78] sm:$0xff] %vm1850, %v1593
        %s2132 = scalar_lea.vmem [#allocation2], 64
        %v2133 = vld [vmem:[%s2132] sm:$0xff]
        %v2134 = vld [vmem:[%s2132 + $0x8] sm:$0xff]
        %v2135 = vld [vmem:[%s2132 + $0x10] sm:$0xff]
        %v2136 = vld [vmem:[%s2132 + $0x18] sm:$0xff]
        %v2137 = vld [vmem:[%s2132 + $0x20] sm:$0xff]
        %v2138 = vld [vmem:[%s2132 + $0x28] sm:$0xff]
        %v2139 = vld [vmem:[%s2132 + $0x30] sm:$0xff]
        %v2140 = vld [vmem:[%s2132 + $0x38] sm:$0xff]
        %2149 = vrot.lane.b32.xlu0 %v1199, 96
        %v2150 = vpop.permute.xlu0 %2149
        %2151 = vrot.lane.b32.xlu0 %v1200, 96
        %v2152 = vpop.permute.xlu0 %2151
        %2153 = vrot.lane.b32.xlu0 %v1201, 96
        %v2154 = vpop.permute.xlu0 %2153
        %2155 = vrot.lane.b32.xlu0 %v1202, 96
        %v2156 = vpop.permute.xlu0 %2155
        %2157 = vrot.lane.b32.xlu0 %v1203, 96
        %v2158 = vpop.permute.xlu0 %2157
        %2159 = vrot.lane.b32.xlu0 %v1204, 96
        %v2160 = vpop.permute.xlu0 %2159
        %2161 = vrot.lane.b32.xlu0 %v1205, 96
        %v2162 = vpop.permute.xlu0 %2161
        %2163 = vrot.lane.b32.xlu0 %v1206, 96
        %v2164 = vpop.permute.xlu0 %2163
        %v2166 = vsel %vm1384, %v2133, 0
        %v2169 = vsel %vm1384, %v2134, 0
        %v2172 = vsel %vm1384, %v2135, 0
        %v2175 = vsel %vm1384, %v2136, 0
        %v2178 = vsel %vm1384, %v2137, 0
        %v2181 = vsel %vm1384, %v2138, 0
        %v2184 = vsel %vm1384, %v2139, 0
        %v2187 = vsel %vm1384, %v2140, 0
        %v2190 = vsel %vm1384, %v2150, 0
        %v2193 = vsel %vm1384, %v2152, 0
        %v2196 = vsel %vm1384, %v2154, 0
        %v2199 = vsel %vm1384, %v2156, 0
        %v2202 = vsel %vm1384, %v2158, 0
        %v2205 = vsel %vm1384, %v2160, 0
        %v2208 = vsel %vm1384, %v2162, 0
        %v2211 = vsel %vm1384, %v2164, 0
        %2213 = vmatprep.subr.bf16.mxu0 0
        %2214 = vmatpush1.bf16.xpose.msra.mxu0 %v2190
        %2215 = vmatprep.subr.bf16.mxu0 0
        %2216 = vmatpush1.bf16.xpose.msra.mxu0 %v2193
        %2217 = vmatprep.subr.bf16.mxu0 0
        %2218 = vmatpush1.bf16.xpose.msra.mxu0 %v2196
        %2219 = vmatprep.subr.bf16.mxu0 0
        %2220 = vmatpush1.bf16.xpose.msra.mxu0 %v2199
        %2221 = vmatprep.subr.bf16.mxu0 0
        %2222 = vmatpush1.bf16.xpose.msra.mxu0 %v2202
        %2223 = vmatprep.subr.bf16.mxu0 0
        %2224 = vmatpush1.bf16.xpose.msra.mxu0 %v2205
        %2225 = vmatprep.subr.bf16.mxu0 0
        %2226 = vmatpush1.bf16.xpose.msra.mxu0 %v2208
        %2227 = vmatprep.subr.bf16.mxu0 0
        %2228 = vmatpush1.bf16.xpose.msra.mxu0 %v2211
        %2229 = vmatprep.subr.bf16.mxu0 0
        %2230 = vmatpush1.bf16.xpose.msra.mxu0 0
        %2231 = vmatprep.subr.bf16.mxu0 0
        %2232 = vmatpush1.bf16.xpose.msra.mxu0 0
        %2233 = vmatprep.subr.bf16.mxu0 0
        %2234 = vmatpush1.bf16.xpose.msra.mxu0 0
        %2235 = vmatprep.subr.bf16.mxu0 0
        %2236 = vmatpush1.bf16.xpose.msra.mxu0 0
        %2237 = vmatprep.subr.bf16.mxu0 0
        %2238 = vmatpush1.bf16.xpose.msra.mxu0 0
        %2239 = vmatprep.subr.bf16.mxu0 0
        %2240 = vmatpush1.bf16.xpose.msra.mxu0 0
        %2241 = vmatprep.subr.bf16.mxu0 0
        %2242 = vmatpush1.bf16.xpose.msra.mxu0 0
        %2243 = vmatprep.subr.bf16.mxu0 0
        %2244 = vmatpush1.bf16.xpose.msra.mxu0 0
        %2245 = vmatprep.mubr.bf16.mxu0 0
        %2246 = vmatmul.mubr.bf16.gmra.mrb[0].mxu0 %v2166
        %v2247 = vpop.f32.mrb[0].mxu0
        %v2248 = vadd.f32 0.0, %v2247
        %v2249 = vpop.f32.mrb[0].mxu0
        %v2250 = vpop.f32.mrb[0].mxu0
        %v2251 = vadd.f32 0.0, %v2250
        %v2252 = vpop.f32.mrb[0].mxu0
        %2253 = vmatprep.mubr.bf16.mxu0 0
        %2254 = vmatmul.mubr.bf16.gmra.mrb[0].mxu0 %v2169
        %v2255 = vpop.f32.mrb[0].mxu0
        %v2256 = vadd.f32 0.0, %v2255
        %v2257 = vpop.f32.mrb[0].mxu0
        %v2258 = vpop.f32.mrb[0].mxu0
        %v2259 = vadd.f32 0.0, %v2258
        %v2260 = vpop.f32.mrb[0].mxu0
        %2261 = vmatprep.mubr.bf16.mxu0 0
        %2262 = vmatmul.mubr.bf16.gmra.mrb[0].mxu0 %v2172
        %v2263 = vpop.f32.mrb[0].mxu0
        %v2264 = vadd.f32 0.0, %v2263
        %v2265 = vpop.f32.mrb[0].mxu0
        %v2266 = vpop.f32.mrb[0].mxu0
        %v2267 = vadd.f32 0.0, %v2266
        %v2268 = vpop.f32.mrb[0].mxu0
        %2269 = vmatprep.mubr.bf16.mxu0 0
        %2270 = vmatmul.mubr.bf16.gmra.mrb[0].mxu0 %v2175
        %v2271 = vpop.f32.mrb[0].mxu0
        %v2272 = vadd.f32 0.0, %v2271
        %v2273 = vpop.f32.mrb[0].mxu0
        %v2274 = vpop.f32.mrb[0].mxu0
        %v2275 = vadd.f32 0.0, %v2274
        %v2276 = vpop.f32.mrb[0].mxu0
        %2277 = vmatprep.mubr.bf16.mxu0 0
        %2278 = vmatmul.mubr.bf16.gmra.mrb[0].mxu0 %v2178
        %v2279 = vpop.f32.mrb[0].mxu0
        %v2280 = vadd.f32 0.0, %v2279
        %v2281 = vpop.f32.mrb[0].mxu0
        %v2282 = vpop.f32.mrb[0].mxu0
        %v2283 = vadd.f32 0.0, %v2282
        %v2284 = vpop.f32.mrb[0].mxu0
        %2285 = vmatprep.mubr.bf16.mxu0 0
        %2286 = vmatmul.mubr.bf16.gmra.mrb[0].mxu0 %v2181
        %v2287 = vpop.f32.mrb[0].mxu0
        %v2288 = vadd.f32 0.0, %v2287
        %v2289 = vpop.f32.mrb[0].mxu0
        %v2290 = vpop.f32.mrb[0].mxu0
        %v2291 = vadd.f32 0.0, %v2290
        %v2292 = vpop.f32.mrb[0].mxu0
        %2293 = vmatprep.mubr.bf16.mxu0 0
        %2294 = vmatmul.mubr.bf16.gmra.mrb[0].mxu0 %v2184
        %v2295 = vpop.f32.mrb[0].mxu0
        %v2296 = vadd.f32 0.0, %v2295
        %v2297 = vpop.f32.mrb[0].mxu0
        %v2298 = vpop.f32.mrb[0].mxu0
        %v2299 = vadd.f32 0.0, %v2298
        %v2300 = vpop.f32.mrb[0].mxu0
        %2301 = vmatprep.mubr.bf16.mxu0 0
        %2302 = vmatmul.mubr.bf16.gmra.mrb[0].mxu0 %v2187
        %v2303 = vpop.f32.mrb[0].mxu0
        %v2304 = vadd.f32 0.0, %v2303
        %v2305 = vpop.f32.mrb[0].mxu0
        %v2306 = vpop.f32.mrb[0].mxu0
        %v2307 = vadd.f32 0.0, %v2306
        %v2308 = vpop.f32.mrb[0].mxu0
        %2309 = vdwg.mxu0
        %s2310 = scalar_lea.vmem [#allocation3], 128
        %v2311 = vld [vmem:[%s2310] sm:$0xff]
        %v2312 = vld [vmem:[%s2310 + $0x8] sm:$0xff]
        %v2313 = vld [vmem:[%s2310 + $0x10] sm:$0xff]
        %v2314 = vld [vmem:[%s2310 + $0x18] sm:$0xff]
        %v2315 = vld [vmem:[%s2310 + $0x20] sm:$0xff]
        %v2316 = vld [vmem:[%s2310 + $0x28] sm:$0xff]
        %v2317 = vld [vmem:[%s2310 + $0x30] sm:$0xff]
        %v2318 = vld [vmem:[%s2310 + $0x38] sm:$0xff]
        %v2319 = vld [vmem:[%s2310 + $0x40] sm:$0xff]
        %v2320 = vld [vmem:[%s2310 + $0x48] sm:$0xff]
        %v2321 = vld [vmem:[%s2310 + $0x50] sm:$0xff]
        %v2322 = vld [vmem:[%s2310 + $0x58] sm:$0xff]
        %v2323 = vld [vmem:[%s2310 + $0x60] sm:$0xff]
        %v2324 = vld [vmem:[%s2310 + $0x68] sm:$0xff]
        %v2325 = vld [vmem:[%s2310 + $0x70] sm:$0xff]
        %v2326 = vld [vmem:[%s2310 + $0x78] sm:$0xff]
        %2327 = vmax.xlane.f32.xlu0 %v2248
        %v2328 = vpop.xlane.xlu0 %2327
        %2329 = vmax.xlane.f32.xlu0 %v2251
        %v2330 = vpop.xlane.xlu0 %2329
        %2331 = vmax.xlane.f32.xlu0 %v2256
        %v2332 = vpop.xlane.xlu0 %2331
        %2333 = vmax.xlane.f32.xlu0 %v2259
        %v2334 = vpop.xlane.xlu0 %2333
        %2335 = vmax.xlane.f32.xlu0 %v2264
        %v2336 = vpop.xlane.xlu0 %2335
        %2337 = vmax.xlane.f32.xlu0 %v2267
        %v2338 = vpop.xlane.xlu0 %2337
        %2339 = vmax.xlane.f32.xlu0 %v2272
        %v2340 = vpop.xlane.xlu0 %2339
        %2341 = vmax.xlane.f32.xlu0 %v2275
        %v2342 = vpop.xlane.xlu0 %2341
        %2343 = vmax.xlane.f32.xlu0 %v2280
        %v2344 = vpop.xlane.xlu0 %2343
        %2345 = vmax.xlane.f32.xlu0 %v2283
        %v2346 = vpop.xlane.xlu0 %2345
        %2347 = vmax.xlane.f32.xlu0 %v2288
        %v2348 = vpop.xlane.xlu0 %2347
        %2349 = vmax.xlane.f32.xlu0 %v2291
        %v2350 = vpop.xlane.xlu0 %2349
        %2351 = vmax.xlane.f32.xlu0 %v2296
        %v2352 = vpop.xlane.xlu0 %2351
        %2353 = vmax.xlane.f32.xlu0 %v2299
        %v2354 = vpop.xlane.xlu0 %2353
        %2355 = vmax.xlane.f32.xlu0 %v2304
        %v2356 = vpop.xlane.xlu0 %2355
        %2357 = vmax.xlane.f32.xlu0 %v2307
        %v2358 = vpop.xlane.xlu0 %2357
        %v2359 = vmax.f32 %v2311, %v2328
        %v2360 = vmax.f32 %v2312, %v2330
        %v2361 = vmax.f32 %v2313, %v2332
        %v2362 = vmax.f32 %v2314, %v2334
        %v2363 = vmax.f32 %v2315, %v2336
        %v2364 = vmax.f32 %v2316, %v2338
        %v2365 = vmax.f32 %v2317, %v2340
        %v2366 = vmax.f32 %v2318, %v2342
        %v2367 = vmax.f32 %v2319, %v2344
        %v2368 = vmax.f32 %v2320, %v2346
        %v2369 = vmax.f32 %v2321, %v2348
        %v2370 = vmax.f32 %v2322, %v2350
        %v2371 = vmax.f32 %v2323, %v2352
        %v2372 = vmax.f32 %v2324, %v2354
        %v2373 = vmax.f32 %v2325, %v2356
        %v2374 = vmax.f32 %v2326, %v2358
        %v2375 = vsub.f32 %v2311, %v2359
        %v2376 = vsub.f32 %v2312, %v2360
        %v2377 = vsub.f32 %v2313, %v2361
        %v2378 = vsub.f32 %v2314, %v2362
        %v2379 = vsub.f32 %v2315, %v2363
        %v2380 = vsub.f32 %v2316, %v2364
        %v2381 = vsub.f32 %v2317, %v2365
        %v2382 = vsub.f32 %v2318, %v2366
        %v2383 = vsub.f32 %v2319, %v2367
        %v2384 = vsub.f32 %v2320, %v2368
        %v2385 = vsub.f32 %v2321, %v2369
        %v2386 = vsub.f32 %v2322, %v2370
        %v2387 = vsub.f32 %v2323, %v2371
        %v2388 = vsub.f32 %v2324, %v2372
        %v2389 = vsub.f32 %v2325, %v2373
        %v2390 = vsub.f32 %v2326, %v2374
        %v2391 = vmul.f32 %v2375, 1.442695
        %v2392 = vpow.pop %v2391
        %v2393 = vmul.f32 %v2376, 1.442695
        %v2394 = vpow.pop %v2393
        %v2395 = vmul.f32 %v2377, 1.442695
        %v2396 = vpow.pop %v2395
        %v2397 = vmul.f32 %v2378, 1.442695
        %v2398 = vpow.pop %v2397
        %v2399 = vmul.f32 %v2379, 1.442695
        %v2400 = vpow.pop %v2399
        %v2401 = vmul.f32 %v2380, 1.442695
        %v2402 = vpow.pop %v2401
        %v2403 = vmul.f32 %v2381, 1.442695
        %v2404 = vpow.pop %v2403
        %v2405 = vmul.f32 %v2382, 1.442695
        %v2406 = vpow.pop %v2405
        %v2407 = vmul.f32 %v2383, 1.442695
        %v2408 = vpow.pop %v2407
        %v2409 = vmul.f32 %v2384, 1.442695
        %v2410 = vpow.pop %v2409
        %v2411 = vmul.f32 %v2385, 1.442695
        %v2412 = vpow.pop %v2411
        %v2413 = vmul.f32 %v2386, 1.442695
        %v2414 = vpow.pop %v2413
        %v2415 = vmul.f32 %v2387, 1.442695
        %v2416 = vpow.pop %v2415
        %v2417 = vmul.f32 %v2388, 1.442695
        %v2418 = vpow.pop %v2417
        %v2419 = vmul.f32 %v2389, 1.442695
        %v2420 = vpow.pop %v2419
        %v2421 = vmul.f32 %v2390, 1.442695
        %v2422 = vpow.pop %v2421
        %2424 = vset.pattern.permute.xlu0 0
        %2425 = vperm.xlu0 %2424, %v2359
        %v2426 = vpop.permute.xlu0 %2425
        %2429 = vset.pattern.permute.xlu0 0
        %2430 = vperm.xlu0 %2429, %v2360
        %v2431 = vpop.permute.xlu0 %2430
        %2434 = vset.pattern.permute.xlu0 0
        %2435 = vperm.xlu0 %2434, %v2361
        %v2436 = vpop.permute.xlu0 %2435
        %2439 = vset.pattern.permute.xlu0 0
        %2440 = vperm.xlu0 %2439, %v2362
        %v2441 = vpop.permute.xlu0 %2440
        %2444 = vset.pattern.permute.xlu0 0
        %2445 = vperm.xlu0 %2444, %v2363
        %v2446 = vpop.permute.xlu0 %2445
        %2449 = vset.pattern.permute.xlu0 0
        %2450 = vperm.xlu0 %2449, %v2364
        %v2451 = vpop.permute.xlu0 %2450
        %2454 = vset.pattern.permute.xlu0 0
        %2455 = vperm.xlu0 %2454, %v2365
        %v2456 = vpop.permute.xlu0 %2455
        %2459 = vset.pattern.permute.xlu0 0
        %2460 = vperm.xlu0 %2459, %v2366
        %v2461 = vpop.permute.xlu0 %2460
        %2464 = vset.pattern.permute.xlu0 0
        %2465 = vperm.xlu0 %2464, %v2367
        %v2466 = vpop.permute.xlu0 %2465
        %2469 = vset.pattern.permute.xlu0 0
        %2470 = vperm.xlu0 %2469, %v2368
        %v2471 = vpop.permute.xlu0 %2470
        %2474 = vset.pattern.permute.xlu0 0
        %2475 = vperm.xlu0 %2474, %v2369
        %v2476 = vpop.permute.xlu0 %2475
        %2479 = vset.pattern.permute.xlu0 0
        %2480 = vperm.xlu0 %2479, %v2370
        %v2481 = vpop.permute.xlu0 %2480
        %2484 = vset.pattern.permute.xlu0 0
        %2485 = vperm.xlu0 %2484, %v2371
        %v2486 = vpop.permute.xlu0 %2485
        %2489 = vset.pattern.permute.xlu0 0
        %2490 = vperm.xlu0 %2489, %v2372
        %v2491 = vpop.permute.xlu0 %2490
        %2494 = vset.pattern.permute.xlu0 0
        %2495 = vperm.xlu0 %2494, %v2373
        %v2496 = vpop.permute.xlu0 %2495
        %2499 = vset.pattern.permute.xlu0 0
        %2500 = vperm.xlu0 %2499, %v2374
        %v2501 = vpop.permute.xlu0 %2500
        %v2503 = vsub.f32 %v2248, %v2426
        %v2504 = vsub.f32 %v2251, %v2431
        %v2505 = vsub.f32 %v2256, %v2436
        %v2506 = vsub.f32 %v2259, %v2441
        %v2507 = vsub.f32 %v2264, %v2446
        %v2508 = vsub.f32 %v2267, %v2451
        %v2509 = vsub.f32 %v2272, %v2456
        %v2510 = vsub.f32 %v2275, %v2461
        %v2511 = vsub.f32 %v2280, %v2466
        %v2512 = vsub.f32 %v2283, %v2471
        %v2513 = vsub.f32 %v2288, %v2476
        %v2514 = vsub.f32 %v2291, %v2481
        %v2515 = vsub.f32 %v2296, %v2486
        %v2516 = vsub.f32 %v2299, %v2491
        %v2517 = vsub.f32 %v2304, %v2496
        %v2518 = vsub.f32 %v2307, %v2501
        %v2519 = vmul.f32 %v2503, 1.442695
        %v2520 = vpow.pop %v2519
        %v2521 = vmul.f32 %v2504, 1.442695
        %v2522 = vpow.pop %v2521
        %v2523 = vmul.f32 %v2505, 1.442695
        %v2524 = vpow.pop %v2523
        %v2525 = vmul.f32 %v2506, 1.442695
        %v2526 = vpow.pop %v2525
        %v2527 = vmul.f32 %v2507, 1.442695
        %v2528 = vpow.pop %v2527
        %v2529 = vmul.f32 %v2508, 1.442695
        %v2530 = vpow.pop %v2529
        %v2531 = vmul.f32 %v2509, 1.442695
        %v2532 = vpow.pop %v2531
        %v2533 = vmul.f32 %v2510, 1.442695
        %v2534 = vpow.pop %v2533
        %v2535 = vmul.f32 %v2511, 1.442695
        %v2536 = vpow.pop %v2535
        %v2537 = vmul.f32 %v2512, 1.442695
        %v2538 = vpow.pop %v2537
        %v2539 = vmul.f32 %v2513, 1.442695
        %v2540 = vpow.pop %v2539
        %v2541 = vmul.f32 %v2514, 1.442695
        %v2542 = vpow.pop %v2541
        %v2543 = vmul.f32 %v2515, 1.442695
        %v2544 = vpow.pop %v2543
        %v2545 = vmul.f32 %v2516, 1.442695
        %v2546 = vpow.pop %v2545
        %v2547 = vmul.f32 %v2517, 1.442695
        %v2548 = vpow.pop %v2547
        %v2549 = vmul.f32 %v2518, 1.442695
        %v2550 = vpow.pop %v2549
        %s2551 = scalar_lea.vmem [#allocation4], 128
        %v2552 = vld [vmem:[%s2551] sm:$0xff]
        %v2553 = vld [vmem:[%s2551 + $0x8] sm:$0xff]
        %v2554 = vld [vmem:[%s2551 + $0x10] sm:$0xff]
        %v2555 = vld [vmem:[%s2551 + $0x18] sm:$0xff]
        %v2556 = vld [vmem:[%s2551 + $0x20] sm:$0xff]
        %v2557 = vld [vmem:[%s2551 + $0x28] sm:$0xff]
        %v2558 = vld [vmem:[%s2551 + $0x30] sm:$0xff]
        %v2559 = vld [vmem:[%s2551 + $0x38] sm:$0xff]
        %v2560 = vld [vmem:[%s2551 + $0x40] sm:$0xff]
        %v2561 = vld [vmem:[%s2551 + $0x48] sm:$0xff]
        %v2562 = vld [vmem:[%s2551 + $0x50] sm:$0xff]
        %v2563 = vld [vmem:[%s2551 + $0x58] sm:$0xff]
        %v2564 = vld [vmem:[%s2551 + $0x60] sm:$0xff]
        %v2565 = vld [vmem:[%s2551 + $0x68] sm:$0xff]
        %v2566 = vld [vmem:[%s2551 + $0x70] sm:$0xff]
        %v2567 = vld [vmem:[%s2551 + $0x78] sm:$0xff]
        %v2568 = vmul.f32 %v2392, %v2552
        %v2569 = vmul.f32 %v2394, %v2553
        %v2570 = vmul.f32 %v2396, %v2554
        %v2571 = vmul.f32 %v2398, %v2555
        %v2572 = vmul.f32 %v2400, %v2556
        %v2573 = vmul.f32 %v2402, %v2557
        %v2574 = vmul.f32 %v2404, %v2558
        %v2575 = vmul.f32 %v2406, %v2559
        %v2576 = vmul.f32 %v2408, %v2560
        %v2577 = vmul.f32 %v2410, %v2561
        %v2578 = vmul.f32 %v2412, %v2562
        %v2579 = vmul.f32 %v2414, %v2563
        %v2580 = vmul.f32 %v2416, %v2564
        %v2581 = vmul.f32 %v2418, %v2565
        %v2582 = vmul.f32 %v2420, %v2566
        %v2583 = vmul.f32 %v2422, %v2567
        %2584 = vadd.xlane.f32.xlu0 %v2520
        %v2585 = vpop.xlane.xlu0 %2584
        %2586 = vadd.xlane.f32.xlu0 %v2522
        %v2587 = vpop.xlane.xlu0 %2586
        %2588 = vadd.xlane.f32.xlu0 %v2524
        %v2589 = vpop.xlane.xlu0 %2588
        %2590 = vadd.xlane.f32.xlu0 %v2526
        %v2591 = vpop.xlane.xlu0 %2590
        %2592 = vadd.xlane.f32.xlu0 %v2528
        %v2593 = vpop.xlane.xlu0 %2592
        %2594 = vadd.xlane.f32.xlu0 %v2530
        %v2595 = vpop.xlane.xlu0 %2594
        %2596 = vadd.xlane.f32.xlu0 %v2532
        %v2597 = vpop.xlane.xlu0 %2596
        %2598 = vadd.xlane.f32.xlu0 %v2534
        %v2599 = vpop.xlane.xlu0 %2598
        %2600 = vadd.xlane.f32.xlu0 %v2536
        %v2601 = vpop.xlane.xlu0 %2600
        %2602 = vadd.xlane.f32.xlu0 %v2538
        %v2603 = vpop.xlane.xlu0 %2602
        %2604 = vadd.xlane.f32.xlu0 %v2540
        %v2605 = vpop.xlane.xlu0 %2604
        %2606 = vadd.xlane.f32.xlu0 %v2542
        %v2607 = vpop.xlane.xlu0 %2606
        %2608 = vadd.xlane.f32.xlu0 %v2544
        %v2609 = vpop.xlane.xlu0 %2608
        %2610 = vadd.xlane.f32.xlu0 %v2546
        %v2611 = vpop.xlane.xlu0 %2610
        %2612 = vadd.xlane.f32.xlu0 %v2548
        %v2613 = vpop.xlane.xlu0 %2612
        %2614 = vadd.xlane.f32.xlu0 %v2550
        %v2615 = vpop.xlane.xlu0 %2614
        %v2616 = vadd.f32 %v2568, %v2585
        %v2617 = vadd.f32 %v2569, %v2587
        %v2618 = vadd.f32 %v2570, %v2589
        %v2619 = vadd.f32 %v2571, %v2591
        %v2620 = vadd.f32 %v2572, %v2593
        %v2621 = vadd.f32 %v2573, %v2595
        %v2622 = vadd.f32 %v2574, %v2597
        %v2623 = vadd.f32 %v2575, %v2599
        %v2624 = vadd.f32 %v2576, %v2601
        %v2625 = vadd.f32 %v2577, %v2603
        %v2626 = vadd.f32 %v2578, %v2605
        %v2627 = vadd.f32 %v2579, %v2607
        %v2628 = vadd.f32 %v2580, %v2609
        %v2629 = vadd.f32 %v2581, %v2611
        %v2630 = vadd.f32 %v2582, %v2613
        %v2631 = vadd.f32 %v2583, %v2615
        %2632 = vst.msk [vmem:[%s2551] sm:$0xff] %vm1850, %v2616
        %2633 = vst.msk [vmem:[%s2551 + $0x8] sm:$0xff] %vm1850, %v2617
        %2634 = vst.msk [vmem:[%s2551 + $0x10] sm:$0xff] %vm1850, %v2618
        %2635 = vst.msk [vmem:[%s2551 + $0x18] sm:$0xff] %vm1850, %v2619
        %2636 = vst.msk [vmem:[%s2551 + $0x20] sm:$0xff] %vm1850, %v2620
        %2637 = vst.msk [vmem:[%s2551 + $0x28] sm:$0xff] %vm1850, %v2621
        %2638 = vst.msk [vmem:[%s2551 + $0x30] sm:$0xff] %vm1850, %v2622
        %2639 = vst.msk [vmem:[%s2551 + $0x38] sm:$0xff] %vm1850, %v2623
        %2640 = vst.msk [vmem:[%s2551 + $0x40] sm:$0xff] %vm1850, %v2624
        %2641 = vst.msk [vmem:[%s2551 + $0x48] sm:$0xff] %vm1850, %v2625
        %2642 = vst.msk [vmem:[%s2551 + $0x50] sm:$0xff] %vm1850, %v2626
        %2643 = vst.msk [vmem:[%s2551 + $0x58] sm:$0xff] %vm1850, %v2627
        %2644 = vst.msk [vmem:[%s2551 + $0x60] sm:$0xff] %vm1850, %v2628
        %2645 = vst.msk [vmem:[%s2551 + $0x68] sm:$0xff] %vm1850, %v2629
        %2646 = vst.msk [vmem:[%s2551 + $0x70] sm:$0xff] %vm1850, %v2630
        %2647 = vst.msk [vmem:[%s2551 + $0x78] sm:$0xff] %vm1850, %v2631
        %s2648 = scalar_lea.vmem [#allocation5], 128
        %v2649 = vld [vmem:[%s2648] sm:$0xff]
        %v2650 = vld [vmem:[%s2648 + $0x8] sm:$0xff]
        %v2651 = vld [vmem:[%s2648 + $0x10] sm:$0xff]
        %v2652 = vld [vmem:[%s2648 + $0x18] sm:$0xff]
        %v2653 = vld [vmem:[%s2648 + $0x20] sm:$0xff]
        %v2654 = vld [vmem:[%s2648 + $0x28] sm:$0xff]
        %v2655 = vld [vmem:[%s2648 + $0x30] sm:$0xff]
        %v2656 = vld [vmem:[%s2648 + $0x38] sm:$0xff]
        %v2657 = vld [vmem:[%s2648 + $0x40] sm:$0xff]
        %v2658 = vld [vmem:[%s2648 + $0x48] sm:$0xff]
        %v2659 = vld [vmem:[%s2648 + $0x50] sm:$0xff]
        %v2660 = vld [vmem:[%s2648 + $0x58] sm:$0xff]
        %v2661 = vld [vmem:[%s2648 + $0x60] sm:$0xff]
        %v2662 = vld [vmem:[%s2648 + $0x68] sm:$0xff]
        %v2663 = vld [vmem:[%s2648 + $0x70] sm:$0xff]
        %v2664 = vld [vmem:[%s2648 + $0x78] sm:$0xff]
        %2666 = vset.pattern.permute.xlu0 0
        %2667 = vperm.xlu0 %2666, %v2392
        %v2668 = vpop.permute.xlu0 %2667
        %2671 = vset.pattern.permute.xlu0 0
        %2672 = vperm.xlu0 %2671, %v2394
        %v2673 = vpop.permute.xlu0 %2672
        %2676 = vset.pattern.permute.xlu0 0
        %2677 = vperm.xlu0 %2676, %v2396
        %v2678 = vpop.permute.xlu0 %2677
        %2681 = vset.pattern.permute.xlu0 0
        %2682 = vperm.xlu0 %2681, %v2398
        %v2683 = vpop.permute.xlu0 %2682
        %2686 = vset.pattern.permute.xlu0 0
        %2687 = vperm.xlu0 %2686, %v2400
        %v2688 = vpop.permute.xlu0 %2687
        %2691 = vset.pattern.permute.xlu0 0
        %2692 = vperm.xlu0 %2691, %v2402
        %v2693 = vpop.permute.xlu0 %2692
        %2696 = vset.pattern.permute.xlu0 0
        %2697 = vperm.xlu0 %2696, %v2404
        %v2698 = vpop.permute.xlu0 %2697
        %2701 = vset.pattern.permute.xlu0 0
        %2702 = vperm.xlu0 %2701, %v2406
        %v2703 = vpop.permute.xlu0 %2702
        %2706 = vset.pattern.permute.xlu0 0
        %2707 = vperm.xlu0 %2706, %v2408
        %v2708 = vpop.permute.xlu0 %2707
        %2711 = vset.pattern.permute.xlu0 0
        %2712 = vperm.xlu0 %2711, %v2410
        %v2713 = vpop.permute.xlu0 %2712
        %2716 = vset.pattern.permute.xlu0 0
        %2717 = vperm.xlu0 %2716, %v2412
        %v2718 = vpop.permute.xlu0 %2717
        %2721 = vset.pattern.permute.xlu0 0
        %2722 = vperm.xlu0 %2721, %v2414
        %v2723 = vpop.permute.xlu0 %2722
        %2726 = vset.pattern.permute.xlu0 0
        %2727 = vperm.xlu0 %2726, %v2416
        %v2728 = vpop.permute.xlu0 %2727
        %2731 = vset.pattern.permute.xlu0 0
        %2732 = vperm.xlu0 %2731, %v2418
        %v2733 = vpop.permute.xlu0 %2732
        %2736 = vset.pattern.permute.xlu0 0
        %2737 = vperm.xlu0 %2736, %v2420
        %v2738 = vpop.permute.xlu0 %2737
        %2741 = vset.pattern.permute.xlu0 0
        %2742 = vperm.xlu0 %2741, %v2422
        %v2743 = vpop.permute.xlu0 %2742
        %v2745 = vmul.f32 %v2668, %v2649
        %v2746 = vmul.f32 %v2673, %v2650
        %v2747 = vmul.f32 %v2678, %v2651
        %v2748 = vmul.f32 %v2683, %v2652
        %v2749 = vmul.f32 %v2688, %v2653
        %v2750 = vmul.f32 %v2693, %v2654
        %v2751 = vmul.f32 %v2698, %v2655
        %v2752 = vmul.f32 %v2703, %v2656
        %v2753 = vmul.f32 %v2708, %v2657
        %v2754 = vmul.f32 %v2713, %v2658
        %v2755 = vmul.f32 %v2718, %v2659
        %v2756 = vmul.f32 %v2723, %v2660
        %v2757 = vmul.f32 %v2728, %v2661
        %v2758 = vmul.f32 %v2733, %v2662
        %v2759 = vmul.f32 %v2738, %v2663
        %v2760 = vmul.f32 %v2743, %v2664
        %v2761 = vpack.c.bf16 %v2522, %v2520
        %v2762 = vpack.c.bf16 %v2526, %v2524
        %v2763 = vpack.c.bf16 %v2530, %v2528
        %v2764 = vpack.c.bf16 %v2534, %v2532
        %v2765 = vpack.c.bf16 %v2538, %v2536
        %v2766 = vpack.c.bf16 %v2542, %v2540
        %v2767 = vpack.c.bf16 %v2546, %v2544
        %v2768 = vpack.c.bf16 %v2550, %v2548
        %2777 = vrot.lane.b32.xlu0 %v1368, 96
        %v2778 = vpop.permute.xlu0 %2777
        %2779 = vrot.lane.b32.xlu0 %v1369, 96
        %v2780 = vpop.permute.xlu0 %2779
        %2781 = vrot.lane.b32.xlu0 %v1370, 96
        %v2782 = vpop.permute.xlu0 %2781
        %2783 = vrot.lane.b32.xlu0 %v1371, 96
        %v2784 = vpop.permute.xlu0 %2783
        %2785 = vrot.lane.b32.xlu0 %v1372, 96
        %v2786 = vpop.permute.xlu0 %2785
        %2787 = vrot.lane.b32.xlu0 %v1373, 96
        %v2788 = vpop.permute.xlu0 %2787
        %2789 = vrot.lane.b32.xlu0 %v1374, 96
        %v2790 = vpop.permute.xlu0 %2789
        %2791 = vrot.lane.b32.xlu0 %v1375, 96
        %v2792 = vpop.permute.xlu0 %2791
        %2801 = vmatprep.subr.bf16.mxu0 0
        %2802 = vmatpush1.bf16.msra.mxu0 %v2778
        %2803 = vmatprep.subr.bf16.mxu0 0
        %2804 = vmatpush1.bf16.msra.mxu0 %v2780
        %2805 = vmatprep.subr.bf16.mxu0 0
        %2806 = vmatpush1.bf16.msra.mxu0 %v2782
        %2807 = vmatprep.subr.bf16.mxu0 0
        %2808 = vmatpush1.bf16.msra.mxu0 %v2784
        %2809 = vmatprep.subr.bf16.mxu0 0
        %2810 = vmatpush1.bf16.msra.mxu0 %v2786
        %2811 = vmatprep.subr.bf16.mxu0 0
        %2812 = vmatpush1.bf16.msra.mxu0 %v2788
        %2813 = vmatprep.subr.bf16.mxu0 0
        %2814 = vmatpush1.bf16.msra.mxu0 %v2790
        %2815 = vmatprep.subr.bf16.mxu0 0
        %2816 = vmatpush1.bf16.msra.mxu0 %v2792
        %2817 = vmatprep.subr.bf16.mxu0 0
        %2818 = vmatpush1.bf16.msra.mxu0 0
        %2819 = vmatprep.subr.bf16.mxu0 0
        %2820 = vmatpush1.bf16.msra.mxu0 0
        %2821 = vmatprep.subr.bf16.mxu0 0
        %2822 = vmatpush1.bf16.msra.mxu0 0
        %2823 = vmatprep.subr.bf16.mxu0 0
        %2824 = vmatpush1.bf16.msra.mxu0 0
        %2825 = vmatprep.subr.bf16.mxu0 0
        %2826 = vmatpush1.bf16.msra.mxu0 0
        %2827 = vmatprep.subr.bf16.mxu0 0
        %2828 = vmatpush1.bf16.msra.mxu0 0
        %2829 = vmatprep.subr.bf16.mxu0 0
        %2830 = vmatpush1.bf16.msra.mxu0 0
        %2831 = vmatprep.subr.bf16.mxu0 0
        %2832 = vmatpush1.bf16.msra.mxu0 0
        %2833 = vmatprep.mubr.bf16.mxu0 0
        %2834 = vmatmul.mubr.bf16.gmra.mrb[0].mxu0 %v2761
        %v2835 = vpop.f32.mrb[0].mxu0
        %v2836 = vadd.f32 0.0, %v2835
        %v2837 = vpop.f32.mrb[0].mxu0
        %v2838 = vpop.f32.mrb[0].mxu0
        %v2839 = vadd.f32 0.0, %v2838
        %v2840 = vpop.f32.mrb[0].mxu0
        %2841 = vmatprep.mubr.bf16.mxu0 0
        %2842 = vmatmul.mubr.bf16.gmra.mrb[0].mxu0 %v2762
        %v2843 = vpop.f32.mrb[0].mxu0
        %v2844 = vadd.f32 0.0, %v2843
        %v2845 = vpop.f32.mrb[0].mxu0
        %v2846 = vpop.f32.mrb[0].mxu0
        %v2847 = vadd.f32 0.0, %v2846
        %v2848 = vpop.f32.mrb[0].mxu0
        %2849 = vmatprep.mubr.bf16.mxu0 0
        %2850 = vmatmul.mubr.bf16.gmra.mrb[0].mxu0 %v2763
        %v2851 = vpop.f32.mrb[0].mxu0
        %v2852 = vadd.f32 0.0, %v2851
        %v2853 = vpop.f32.mrb[0].mxu0
        %v2854 = vpop.f32.mrb[0].mxu0
        %v2855 = vadd.f32 0.0, %v2854
        %v2856 = vpop.f32.mrb[0].mxu0
        %2857 = vmatprep.mubr.bf16.mxu0 0
        %2858 = vmatmul.mubr.bf16.gmra.mrb[0].mxu0 %v2764
        %v2859 = vpop.f32.mrb[0].mxu0
        %v2860 = vadd.f32 0.0, %v2859
        %v2861 = vpop.f32.mrb[0].mxu0
        %v2862 = vpop.f32.mrb[0].mxu0
        %v2863 = vadd.f32 0.0, %v2862
        %v2864 = vpop.f32.mrb[0].mxu0
        %2865 = vmatprep.mubr.bf16.mxu0 0
        %2866 = vmatmul.mubr.bf16.gmra.mrb[0].mxu0 %v2765
        %v2867 = vpop.f32.mrb[0].mxu0
        %v2868 = vadd.f32 0.0, %v2867
        %v2869 = vpop.f32.mrb[0].mxu0
        %v2870 = vpop.f32.mrb[0].mxu0
        %v2871 = vadd.f32 0.0, %v2870
        %v2872 = vpop.f32.mrb[0].mxu0
        %2873 = vmatprep.mubr.bf16.mxu0 0
        %2874 = vmatmul.mubr.bf16.gmra.mrb[0].mxu0 %v2766
        %v2875 = vpop.f32.mrb[0].mxu0
        %v2876 = vadd.f32 0.0, %v2875
        %v2877 = vpop.f32.mrb[0].mxu0
        %v2878 = vpop.f32.mrb[0].mxu0
        %v2879 = vadd.f32 0.0, %v2878
        %v2880 = vpop.f32.mrb[0].mxu0
        %2881 = vmatprep.mubr.bf16.mxu0 0
        %2882 = vmatmul.mubr.bf16.gmra.mrb[0].mxu0 %v2767
        %v2883 = vpop.f32.mrb[0].mxu0
        %v2884 = vadd.f32 0.0, %v2883
        %v2885 = vpop.f32.mrb[0].mxu0
        %v2886 = vpop.f32.mrb[0].mxu0
        %v2887 = vadd.f32 0.0, %v2886
        %v2888 = vpop.f32.mrb[0].mxu0
        %2889 = vmatprep.mubr.bf16.mxu0 0
        %2890 = vmatmul.mubr.bf16.gmra.mrb[0].mxu0 %v2768
        %v2891 = vpop.f32.mrb[0].mxu0
        %v2892 = vadd.f32 0.0, %v2891
        %v2893 = vpop.f32.mrb[0].mxu0
        %v2894 = vpop.f32.mrb[0].mxu0
        %v2895 = vadd.f32 0.0, %v2894
        %v2896 = vpop.f32.mrb[0].mxu0
        %2897 = vdwg.mxu0
        %v2898 = vadd.f32 %v2745, %v2836
        %v2899 = vadd.f32 %v2746, %v2839
        %v2900 = vadd.f32 %v2747, %v2844
        %v2901 = vadd.f32 %v2748, %v2847
        %v2902 = vadd.f32 %v2749, %v2852
        %v2903 = vadd.f32 %v2750, %v2855
        %v2904 = vadd.f32 %v2751, %v2860
        %v2905 = vadd.f32 %v2752, %v2863
        %v2906 = vadd.f32 %v2753, %v2868
        %v2907 = vadd.f32 %v2754, %v2871
        %v2908 = vadd.f32 %v2755, %v2876
        %v2909 = vadd.f32 %v2756, %v2879
        %v2910 = vadd.f32 %v2757, %v2884
        %v2911 = vadd.f32 %v2758, %v2887
        %v2912 = vadd.f32 %v2759, %v2892
        %v2913 = vadd.f32 %v2760, %v2895
        %2914 = vst.msk [vmem:[%s2648] sm:$0xff] %vm1384, %v2898
        %2915 = vst.msk [vmem:[%s2648 + $0x8] sm:$0xff] %vm1384, %v2899
        %2916 = vst.msk [vmem:[%s2648 + $0x10] sm:$0xff] %vm1384, %v2900
        %2917 = vst.msk [vmem:[%s2648 + $0x18] sm:$0xff] %vm1384, %v2901
        %2918 = vst.msk [vmem:[%s2648 + $0x20] sm:$0xff] %vm1384, %v2902
        %2919 = vst.msk [vmem:[%s2648 + $0x28] sm:$0xff] %vm1384, %v2903
        %2920 = vst.msk [vmem:[%s2648 + $0x30] sm:$0xff] %vm1384, %v2904
        %2921 = vst.msk [vmem:[%s2648 + $0x38] sm:$0xff] %vm1384, %v2905
        %2922 = vst.msk [vmem:[%s2648 + $0x40] sm:$0xff] %vm1384, %v2906
        %2923 = vst.msk [vmem:[%s2648 + $0x48] sm:$0xff] %vm1384, %v2907
        %2924 = vst.msk [vmem:[%s2648 + $0x50] sm:$0xff] %vm1384, %v2908
        %2925 = vst.msk [vmem:[%s2648 + $0x58] sm:$0xff] %vm1384, %v2909
        %2926 = vst.msk [vmem:[%s2648 + $0x60] sm:$0xff] %vm1384, %v2910
        %2927 = vst.msk [vmem:[%s2648 + $0x68] sm:$0xff] %vm1384, %v2911
        %2928 = vst.msk [vmem:[%s2648 + $0x70] sm:$0xff] %vm1384, %v2912
        %2929 = vst.msk [vmem:[%s2648 + $0x78] sm:$0xff] %vm1384, %v2913
        %2930 = vst.msk [vmem:[%s2310] sm:$0xff] %vm1850, %v2359
        %2931 = vst.msk [vmem:[%s2310 + $0x8] sm:$0xff] %vm1850, %v2360
        %2932 = vst.msk [vmem:[%s2310 + $0x10] sm:$0xff] %vm1850, %v2361
        %2933 = vst.msk [vmem:[%s2310 + $0x18] sm:$0xff] %vm1850, %v2362
        %2934 = vst.msk [vmem:[%s2310 + $0x20] sm:$0xff] %vm1850, %v2363
        %2935 = vst.msk [vmem:[%s2310 + $0x28] sm:$0xff] %vm1850, %v2364
        %2936 = vst.msk [vmem:[%s2310 + $0x30] sm:$0xff] %vm1850, %v2365
        %2937 = vst.msk [vmem:[%s2310 + $0x38] sm:$0xff] %vm1850, %v2366
        %2938 = vst.msk [vmem:[%s2310 + $0x40] sm:$0xff] %vm1850, %v2367
        %2939 = vst.msk [vmem:[%s2310 + $0x48] sm:$0xff] %vm1850, %v2368
        %2940 = vst.msk [vmem:[%s2310 + $0x50] sm:$0xff] %vm1850, %v2369
        %2941 = vst.msk [vmem:[%s2310 + $0x58] sm:$0xff] %vm1850, %v2370
        %2942 = vst.msk [vmem:[%s2310 + $0x60] sm:$0xff] %vm1850, %v2371
        %2943 = vst.msk [vmem:[%s2310 + $0x68] sm:$0xff] %vm1850, %v2372
        %2944 = vst.msk [vmem:[%s2310 + $0x70] sm:$0xff] %vm1850, %v2373
        %2945 = vst.msk [vmem:[%s2310 + $0x78] sm:$0xff] %vm1850, %v2374
        %s2946 = scalar_lea.vmem [#allocation2], 128
        %v2947 = vld [vmem:[%s2946] sm:$0xff]
        %v2948 = vld [vmem:[%s2946 + $0x8] sm:$0xff]
        %v2949 = vld [vmem:[%s2946 + $0x10] sm:$0xff]
        %v2950 = vld [vmem:[%s2946 + $0x18] sm:$0xff]
        %v2951 = vld [vmem:[%s2946 + $0x20] sm:$0xff]
        %v2952 = vld [vmem:[%s2946 + $0x28] sm:$0xff]
        %v2953 = vld [vmem:[%s2946 + $0x30] sm:$0xff]
        %v2954 = vld [vmem:[%s2946 + $0x38] sm:$0xff]
        %2955 = vrot.lane.b32.xlu0 %v1199, 64
        %v2956 = vpop.permute.xlu0 %2955
        %2957 = vrot.lane.b32.xlu0 %v1200, 64
        %v2958 = vpop.permute.xlu0 %2957
        %2959 = vrot.lane.b32.xlu0 %v1201, 64
        %v2960 = vpop.permute.xlu0 %2959
        %2961 = vrot.lane.b32.xlu0 %v1202, 64
        %v2962 = vpop.permute.xlu0 %2961
        %2963 = vrot.lane.b32.xlu0 %v1203, 64
        %v2964 = vpop.permute.xlu0 %2963
        %2965 = vrot.lane.b32.xlu0 %v1204, 64
        %v2966 = vpop.permute.xlu0 %2965
        %2967 = vrot.lane.b32.xlu0 %v1205, 64
        %v2968 = vpop.permute.xlu0 %2967
        %2969 = vrot.lane.b32.xlu0 %v1206, 64
        %v2970 = vpop.permute.xlu0 %2969
        %v2972 = vsel %vm1384, %v2947, 0
        %v2975 = vsel %vm1384, %v2948, 0
        %v2978 = vsel %vm1384, %v2949, 0
        %v2981 = vsel %vm1384, %v2950, 0
        %v2984 = vsel %vm1384, %v2951, 0
        %v2987 = vsel %vm1384, %v2952, 0
        %v2990 = vsel %vm1384, %v2953, 0
        %v2993 = vsel %vm1384, %v2954, 0
        %v2996 = vsel %vm1384, %v2956, 0
        %v2999 = vsel %vm1384, %v2958, 0
        %v3002 = vsel %vm1384, %v2960, 0
        %v3005 = vsel %vm1384, %v2962, 0
        %v3008 = vsel %vm1384, %v2964, 0
        %v3011 = vsel %vm1384, %v2966, 0
        %v3014 = vsel %vm1384, %v2968, 0
        %v3017 = vsel %vm1384, %v2970, 0
        %3019 = vmatprep.subr.bf16.mxu0 0
        %3020 = vmatpush1.bf16.xpose.msra.mxu0 %v2996
        %3021 = vmatprep.subr.bf16.mxu0 0
        %3022 = vmatpush1.bf16.xpose.msra.mxu0 %v2999
        %3023 = vmatprep.subr.bf16.mxu0 0
        %3024 = vmatpush1.bf16.xpose.msra.mxu0 %v3002
        %3025 = vmatprep.subr.bf16.mxu0 0
        %3026 = vmatpush1.bf16.xpose.msra.mxu0 %v3005
        %3027 = vmatprep.subr.bf16.mxu0 0
        %3028 = vmatpush1.bf16.xpose.msra.mxu0 %v3008
        %3029 = vmatprep.subr.bf16.mxu0 0
        %3030 = vmatpush1.bf16.xpose.msra.mxu0 %v3011
        %3031 = vmatprep.subr.bf16.mxu0 0
        %3032 = vmatpush1.bf16.xpose.msra.mxu0 %v3014
        %3033 = vmatprep.subr.bf16.mxu0 0
        %3034 = vmatpush1.bf16.xpose.msra.mxu0 %v3017
        %3035 = vmatprep.subr.bf16.mxu0 0
        %3036 = vmatpush1.bf16.xpose.msra.mxu0 0
        %3037 = vmatprep.subr.bf16.mxu0 0
        %3038 = vmatpush1.bf16.xpose.msra.mxu0 0
        %3039 = vmatprep.subr.bf16.mxu0 0
        %3040 = vmatpush1.bf16.xpose.msra.mxu0 0
        %3041 = vmatprep.subr.bf16.mxu0 0
        %3042 = vmatpush1.bf16.xpose.msra.mxu0 0
        %3043 = vmatprep.subr.bf16.mxu0 0
        %3044 = vmatpush1.bf16.xpose.msra.mxu0 0
        %3045 = vmatprep.subr.bf16.mxu0 0
        %3046 = vmatpush1.bf16.xpose.msra.mxu0 0
        %3047 = vmatprep.subr.bf16.mxu0 0
        %3048 = vmatpush1.bf16.xpose.msra.mxu0 0
        %3049 = vmatprep.subr.bf16.mxu0 0
        %3050 = vmatpush1.bf16.xpose.msra.mxu0 0
        %3051 = vmatprep.mubr.bf16.mxu0 0
        %3052 = vmatmul.mubr.bf16.gmra.mrb[0].mxu0 %v2972
        %v3053 = vpop.f32.mrb[0].mxu0
        %v3054 = vadd.f32 0.0, %v3053
        %v3055 = vpop.f32.mrb[0].mxu0
        %v3056 = vpop.f32.mrb[0].mxu0
        %v3057 = vadd.f32 0.0, %v3056
        %v3058 = vpop.f32.mrb[0].mxu0
        %3059 = vmatprep.mubr.bf16.mxu0 0
        %3060 = vmatmul.mubr.bf16.gmra.mrb[0].mxu0 %v2975
        %v3061 = vpop.f32.mrb[0].mxu0
        %v3062 = vadd.f32 0.0, %v3061
        %v3063 = vpop.f32.mrb[0].mxu0
        %v3064 = vpop.f32.mrb[0].mxu0
        %v3065 = vadd.f32 0.0, %v3064
        %v3066 = vpop.f32.mrb[0].mxu0
        %3067 = vmatprep.mubr.bf16.mxu0 0
        %3068 = vmatmul.mubr.bf16.gmra.mrb[0].mxu0 %v2978
        %v3069 = vpop.f32.mrb[0].mxu0
        %v3070 = vadd.f32 0.0, %v3069
        %v3071 = vpop.f32.mrb[0].mxu0
        %v3072 = vpop.f32.mrb[0].mxu0
        %v3073 = vadd.f32 0.0, %v3072
        %v3074 = vpop.f32.mrb[0].mxu0
        %3075 = vmatprep.mubr.bf16.mxu0 0
        %3076 = vmatmul.mubr.bf16.gmra.mrb[0].mxu0 %v2981
        %v3077 = vpop.f32.mrb[0].mxu0
        %v3078 = vadd.f32 0.0, %v3077
        %v3079 = vpop.f32.mrb[0].mxu0
        %v3080 = vpop.f32.mrb[0].mxu0
        %v3081 = vadd.f32 0.0, %v3080
        %v3082 = vpop.f32.mrb[0].mxu0
        %3083 = vmatprep.mubr.bf16.mxu0 0
        %3084 = vmatmul.mubr.bf16.gmra.mrb[0].mxu0 %v2984
        %v3085 = vpop.f32.mrb[0].mxu0
        %v3086 = vadd.f32 0.0, %v3085
        %v3087 = vpop.f32.mrb[0].mxu0
        %v3088 = vpop.f32.mrb[0].mxu0
        %v3089 = vadd.f32 0.0, %v3088
        %v3090 = vpop.f32.mrb[0].mxu0
        %3091 = vmatprep.mubr.bf16.mxu0 0
        %3092 = vmatmul.mubr.bf16.gmra.mrb[0].mxu0 %v2987
        %v3093 = vpop.f32.mrb[0].mxu0
        %v3094 = vadd.f32 0.0, %v3093
        %v3095 = vpop.f32.mrb[0].mxu0
        %v3096 = vpop.f32.mrb[0].mxu0
        %v3097 = vadd.f32 0.0, %v3096
        %v3098 = vpop.f32.mrb[0].mxu0
        %3099 = vmatprep.mubr.bf16.mxu0 0
        %3100 = vmatmul.mubr.bf16.gmra.mrb[0].mxu0 %v2990
        %v3101 = vpop.f32.mrb[0].mxu0
        %v3102 = vadd.f32 0.0, %v3101
        %v3103 = vpop.f32.mrb[0].mxu0
        %v3104 = vpop.f32.mrb[0].mxu0
        %v3105 = vadd.f32 0.0, %v3104
        %v3106 = vpop.f32.mrb[0].mxu0
        %3107 = vmatprep.mubr.bf16.mxu0 0
        %3108 = vmatmul.mubr.bf16.gmra.mrb[0].mxu0 %v2993
        %v3109 = vpop.f32.mrb[0].mxu0
        %v3110 = vadd.f32 0.0, %v3109
        %v3111 = vpop.f32.mrb[0].mxu0
        %v3112 = vpop.f32.mrb[0].mxu0
        %v3113 = vadd.f32 0.0, %v3112
        %v3114 = vpop.f32.mrb[0].mxu0
        %3115 = vdwg.mxu0
        %s3116 = scalar_lea.vmem [#allocation3], 256
        %v3117 = vld [vmem:[%s3116] sm:$0xff]
        %v3118 = vld [vmem:[%s3116 + $0x8] sm:$0xff]
        %v3119 = vld [vmem:[%s3116 + $0x10] sm:$0xff]
        %v3120 = vld [vmem:[%s3116 + $0x18] sm:$0xff]
        %v3121 = vld [vmem:[%s3116 + $0x20] sm:$0xff]
        %v3122 = vld [vmem:[%s3116 + $0x28] sm:$0xff]
        %v3123 = vld [vmem:[%s3116 + $0x30] sm:$0xff]
        %v3124 = vld [vmem:[%s3116 + $0x38] sm:$0xff]
        %v3125 = vld [vmem:[%s3116 + $0x40] sm:$0xff]
        %v3126 = vld [vmem:[%s3116 + $0x48] sm:$0xff]
        %v3127 = vld [vmem:[%s3116 + $0x50] sm:$0xff]
        %v3128 = vld [vmem:[%s3116 + $0x58] sm:$0xff]
        %v3129 = vld [vmem:[%s3116 + $0x60] sm:$0xff]
        %v3130 = vld [vmem:[%s3116 + $0x68] sm:$0xff]
        %v3131 = vld [vmem:[%s3116 + $0x70] sm:$0xff]
        %v3132 = vld [vmem:[%s3116 + $0x78] sm:$0xff]
        %3133 = vmax.xlane.f32.xlu0 %v3054
        %v3134 = vpop.xlane.xlu0 %3133
        %3135 = vmax.xlane.f32.xlu0 %v3057
        %v3136 = vpop.xlane.xlu0 %3135
        %3137 = vmax.xlane.f32.xlu0 %v3062
        %v3138 = vpop.xlane.xlu0 %3137
        %3139 = vmax.xlane.f32.xlu0 %v3065
        %v3140 = vpop.xlane.xlu0 %3139
        %3141 = vmax.xlane.f32.xlu0 %v3070
        %v3142 = vpop.xlane.xlu0 %3141
        %3143 = vmax.xlane.f32.xlu0 %v3073
        %v3144 = vpop.xlane.xlu0 %3143
        %3145 = vmax.xlane.f32.xlu0 %v3078
        %v3146 = vpop.xlane.xlu0 %3145
        %3147 = vmax.xlane.f32.xlu0 %v3081
        %v3148 = vpop.xlane.xlu0 %3147
        %3149 = vmax.xlane.f32.xlu0 %v3086
        %v3150 = vpop.xlane.xlu0 %3149
        %3151 = vmax.xlane.f32.xlu0 %v3089
        %v3152 = vpop.xlane.xlu0 %3151
        %3153 = vmax.xlane.f32.xlu0 %v3094
        %v3154 = vpop.xlane.xlu0 %3153
        %3155 = vmax.xlane.f32.xlu0 %v3097
        %v3156 = vpop.xlane.xlu0 %3155
        %3157 = vmax.xlane.f32.xlu0 %v3102
        %v3158 = vpop.xlane.xlu0 %3157
        %3159 = vmax.xlane.f32.xlu0 %v3105
        %v3160 = vpop.xlane.xlu0 %3159
        %3161 = vmax.xlane.f32.xlu0 %v3110
        %v3162 = vpop.xlane.xlu0 %3161
        %3163 = vmax.xlane.f32.xlu0 %v3113
        %v3164 = vpop.xlane.xlu0 %3163
        %v3165 = vmax.f32 %v3117, %v3134
        %v3166 = vmax.f32 %v3118, %v3136
        %v3167 = vmax.f32 %v3119, %v3138
        %v3168 = vmax.f32 %v3120, %v3140
        %v3169 = vmax.f32 %v3121, %v3142
        %v3170 = vmax.f32 %v3122, %v3144
        %v3171 = vmax.f32 %v3123, %v3146
        %v3172 = vmax.f32 %v3124, %v3148
        %v3173 = vmax.f32 %v3125, %v3150
        %v3174 = vmax.f32 %v3126, %v3152
        %v3175 = vmax.f32 %v3127, %v3154
        %v3176 = vmax.f32 %v3128, %v3156
        %v3177 = vmax.f32 %v3129, %v3158
        %v3178 = vmax.f32 %v3130, %v3160
        %v3179 = vmax.f32 %v3131, %v3162
        %v3180 = vmax.f32 %v3132, %v3164
        %v3181 = vsub.f32 %v3117, %v3165
        %v3182 = vsub.f32 %v3118, %v3166
        %v3183 = vsub.f32 %v3119, %v3167
        %v3184 = vsub.f32 %v3120, %v3168
        %v3185 = vsub.f32 %v3121, %v3169
        %v3186 = vsub.f32 %v3122, %v3170
        %v3187 = vsub.f32 %v3123, %v3171
        %v3188 = vsub.f32 %v3124, %v3172
        %v3189 = vsub.f32 %v3125, %v3173
        %v3190 = vsub.f32 %v3126, %v3174
        %v3191 = vsub.f32 %v3127, %v3175
        %v3192 = vsub.f32 %v3128, %v3176
        %v3193 = vsub.f32 %v3129, %v3177
        %v3194 = vsub.f32 %v3130, %v3178
        %v3195 = vsub.f32 %v3131, %v3179
        %v3196 = vsub.f32 %v3132, %v3180
        %v3197 = vmul.f32 %v3181, 1.442695
        %v3198 = vpow.pop %v3197
        %v3199 = vmul.f32 %v3182, 1.442695
        %v3200 = vpow.pop %v3199
        %v3201 = vmul.f32 %v3183, 1.442695
        %v3202 = vpow.pop %v3201
        %v3203 = vmul.f32 %v3184, 1.442695
        %v3204 = vpow.pop %v3203
        %v3205 = vmul.f32 %v3185, 1.442695
        %v3206 = vpow.pop %v3205
        %v3207 = vmul.f32 %v3186, 1.442695
        %v3208 = vpow.pop %v3207
        %v3209 = vmul.f32 %v3187, 1.442695
        %v3210 = vpow.pop %v3209
        %v3211 = vmul.f32 %v3188, 1.442695
        %v3212 = vpow.pop %v3211
        %v3213 = vmul.f32 %v3189, 1.442695
        %v3214 = vpow.pop %v3213
        %v3215 = vmul.f32 %v3190, 1.442695
        %v3216 = vpow.pop %v3215
        %v3217 = vmul.f32 %v3191, 1.442695
        %v3218 = vpow.pop %v3217
        %v3219 = vmul.f32 %v3192, 1.442695
        %v3220 = vpow.pop %v3219
        %v3221 = vmul.f32 %v3193, 1.442695
        %v3222 = vpow.pop %v3221
        %v3223 = vmul.f32 %v3194, 1.442695
        %v3224 = vpow.pop %v3223
        %v3225 = vmul.f32 %v3195, 1.442695
        %v3226 = vpow.pop %v3225
        %v3227 = vmul.f32 %v3196, 1.442695
        %v3228 = vpow.pop %v3227
        %3230 = vset.pattern.permute.xlu0 0
        %3231 = vperm.xlu0 %3230, %v3165
        %v3232 = vpop.permute.xlu0 %3231
        %3235 = vset.pattern.permute.xlu0 0
        %3236 = vperm.xlu0 %3235, %v3166
        %v3237 = vpop.permute.xlu0 %3236
        %3240 = vset.pattern.permute.xlu0 0
        %3241 = vperm.xlu0 %3240, %v3167
        %v3242 = vpop.permute.xlu0 %3241
        %3245 = vset.pattern.permute.xlu0 0
        %3246 = vperm.xlu0 %3245, %v3168
        %v3247 = vpop.permute.xlu0 %3246
        %3250 = vset.pattern.permute.xlu0 0
        %3251 = vperm.xlu0 %3250, %v3169
        %v3252 = vpop.permute.xlu0 %3251
        %3255 = vset.pattern.permute.xlu0 0
        %3256 = vperm.xlu0 %3255, %v3170
        %v3257 = vpop.permute.xlu0 %3256
        %3260 = vset.pattern.permute.xlu0 0
        %3261 = vperm.xlu0 %3260, %v3171
        %v3262 = vpop.permute.xlu0 %3261
        %3265 = vset.pattern.permute.xlu0 0
        %3266 = vperm.xlu0 %3265, %v3172
        %v3267 = vpop.permute.xlu0 %3266
        %3270 = vset.pattern.permute.xlu0 0
        %3271 = vperm.xlu0 %3270, %v3173
        %v3272 = vpop.permute.xlu0 %3271
        %3275 = vset.pattern.permute.xlu0 0
        %3276 = vperm.xlu0 %3275, %v3174
        %v3277 = vpop.permute.xlu0 %3276
        %3280 = vset.pattern.permute.xlu0 0
        %3281 = vperm.xlu0 %3280, %v3175
        %v3282 = vpop.permute.xlu0 %3281
        %3285 = vset.pattern.permute.xlu0 0
        %3286 = vperm.xlu0 %3285, %v3176
        %v3287 = vpop.permute.xlu0 %3286
        %3290 = vset.pattern.permute.xlu0 0
        %3291 = vperm.xlu0 %3290, %v3177
        %v3292 = vpop.permute.xlu0 %3291
        %3295 = vset.pattern.permute.xlu0 0
        %3296 = vperm.xlu0 %3295, %v3178
        %v3297 = vpop.permute.xlu0 %3296
        %3300 = vset.pattern.permute.xlu0 0
        %3301 = vperm.xlu0 %3300, %v3179
        %v3302 = vpop.permute.xlu0 %3301
        %3305 = vset.pattern.permute.xlu0 0
        %3306 = vperm.xlu0 %3305, %v3180
        %v3307 = vpop.permute.xlu0 %3306
        %v3309 = vsub.f32 %v3054, %v3232
        %v3310 = vsub.f32 %v3057, %v3237
        %v3311 = vsub.f32 %v3062, %v3242
        %v3312 = vsub.f32 %v3065, %v3247
        %v3313 = vsub.f32 %v3070, %v3252
        %v3314 = vsub.f32 %v3073, %v3257
        %v3315 = vsub.f32 %v3078, %v3262
        %v3316 = vsub.f32 %v3081, %v3267
        %v3317 = vsub.f32 %v3086, %v3272
        %v3318 = vsub.f32 %v3089, %v3277
        %v3319 = vsub.f32 %v3094, %v3282
        %v3320 = vsub.f32 %v3097, %v3287
        %v3321 = vsub.f32 %v3102, %v3292
        %v3322 = vsub.f32 %v3105, %v3297
        %v3323 = vsub.f32 %v3110, %v3302
        %v3324 = vsub.f32 %v3113, %v3307
        %v3325 = vmul.f32 %v3309, 1.442695
        %v3326 = vpow.pop %v3325
        %v3327 = vmul.f32 %v3310, 1.442695
        %v3328 = vpow.pop %v3327
        %v3329 = vmul.f32 %v3311, 1.442695
        %v3330 = vpow.pop %v3329
        %v3331 = vmul.f32 %v3312, 1.442695
        %v3332 = vpow.pop %v3331
        %v3333 = vmul.f32 %v3313, 1.442695
        %v3334 = vpow.pop %v3333
        %v3335 = vmul.f32 %v3314, 1.442695
        %v3336 = vpow.pop %v3335
        %v3337 = vmul.f32 %v3315, 1.442695
        %v3338 = vpow.pop %v3337
        %v3339 = vmul.f32 %v3316, 1.442695
        %v3340 = vpow.pop %v3339
        %v3341 = vmul.f32 %v3317, 1.442695
        %v3342 = vpow.pop %v3341
        %v3343 = vmul.f32 %v3318, 1.442695
        %v3344 = vpow.pop %v3343
        %v3345 = vmul.f32 %v3319, 1.442695
        %v3346 = vpow.pop %v3345
        %v3347 = vmul.f32 %v3320, 1.442695
        %v3348 = vpow.pop %v3347
        %v3349 = vmul.f32 %v3321, 1.442695
        %v3350 = vpow.pop %v3349
        %v3351 = vmul.f32 %v3322, 1.442695
        %v3352 = vpow.pop %v3351
        %v3353 = vmul.f32 %v3323, 1.442695
        %v3354 = vpow.pop %v3353
        %v3355 = vmul.f32 %v3324, 1.442695
        %v3356 = vpow.pop %v3355
        %s3357 = scalar_lea.vmem [#allocation4], 256
        %v3358 = vld [vmem:[%s3357] sm:$0xff]
        %v3359 = vld [vmem:[%s3357 + $0x8] sm:$0xff]
        %v3360 = vld [vmem:[%s3357 + $0x10] sm:$0xff]
        %v3361 = vld [vmem:[%s3357 + $0x18] sm:$0xff]
        %v3362 = vld [vmem:[%s3357 + $0x20] sm:$0xff]
        %v3363 = vld [vmem:[%s3357 + $0x28] sm:$0xff]
        %v3364 = vld [vmem:[%s3357 + $0x30] sm:$0xff]
        %v3365 = vld [vmem:[%s3357 + $0x38] sm:$0xff]
        %v3366 = vld [vmem:[%s3357 + $0x40] sm:$0xff]
        %v3367 = vld [vmem:[%s3357 + $0x48] sm:$0xff]
        %v3368 = vld [vmem:[%s3357 + $0x50] sm:$0xff]
        %v3369 = vld [vmem:[%s3357 + $0x58] sm:$0xff]
        %v3370 = vld [vmem:[%s3357 + $0x60] sm:$0xff]
        %v3371 = vld [vmem:[%s3357 + $0x68] sm:$0xff]
        %v3372 = vld [vmem:[%s3357 + $0x70] sm:$0xff]
        %v3373 = vld [vmem:[%s3357 + $0x78] sm:$0xff]
        %v3374 = vmul.f32 %v3198, %v3358
        %v3375 = vmul.f32 %v3200, %v3359
        %v3376 = vmul.f32 %v3202, %v3360
        %v3377 = vmul.f32 %v3204, %v3361
        %v3378 = vmul.f32 %v3206, %v3362
        %v3379 = vmul.f32 %v3208, %v3363
        %v3380 = vmul.f32 %v3210, %v3364
        %v3381 = vmul.f32 %v3212, %v3365
        %v3382 = vmul.f32 %v3214, %v3366
        %v3383 = vmul.f32 %v3216, %v3367
        %v3384 = vmul.f32 %v3218, %v3368
        %v3385 = vmul.f32 %v3220, %v3369
        %v3386 = vmul.f32 %v3222, %v3370
        %v3387 = vmul.f32 %v3224, %v3371
        %v3388 = vmul.f32 %v3226, %v3372
        %v3389 = vmul.f32 %v3228, %v3373
        %3390 = vadd.xlane.f32.xlu0 %v3326
        %v3391 = vpop.xlane.xlu0 %3390
        %3392 = vadd.xlane.f32.xlu0 %v3328
        %v3393 = vpop.xlane.xlu0 %3392
        %3394 = vadd.xlane.f32.xlu0 %v3330
        %v3395 = vpop.xlane.xlu0 %3394
        %3396 = vadd.xlane.f32.xlu0 %v3332
        %v3397 = vpop.xlane.xlu0 %3396
        %3398 = vadd.xlane.f32.xlu0 %v3334
        %v3399 = vpop.xlane.xlu0 %3398
        %3400 = vadd.xlane.f32.xlu0 %v3336
        %v3401 = vpop.xlane.xlu0 %3400
        %3402 = vadd.xlane.f32.xlu0 %v3338
        %v3403 = vpop.xlane.xlu0 %3402
        %3404 = vadd.xlane.f32.xlu0 %v3340
        %v3405 = vpop.xlane.xlu0 %3404
        %3406 = vadd.xlane.f32.xlu0 %v3342
        %v3407 = vpop.xlane.xlu0 %3406
        %3408 = vadd.xlane.f32.xlu0 %v3344
        %v3409 = vpop.xlane.xlu0 %3408
        %3410 = vadd.xlane.f32.xlu0 %v3346
        %v3411 = vpop.xlane.xlu0 %3410
        %3412 = vadd.xlane.f32.xlu0 %v3348
        %v3413 = vpop.xlane.xlu0 %3412
        %3414 = vadd.xlane.f32.xlu0 %v3350
        %v3415 = vpop.xlane.xlu0 %3414
        %3416 = vadd.xlane.f32.xlu0 %v3352
        %v3417 = vpop.xlane.xlu0 %3416
        %3418 = vadd.xlane.f32.xlu0 %v3354
        %v3419 = vpop.xlane.xlu0 %3418
        %3420 = vadd.xlane.f32.xlu0 %v3356
        %v3421 = vpop.xlane.xlu0 %3420
        %v3422 = vadd.f32 %v3374, %v3391
        %v3423 = vadd.f32 %v3375, %v3393
        %v3424 = vadd.f32 %v3376, %v3395
        %v3425 = vadd.f32 %v3377, %v3397
        %v3426 = vadd.f32 %v3378, %v3399
        %v3427 = vadd.f32 %v3379, %v3401
        %v3428 = vadd.f32 %v3380, %v3403
        %v3429 = vadd.f32 %v3381, %v3405
        %v3430 = vadd.f32 %v3382, %v3407
        %v3431 = vadd.f32 %v3383, %v3409
        %v3432 = vadd.f32 %v3384, %v3411
        %v3433 = vadd.f32 %v3385, %v3413
        %v3434 = vadd.f32 %v3386, %v3415
        %v3435 = vadd.f32 %v3387, %v3417
        %v3436 = vadd.f32 %v3388, %v3419
        %v3437 = vadd.f32 %v3389, %v3421
        %3438 = vst.msk [vmem:[%s3357] sm:$0xff] %vm1850, %v3422
        %3439 = vst.msk [vmem:[%s3357 + $0x8] sm:$0xff] %vm1850, %v3423
        %3440 = vst.msk [vmem:[%s3357 + $0x10] sm:$0xff] %vm1850, %v3424
        %3441 = vst.msk [vmem:[%s3357 + $0x18] sm:$0xff] %vm1850, %v3425
        %3442 = vst.msk [vmem:[%s3357 + $0x20] sm:$0xff] %vm1850, %v3426
        %3443 = vst.msk [vmem:[%s3357 + $0x28] sm:$0xff] %vm1850, %v3427
        %3444 = vst.msk [vmem:[%s3357 + $0x30] sm:$0xff] %vm1850, %v3428
        %3445 = vst.msk [vmem:[%s3357 + $0x38] sm:$0xff] %vm1850, %v3429
        %3446 = vst.msk [vmem:[%s3357 + $0x40] sm:$0xff] %vm1850, %v3430
        %3447 = vst.msk [vmem:[%s3357 + $0x48] sm:$0xff] %vm1850, %v3431
        %3448 = vst.msk [vmem:[%s3357 + $0x50] sm:$0xff] %vm1850, %v3432
        %3449 = vst.msk [vmem:[%s3357 + $0x58] sm:$0xff] %vm1850, %v3433
        %3450 = vst.msk [vmem:[%s3357 + $0x60] sm:$0xff] %vm1850, %v3434
        %3451 = vst.msk [vmem:[%s3357 + $0x68] sm:$0xff] %vm1850, %v3435
        %3452 = vst.msk [vmem:[%s3357 + $0x70] sm:$0xff] %vm1850, %v3436
        %3453 = vst.msk [vmem:[%s3357 + $0x78] sm:$0xff] %vm1850, %v3437
        %s3454 = scalar_lea.vmem [#allocation5], 256
        %v3455 = vld [vmem:[%s3454] sm:$0xff]
        %v3456 = vld [vmem:[%s3454 + $0x8] sm:$0xff]
        %v3457 = vld [vmem:[%s3454 + $0x10] sm:$0xff]
        %v3458 = vld [vmem:[%s3454 + $0x18] sm:$0xff]
        %v3459 = vld [vmem:[%s3454 + $0x20] sm:$0xff]
        %v3460 = vld [vmem:[%s3454 + $0x28] sm:$0xff]
        %v3461 = vld [vmem:[%s3454 + $0x30] sm:$0xff]
        %v3462 = vld [vmem:[%s3454 + $0x38] sm:$0xff]
        %v3463 = vld [vmem:[%s3454 + $0x40] sm:$0xff]
        %v3464 = vld [vmem:[%s3454 + $0x48] sm:$0xff]
        %v3465 = vld [vmem:[%s3454 + $0x50] sm:$0xff]
        %v3466 = vld [vmem:[%s3454 + $0x58] sm:$0xff]
        %v3467 = vld [vmem:[%s3454 + $0x60] sm:$0xff]
        %v3468 = vld [vmem:[%s3454 + $0x68] sm:$0xff]
        %v3469 = vld [vmem:[%s3454 + $0x70] sm:$0xff]
        %v3470 = vld [vmem:[%s3454 + $0x78] sm:$0xff]
        %3472 = vset.pattern.permute.xlu0 0
        %3473 = vperm.xlu0 %3472, %v3198
        %v3474 = vpop.permute.xlu0 %3473
        %3477 = vset.pattern.permute.xlu0 0
        %3478 = vperm.xlu0 %3477, %v3200
        %v3479 = vpop.permute.xlu0 %3478
        %3482 = vset.pattern.permute.xlu0 0
        %3483 = vperm.xlu0 %3482, %v3202
        %v3484 = vpop.permute.xlu0 %3483
        %3487 = vset.pattern.permute.xlu0 0
        %3488 = vperm.xlu0 %3487, %v3204
        %v3489 = vpop.permute.xlu0 %3488
        %3492 = vset.pattern.permute.xlu0 0
        %3493 = vperm.xlu0 %3492, %v3206
        %v3494 = vpop.permute.xlu0 %3493
        %3497 = vset.pattern.permute.xlu0 0
        %3498 = vperm.xlu0 %3497, %v3208
        %v3499 = vpop.permute.xlu0 %3498
        %3502 = vset.pattern.permute.xlu0 0
        %3503 = vperm.xlu0 %3502, %v3210
        %v3504 = vpop.permute.xlu0 %3503
        %3507 = vset.pattern.permute.xlu0 0
        %3508 = vperm.xlu0 %3507, %v3212
        %v3509 = vpop.permute.xlu0 %3508
        %3512 = vset.pattern.permute.xlu0 0
        %3513 = vperm.xlu0 %3512, %v3214
        %v3514 = vpop.permute.xlu0 %3513
        %3517 = vset.pattern.permute.xlu0 0
        %3518 = vperm.xlu0 %3517, %v3216
        %v3519 = vpop.permute.xlu0 %3518
        %3522 = vset.pattern.permute.xlu0 0
        %3523 = vperm.xlu0 %3522, %v3218
        %v3524 = vpop.permute.xlu0 %3523
        %3527 = vset.pattern.permute.xlu0 0
        %3528 = vperm.xlu0 %3527, %v3220
        %v3529 = vpop.permute.xlu0 %3528
        %3532 = vset.pattern.permute.xlu0 0
        %3533 = vperm.xlu0 %3532, %v3222
        %v3534 = vpop.permute.xlu0 %3533
        %3537 = vset.pattern.permute.xlu0 0
        %3538 = vperm.xlu0 %3537, %v3224
        %v3539 = vpop.permute.xlu0 %3538
        %3542 = vset.pattern.permute.xlu0 0
        %3543 = vperm.xlu0 %3542, %v3226
        %v3544 = vpop.permute.xlu0 %3543
        %3547 = vset.pattern.permute.xlu0 0
        %3548 = vperm.xlu0 %3547, %v3228
        %v3549 = vpop.permute.xlu0 %3548
        %v3551 = vmul.f32 %v3474, %v3455
        %v3552 = vmul.f32 %v3479, %v3456
        %v3553 = vmul.f32 %v3484, %v3457
        %v3554 = vmul.f32 %v3489, %v3458
        %v3555 = vmul.f32 %v3494, %v3459
        %v3556 = vmul.f32 %v3499, %v3460
        %v3557 = vmul.f32 %v3504, %v3461
        %v3558 = vmul.f32 %v3509, %v3462
        %v3559 = vmul.f32 %v3514, %v3463
        %v3560 = vmul.f32 %v3519, %v3464
        %v3561 = vmul.f32 %v3524, %v3465
        %v3562 = vmul.f32 %v3529, %v3466
        %v3563 = vmul.f32 %v3534, %v3467
        %v3564 = vmul.f32 %v3539, %v3468
        %v3565 = vmul.f32 %v3544, %v3469
        %v3566 = vmul.f32 %v3549, %v3470
        %v3567 = vpack.c.bf16 %v3328, %v3326
        %v3568 = vpack.c.bf16 %v3332, %v3330
        %v3569 = vpack.c.bf16 %v3336, %v3334
        %v3570 = vpack.c.bf16 %v3340, %v3338
        %v3571 = vpack.c.bf16 %v3344, %v3342
        %v3572 = vpack.c.bf16 %v3348, %v3346
        %v3573 = vpack.c.bf16 %v3352, %v3350
        %v3574 = vpack.c.bf16 %v3356, %v3354
        %3575 = vrot.lane.b32.xlu0 %v1368, 64
        %v3576 = vpop.permute.xlu0 %3575
        %3577 = vrot.lane.b32.xlu0 %v1369, 64
        %v3578 = vpop.permute.xlu0 %3577
        %3579 = vrot.lane.b32.xlu0 %v1370, 64
        %v3580 = vpop.permute.xlu0 %3579
        %3581 = vrot.lane.b32.xlu0 %v1371, 64
        %v3582 = vpop.permute.xlu0 %3581
        %3583 = vrot.lane.b32.xlu0 %v1372, 64
        %v3584 = vpop.permute.xlu0 %3583
        %3585 = vrot.lane.b32.xlu0 %v1373, 64
        %v3586 = vpop.permute.xlu0 %3585
        %3587 = vrot.lane.b32.xlu0 %v1374, 64
        %v3588 = vpop.permute.xlu0 %3587
        %3589 = vrot.lane.b32.xlu0 %v1375, 64
        %v3590 = vpop.permute.xlu0 %3589
        %3599 = vmatprep.subr.bf16.mxu0 0
        %3600 = vmatpush1.bf16.msra.mxu0 %v3576
        %3601 = vmatprep.subr.bf16.mxu0 0
        %3602 = vmatpush1.bf16.msra.mxu0 %v3578
        %3603 = vmatprep.subr.bf16.mxu0 0
        %3604 = vmatpush1.bf16.msra.mxu0 %v3580
        %3605 = vmatprep.subr.bf16.mxu0 0
        %3606 = vmatpush1.bf16.msra.mxu0 %v3582
        %3607 = vmatprep.subr.bf16.mxu0 0
        %3608 = vmatpush1.bf16.msra.mxu0 %v3584
        %3609 = vmatprep.subr.bf16.mxu0 0
        %3610 = vmatpush1.bf16.msra.mxu0 %v3586
        %3611 = vmatprep.subr.bf16.mxu0 0
        %3612 = vmatpush1.bf16.msra.mxu0 %v3588
        %3613 = vmatprep.subr.bf16.mxu0 0
        %3614 = vmatpush1.bf16.msra.mxu0 %v3590
        %3615 = vmatprep.subr.bf16.mxu0 0
        %3616 = vmatpush1.bf16.msra.mxu0 0
        %3617 = vmatprep.subr.bf16.mxu0 0
        %3618 = vmatpush1.bf16.msra.mxu0 0
        %3619 = vmatprep.subr.bf16.mxu0 0
        %3620 = vmatpush1.bf16.msra.mxu0 0
        %3621 = vmatprep.subr.bf16.mxu0 0
        %3622 = vmatpush1.bf16.msra.mxu0 0
        %3623 = vmatprep.subr.bf16.mxu0 0
        %3624 = vmatpush1.bf16.msra.mxu0 0
        %3625 = vmatprep.subr.bf16.mxu0 0
        %3626 = vmatpush1.bf16.msra.mxu0 0
        %3627 = vmatprep.subr.bf16.mxu0 0
        %3628 = vmatpush1.bf16.msra.mxu0 0
        %3629 = vmatprep.subr.bf16.mxu0 0
        %3630 = vmatpush1.bf16.msra.mxu0 0
        %3631 = vmatprep.mubr.bf16.mxu0 0
        %3632 = vmatmul.mubr.bf16.gmra.mrb[0].mxu0 %v3567
        %v3633 = vpop.f32.mrb[0].mxu0
        %v3634 = vadd.f32 0.0, %v3633
        %v3635 = vpop.f32.mrb[0].mxu0
        %v3636 = vpop.f32.mrb[0].mxu0
        %v3637 = vadd.f32 0.0, %v3636
        %v3638 = vpop.f32.mrb[0].mxu0
        %3639 = vmatprep.mubr.bf16.mxu0 0
        %3640 = vmatmul.mubr.bf16.gmra.mrb[0].mxu0 %v3568
        %v3641 = vpop.f32.mrb[0].mxu0
        %v3642 = vadd.f32 0.0, %v3641
        %v3643 = vpop.f32.mrb[0].mxu0
        %v3644 = vpop.f32.mrb[0].mxu0
        %v3645 = vadd.f32 0.0, %v3644
        %v3646 = vpop.f32.mrb[0].mxu0
        %3647 = vmatprep.mubr.bf16.mxu0 0
        %3648 = vmatmul.mubr.bf16.gmra.mrb[0].mxu0 %v3569
        %v3649 = vpop.f32.mrb[0].mxu0
        %v3650 = vadd.f32 0.0, %v3649
        %v3651 = vpop.f32.mrb[0].mxu0
        %v3652 = vpop.f32.mrb[0].mxu0
        %v3653 = vadd.f32 0.0, %v3652
        %v3654 = vpop.f32.mrb[0].mxu0
        %3655 = vmatprep.mubr.bf16.mxu0 0
        %3656 = vmatmul.mubr.bf16.gmra.mrb[0].mxu0 %v3570
        %v3657 = vpop.f32.mrb[0].mxu0
        %v3658 = vadd.f32 0.0, %v3657
        %v3659 = vpop.f32.mrb[0].mxu0
        %v3660 = vpop.f32.mrb[0].mxu0
        %v3661 = vadd.f32 0.0, %v3660
        %v3662 = vpop.f32.mrb[0].mxu0
        %3663 = vmatprep.mubr.bf16.mxu0 0
        %3664 = vmatmul.mubr.bf16.gmra.mrb[0].mxu0 %v3571
        %v3665 = vpop.f32.mrb[0].mxu0
        %v3666 = vadd.f32 0.0, %v3665
        %v3667 = vpop.f32.mrb[0].mxu0
        %v3668 = vpop.f32.mrb[0].mxu0
        %v3669 = vadd.f32 0.0, %v3668
        %v3670 = vpop.f32.mrb[0].mxu0
        %3671 = vmatprep.mubr.bf16.mxu0 0
        %3672 = vmatmul.mubr.bf16.gmra.mrb[0].mxu0 %v3572
        %v3673 = vpop.f32.mrb[0].mxu0
        %v3674 = vadd.f32 0.0, %v3673
        %v3675 = vpop.f32.mrb[0].mxu0
        %v3676 = vpop.f32.mrb[0].mxu0
        %v3677 = vadd.f32 0.0, %v3676
        %v3678 = vpop.f32.mrb[0].mxu0
        %3679 = vmatprep.mubr.bf16.mxu0 0
        %3680 = vmatmul.mubr.bf16.gmra.mrb[0].mxu0 %v3573
        %v3681 = vpop.f32.mrb[0].mxu0
        %v3682 = vadd.f32 0.0, %v3681
        %v3683 = vpop.f32.mrb[0].mxu0
        %v3684 = vpop.f32.mrb[0].mxu0
        %v3685 = vadd.f32 0.0, %v3684
        %v3686 = vpop.f32.mrb[0].mxu0
        %3687 = vmatprep.mubr.bf16.mxu0 0
        %3688 = vmatmul.mubr.bf16.gmra.mrb[0].mxu0 %v3574
        %v3689 = vpop.f32.mrb[0].mxu0
        %v3690 = vadd.f32 0.0, %v3689
        %v3691 = vpop.f32.mrb[0].mxu0
        %v3692 = vpop.f32.mrb[0].mxu0
        %v3693 = vadd.f32 0.0, %v3692
        %v3694 = vpop.f32.mrb[0].mxu0
        %3695 = vdwg.mxu0
        %v3696 = vadd.f32 %v3551, %v3634
        %v3697 = vadd.f32 %v3552, %v3637
        %v3698 = vadd.f32 %v3553, %v3642
        %v3699 = vadd.f32 %v3554, %v3645
        %v3700 = vadd.f32 %v3555, %v3650
        %v3701 = vadd.f32 %v3556, %v3653
        %v3702 = vadd.f32 %v3557, %v3658
        %v3703 = vadd.f32 %v3558, %v3661
        %v3704 = vadd.f32 %v3559, %v3666
        %v3705 = vadd.f32 %v3560, %v3669
        %v3706 = vadd.f32 %v3561, %v3674
        %v3707 = vadd.f32 %v3562, %v3677
        %v3708 = vadd.f32 %v3563, %v3682
        %v3709 = vadd.f32 %v3564, %v3685
        %v3710 = vadd.f32 %v3565, %v3690
        %v3711 = vadd.f32 %v3566, %v3693
        %3712 = vst.msk [vmem:[%s3454] sm:$0xff] %vm1384, %v3696
        %3713 = vst.msk [vmem:[%s3454 + $0x8] sm:$0xff] %vm1384, %v3697
        %3714 = vst.msk [vmem:[%s3454 + $0x10] sm:$0xff] %vm1384, %v3698
        %3715 = vst.msk [vmem:[%s3454 + $0x18] sm:$0xff] %vm1384, %v3699
        %3716 = vst.msk [vmem:[%s3454 + $0x20] sm:$0xff] %vm1384, %v3700
        %3717 = vst.msk [vmem:[%s3454 + $0x28] sm:$0xff] %vm1384, %v3701
        %3718 = vst.msk [vmem:[%s3454 + $0x30] sm:$0xff] %vm1384, %v3702
        %3719 = vst.msk [vmem:[%s3454 + $0x38] sm:$0xff] %vm1384, %v3703
        %3720 = vst.msk [vmem:[%s3454 + $0x40] sm:$0xff] %vm1384, %v3704
        %3721 = vst.msk [vmem:[%s3454 + $0x48] sm:$0xff] %vm1384, %v3705
        %3722 = vst.msk [vmem:[%s3454 + $0x50] sm:$0xff] %vm1384, %v3706
        %3723 = vst.msk [vmem:[%s3454 + $0x58] sm:$0xff] %vm1384, %v3707
        %3724 = vst.msk [vmem:[%s3454 + $0x60] sm:$0xff] %vm1384, %v3708
        %3725 = vst.msk [vmem:[%s3454 + $0x68] sm:$0xff] %vm1384, %v3709
        %3726 = vst.msk [vmem:[%s3454 + $0x70] sm:$0xff] %vm1384, %v3710
        %3727 = vst.msk [vmem:[%s3454 + $0x78] sm:$0xff] %vm1384, %v3711
        %3728 = vst.msk [vmem:[%s3116] sm:$0xff] %vm1850, %v3165
        %3729 = vst.msk [vmem:[%s3116 + $0x8] sm:$0xff] %vm1850, %v3166
        %3730 = vst.msk [vmem:[%s3116 + $0x10] sm:$0xff] %vm1850, %v3167
        %3731 = vst.msk [vmem:[%s3116 + $0x18] sm:$0xff] %vm1850, %v3168
        %3732 = vst.msk [vmem:[%s3116 + $0x20] sm:$0xff] %vm1850, %v3169
        %3733 = vst.msk [vmem:[%s3116 + $0x28] sm:$0xff] %vm1850, %v3170
        %3734 = vst.msk [vmem:[%s3116 + $0x30] sm:$0xff] %vm1850, %v3171
        %3735 = vst.msk [vmem:[%s3116 + $0x38] sm:$0xff] %vm1850, %v3172
        %3736 = vst.msk [vmem:[%s3116 + $0x40] sm:$0xff] %vm1850, %v3173
        %3737 = vst.msk [vmem:[%s3116 + $0x48] sm:$0xff] %vm1850, %v3174
        %3738 = vst.msk [vmem:[%s3116 + $0x50] sm:$0xff] %vm1850, %v3175
        %3739 = vst.msk [vmem:[%s3116 + $0x58] sm:$0xff] %vm1850, %v3176
        %3740 = vst.msk [vmem:[%s3116 + $0x60] sm:$0xff] %vm1850, %v3177
        %3741 = vst.msk [vmem:[%s3116 + $0x68] sm:$0xff] %vm1850, %v3178
        %3742 = vst.msk [vmem:[%s3116 + $0x70] sm:$0xff] %vm1850, %v3179
        %3743 = vst.msk [vmem:[%s3116 + $0x78] sm:$0xff] %vm1850, %v3180
        %s3744 = scalar_lea.vmem [#allocation2], 192
        %v3745 = vld [vmem:[%s3744] sm:$0xff]
        %v3746 = vld [vmem:[%s3744 + $0x8] sm:$0xff]
        %v3747 = vld [vmem:[%s3744 + $0x10] sm:$0xff]
        %v3748 = vld [vmem:[%s3744 + $0x18] sm:$0xff]
        %v3749 = vld [vmem:[%s3744 + $0x20] sm:$0xff]
        %v3750 = vld [vmem:[%s3744 + $0x28] sm:$0xff]
        %v3751 = vld [vmem:[%s3744 + $0x30] sm:$0xff]
        %v3752 = vld [vmem:[%s3744 + $0x38] sm:$0xff]
        %3753 = vrot.lane.b32.xlu0 %v1199, 32
        %v3754 = vpop.permute.xlu0 %3753
        %3755 = vrot.lane.b32.xlu0 %v1200, 32
        %v3756 = vpop.permute.xlu0 %3755
        %3757 = vrot.lane.b32.xlu0 %v1201, 32
        %v3758 = vpop.permute.xlu0 %3757
        %3759 = vrot.lane.b32.xlu0 %v1202, 32
        %v3760 = vpop.permute.xlu0 %3759
        %3761 = vrot.lane.b32.xlu0 %v1203, 32
        %v3762 = vpop.permute.xlu0 %3761
        %3763 = vrot.lane.b32.xlu0 %v1204, 32
        %v3764 = vpop.permute.xlu0 %3763
        %3765 = vrot.lane.b32.xlu0 %v1205, 32
        %v3766 = vpop.permute.xlu0 %3765
        %3767 = vrot.lane.b32.xlu0 %v1206, 32
        %v3768 = vpop.permute.xlu0 %3767
        %v3770 = vsel %vm1384, %v3745, 0
        %v3773 = vsel %vm1384, %v3746, 0
        %v3776 = vsel %vm1384, %v3747, 0
        %v3779 = vsel %vm1384, %v3748, 0
        %v3782 = vsel %vm1384, %v3749, 0
        %v3785 = vsel %vm1384, %v3750, 0
        %v3788 = vsel %vm1384, %v3751, 0
        %v3791 = vsel %vm1384, %v3752, 0
        %v3794 = vsel %vm1384, %v3754, 0
        %v3797 = vsel %vm1384, %v3756, 0
        %v3800 = vsel %vm1384, %v3758, 0
        %v3803 = vsel %vm1384, %v3760, 0
        %v3806 = vsel %vm1384, %v3762, 0
        %v3809 = vsel %vm1384, %v3764, 0
        %v3812 = vsel %vm1384, %v3766, 0
        %v3815 = vsel %vm1384, %v3768, 0
        %3817 = vmatprep.subr.bf16.mxu0 0
        %3818 = vmatpush1.bf16.xpose.msra.mxu0 %v3794
        %3819 = vmatprep.subr.bf16.mxu0 0
        %3820 = vmatpush1.bf16.xpose.msra.mxu0 %v3797
        %3821 = vmatprep.subr.bf16.mxu0 0
        %3822 = vmatpush1.bf16.xpose.msra.mxu0 %v3800
        %3823 = vmatprep.subr.bf16.mxu0 0
        %3824 = vmatpush1.bf16.xpose.msra.mxu0 %v3803
        %3825 = vmatprep.subr.bf16.mxu0 0
        %3826 = vmatpush1.bf16.xpose.msra.mxu0 %v3806
        %3827 = vmatprep.subr.bf16.mxu0 0
        %3828 = vmatpush1.bf16.xpose.msra.mxu0 %v3809
        %3829 = vmatprep.subr.bf16.mxu0 0
        %3830 = vmatpush1.bf16.xpose.msra.mxu0 %v3812
        %3831 = vmatprep.subr.bf16.mxu0 0
        %3832 = vmatpush1.bf16.xpose.msra.mxu0 %v3815
        %3833 = vmatprep.subr.bf16.mxu0 0
        %3834 = vmatpush1.bf16.xpose.msra.mxu0 0
        %3835 = vmatprep.subr.bf16.mxu0 0
        %3836 = vmatpush1.bf16.xpose.msra.mxu0 0
        %3837 = vmatprep.subr.bf16.mxu0 0
        %3838 = vmatpush1.bf16.xpose.msra.mxu0 0
        %3839 = vmatprep.subr.bf16.mxu0 0
        %3840 = vmatpush1.bf16.xpose.msra.mxu0 0
        %3841 = vmatprep.subr.bf16.mxu0 0
        %3842 = vmatpush1.bf16.xpose.msra.mxu0 0
        %3843 = vmatprep.subr.bf16.mxu0 0
        %3844 = vmatpush1.bf16.xpose.msra.mxu0 0
        %3845 = vmatprep.subr.bf16.mxu0 0
        %3846 = vmatpush1.bf16.xpose.msra.mxu0 0
        %3847 = vmatprep.subr.bf16.mxu0 0
        %3848 = vmatpush1.bf16.xpose.msra.mxu0 0
        %3849 = vmatprep.mubr.bf16.mxu0 0
        %3850 = vmatmul.mubr.bf16.gmra.mrb[0].mxu0 %v3770
        %v3851 = vpop.f32.mrb[0].mxu0
        %v3852 = vadd.f32 0.0, %v3851
        %v3853 = vpop.f32.mrb[0].mxu0
        %v3854 = vpop.f32.mrb[0].mxu0
        %v3855 = vadd.f32 0.0, %v3854
        %v3856 = vpop.f32.mrb[0].mxu0
        %3857 = vmatprep.mubr.bf16.mxu0 0
        %3858 = vmatmul.mubr.bf16.gmra.mrb[0].mxu0 %v3773
        %v3859 = vpop.f32.mrb[0].mxu0
        %v3860 = vadd.f32 0.0, %v3859
        %v3861 = vpop.f32.mrb[0].mxu0
        %v3862 = vpop.f32.mrb[0].mxu0
        %v3863 = vadd.f32 0.0, %v3862
        %v3864 = vpop.f32.mrb[0].mxu0
        %3865 = vmatprep.mubr.bf16.mxu0 0
        %3866 = vmatmul.mubr.bf16.gmra.mrb[0].mxu0 %v3776
        %v3867 = vpop.f32.mrb[0].mxu0
        %v3868 = vadd.f32 0.0, %v3867
        %v3869 = vpop.f32.mrb[0].mxu0
        %v3870 = vpop.f32.mrb[0].mxu0
        %v3871 = vadd.f32 0.0, %v3870
        %v3872 = vpop.f32.mrb[0].mxu0
        %3873 = vmatprep.mubr.bf16.mxu0 0
        %3874 = vmatmul.mubr.bf16.gmra.mrb[0].mxu0 %v3779
        %v3875 = vpop.f32.mrb[0].mxu0
        %v3876 = vadd.f32 0.0, %v3875
        %v3877 = vpop.f32.mrb[0].mxu0
        %v3878 = vpop.f32.mrb[0].mxu0
        %v3879 = vadd.f32 0.0, %v3878
        %v3880 = vpop.f32.mrb[0].mxu0
        %3881 = vmatprep.mubr.bf16.mxu0 0
        %3882 = vmatmul.mubr.bf16.gmra.mrb[0].mxu0 %v3782
        %v3883 = vpop.f32.mrb[0].mxu0
        %v3884 = vadd.f32 0.0, %v3883
        %v3885 = vpop.f32.mrb[0].mxu0
        %v3886 = vpop.f32.mrb[0].mxu0
        %v3887 = vadd.f32 0.0, %v3886
        %v3888 = vpop.f32.mrb[0].mxu0
        %3889 = vmatprep.mubr.bf16.mxu0 0
        %3890 = vmatmul.mubr.bf16.gmra.mrb[0].mxu0 %v3785
        %v3891 = vpop.f32.mrb[0].mxu0
        %v3892 = vadd.f32 0.0, %v3891
        %v3893 = vpop.f32.mrb[0].mxu0
        %v3894 = vpop.f32.mrb[0].mxu0
        %v3895 = vadd.f32 0.0, %v3894
        %v3896 = vpop.f32.mrb[0].mxu0
        %3897 = vmatprep.mubr.bf16.mxu0 0
        %3898 = vmatmul.mubr.bf16.gmra.mrb[0].mxu0 %v3788
        %v3899 = vpop.f32.mrb[0].mxu0
        %v3900 = vadd.f32 0.0, %v3899
        %v3901 = vpop.f32.mrb[0].mxu0
        %v3902 = vpop.f32.mrb[0].mxu0
        %v3903 = vadd.f32 0.0, %v3902
        %v3904 = vpop.f32.mrb[0].mxu0
        %3905 = vmatprep.mubr.bf16.mxu0 0
        %3906 = vmatmul.mubr.bf16.gmra.mrb[0].mxu0 %v3791
        %v3907 = vpop.f32.mrb[0].mxu0
        %v3908 = vadd.f32 0.0, %v3907
        %v3909 = vpop.f32.mrb[0].mxu0
        %v3910 = vpop.f32.mrb[0].mxu0
        %v3911 = vadd.f32 0.0, %v3910
        %v3912 = vpop.f32.mrb[0].mxu0
        %3913 = vdwg.mxu0
        %s3914 = scalar_lea.vmem [#allocation3], 384
        %v3915 = vld [vmem:[%s3914] sm:$0xff]
        %v3916 = vld [vmem:[%s3914 + $0x8] sm:$0xff]
        %v3917 = vld [vmem:[%s3914 + $0x10] sm:$0xff]
        %v3918 = vld [vmem:[%s3914 + $0x18] sm:$0xff]
        %v3919 = vld [vmem:[%s3914 + $0x20] sm:$0xff]
        %v3920 = vld [vmem:[%s3914 + $0x28] sm:$0xff]
        %v3921 = vld [vmem:[%s3914 + $0x30] sm:$0xff]
        %v3922 = vld [vmem:[%s3914 + $0x38] sm:$0xff]
        %v3923 = vld [vmem:[%s3914 + $0x40] sm:$0xff]
        %v3924 = vld [vmem:[%s3914 + $0x48] sm:$0xff]
        %v3925 = vld [vmem:[%s3914 + $0x50] sm:$0xff]
        %v3926 = vld [vmem:[%s3914 + $0x58] sm:$0xff]
        %v3927 = vld [vmem:[%s3914 + $0x60] sm:$0xff]
        %v3928 = vld [vmem:[%s3914 + $0x68] sm:$0xff]
        %v3929 = vld [vmem:[%s3914 + $0x70] sm:$0xff]
        %v3930 = vld [vmem:[%s3914 + $0x78] sm:$0xff]
        %3931 = vmax.xlane.f32.xlu0 %v3852
        %v3932 = vpop.xlane.xlu0 %3931
        %3933 = vmax.xlane.f32.xlu0 %v3855
        %v3934 = vpop.xlane.xlu0 %3933
        %3935 = vmax.xlane.f32.xlu0 %v3860
        %v3936 = vpop.xlane.xlu0 %3935
        %3937 = vmax.xlane.f32.xlu0 %v3863
        %v3938 = vpop.xlane.xlu0 %3937
        %3939 = vmax.xlane.f32.xlu0 %v3868
        %v3940 = vpop.xlane.xlu0 %3939
        %3941 = vmax.xlane.f32.xlu0 %v3871
        %v3942 = vpop.xlane.xlu0 %3941
        %3943 = vmax.xlane.f32.xlu0 %v3876
        %v3944 = vpop.xlane.xlu0 %3943
        %3945 = vmax.xlane.f32.xlu0 %v3879
        %v3946 = vpop.xlane.xlu0 %3945
        %3947 = vmax.xlane.f32.xlu0 %v3884
        %v3948 = vpop.xlane.xlu0 %3947
        %3949 = vmax.xlane.f32.xlu0 %v3887
        %v3950 = vpop.xlane.xlu0 %3949
        %3951 = vmax.xlane.f32.xlu0 %v3892
        %v3952 = vpop.xlane.xlu0 %3951
        %3953 = vmax.xlane.f32.xlu0 %v3895
        %v3954 = vpop.xlane.xlu0 %3953
        %3955 = vmax.xlane.f32.xlu0 %v3900
        %v3956 = vpop.xlane.xlu0 %3955
        %3957 = vmax.xlane.f32.xlu0 %v3903
        %v3958 = vpop.xlane.xlu0 %3957
        %3959 = vmax.xlane.f32.xlu0 %v3908
        %v3960 = vpop.xlane.xlu0 %3959
        %3961 = vmax.xlane.f32.xlu0 %v3911
        %v3962 = vpop.xlane.xlu0 %3961
        %v3963 = vmax.f32 %v3915, %v3932
        %v3964 = vmax.f32 %v3916, %v3934
        %v3965 = vmax.f32 %v3917, %v3936
        %v3966 = vmax.f32 %v3918, %v3938
        %v3967 = vmax.f32 %v3919, %v3940
        %v3968 = vmax.f32 %v3920, %v3942
        %v3969 = vmax.f32 %v3921, %v3944
        %v3970 = vmax.f32 %v3922, %v3946
        %v3971 = vmax.f32 %v3923, %v3948
        %v3972 = vmax.f32 %v3924, %v3950
        %v3973 = vmax.f32 %v3925, %v3952
        %v3974 = vmax.f32 %v3926, %v3954
        %v3975 = vmax.f32 %v3927, %v3956
        %v3976 = vmax.f32 %v3928, %v3958
        %v3977 = vmax.f32 %v3929, %v3960
        %v3978 = vmax.f32 %v3930, %v3962
        %v3979 = vsub.f32 %v3915, %v3963
        %v3980 = vsub.f32 %v3916, %v3964
        %v3981 = vsub.f32 %v3917, %v3965
        %v3982 = vsub.f32 %v3918, %v3966
        %v3983 = vsub.f32 %v3919, %v3967
        %v3984 = vsub.f32 %v3920, %v3968
        %v3985 = vsub.f32 %v3921, %v3969
        %v3986 = vsub.f32 %v3922, %v3970
        %v3987 = vsub.f32 %v3923, %v3971
        %v3988 = vsub.f32 %v3924, %v3972
        %v3989 = vsub.f32 %v3925, %v3973
        %v3990 = vsub.f32 %v3926, %v3974
        %v3991 = vsub.f32 %v3927, %v3975
        %v3992 = vsub.f32 %v3928, %v3976
        %v3993 = vsub.f32 %v3929, %v3977
        %v3994 = vsub.f32 %v3930, %v3978
        %v3995 = vmul.f32 %v3979, 1.442695
        %v3996 = vpow.pop %v3995
        %v3997 = vmul.f32 %v3980, 1.442695
        %v3998 = vpow.pop %v3997
        %v3999 = vmul.f32 %v3981, 1.442695
        %v4000 = vpow.pop %v3999
        %v4001 = vmul.f32 %v3982, 1.442695
        %v4002 = vpow.pop %v4001
        %v4003 = vmul.f32 %v3983, 1.442695
        %v4004 = vpow.pop %v4003
        %v4005 = vmul.f32 %v3984, 1.442695
        %v4006 = vpow.pop %v4005
        %v4007 = vmul.f32 %v3985, 1.442695
        %v4008 = vpow.pop %v4007
        %v4009 = vmul.f32 %v3986, 1.442695
        %v4010 = vpow.pop %v4009
        %v4011 = vmul.f32 %v3987, 1.442695
        %v4012 = vpow.pop %v4011
        %v4013 = vmul.f32 %v3988, 1.442695
        %v4014 = vpow.pop %v4013
        %v4015 = vmul.f32 %v3989, 1.442695
        %v4016 = vpow.pop %v4015
        %v4017 = vmul.f32 %v3990, 1.442695
        %v4018 = vpow.pop %v4017
        %v4019 = vmul.f32 %v3991, 1.442695
        %v4020 = vpow.pop %v4019
        %v4021 = vmul.f32 %v3992, 1.442695
        %v4022 = vpow.pop %v4021
        %v4023 = vmul.f32 %v3993, 1.442695
        %v4024 = vpow.pop %v4023
        %v4025 = vmul.f32 %v3994, 1.442695
        %v4026 = vpow.pop %v4025
        %4028 = vset.pattern.permute.xlu0 0
        %4029 = vperm.xlu0 %4028, %v3963
        %v4030 = vpop.permute.xlu0 %4029
        %4033 = vset.pattern.permute.xlu0 0
        %4034 = vperm.xlu0 %4033, %v3964
        %v4035 = vpop.permute.xlu0 %4034
        %4038 = vset.pattern.permute.xlu0 0
        %4039 = vperm.xlu0 %4038, %v3965
        %v4040 = vpop.permute.xlu0 %4039
        %4043 = vset.pattern.permute.xlu0 0
        %4044 = vperm.xlu0 %4043, %v3966
        %v4045 = vpop.permute.xlu0 %4044
        %4048 = vset.pattern.permute.xlu0 0
        %4049 = vperm.xlu0 %4048, %v3967
        %v4050 = vpop.permute.xlu0 %4049
        %4053 = vset.pattern.permute.xlu0 0
        %4054 = vperm.xlu0 %4053, %v3968
        %v4055 = vpop.permute.xlu0 %4054
        %4058 = vset.pattern.permute.xlu0 0
        %4059 = vperm.xlu0 %4058, %v3969
        %v4060 = vpop.permute.xlu0 %4059
        %4063 = vset.pattern.permute.xlu0 0
        %4064 = vperm.xlu0 %4063, %v3970
        %v4065 = vpop.permute.xlu0 %4064
        %4068 = vset.pattern.permute.xlu0 0
        %4069 = vperm.xlu0 %4068, %v3971
        %v4070 = vpop.permute.xlu0 %4069
        %4073 = vset.pattern.permute.xlu0 0
        %4074 = vperm.xlu0 %4073, %v3972
        %v4075 = vpop.permute.xlu0 %4074
        %4078 = vset.pattern.permute.xlu0 0
        %4079 = vperm.xlu0 %4078, %v3973
        %v4080 = vpop.permute.xlu0 %4079
        %4083 = vset.pattern.permute.xlu0 0
        %4084 = vperm.xlu0 %4083, %v3974
        %v4085 = vpop.permute.xlu0 %4084
        %4088 = vset.pattern.permute.xlu0 0
        %4089 = vperm.xlu0 %4088, %v3975
        %v4090 = vpop.permute.xlu0 %4089
        %4093 = vset.pattern.permute.xlu0 0
        %4094 = vperm.xlu0 %4093, %v3976
        %v4095 = vpop.permute.xlu0 %4094
        %4098 = vset.pattern.permute.xlu0 0
        %4099 = vperm.xlu0 %4098, %v3977
        %v4100 = vpop.permute.xlu0 %4099
        %4103 = vset.pattern.permute.xlu0 0
        %4104 = vperm.xlu0 %4103, %v3978
        %v4105 = vpop.permute.xlu0 %4104
        %v4107 = vsub.f32 %v3852, %v4030
        %v4108 = vsub.f32 %v3855, %v4035
        %v4109 = vsub.f32 %v3860, %v4040
        %v4110 = vsub.f32 %v3863, %v4045
        %v4111 = vsub.f32 %v3868, %v4050
        %v4112 = vsub.f32 %v3871, %v4055
        %v4113 = vsub.f32 %v3876, %v4060
        %v4114 = vsub.f32 %v3879, %v4065
        %v4115 = vsub.f32 %v3884, %v4070
        %v4116 = vsub.f32 %v3887, %v4075
        %v4117 = vsub.f32 %v3892, %v4080
        %v4118 = vsub.f32 %v3895, %v4085
        %v4119 = vsub.f32 %v3900, %v4090
        %v4120 = vsub.f32 %v3903, %v4095
        %v4121 = vsub.f32 %v3908, %v4100
        %v4122 = vsub.f32 %v3911, %v4105
        %v4123 = vmul.f32 %v4107, 1.442695
        %v4124 = vpow.pop %v4123
        %v4125 = vmul.f32 %v4108, 1.442695
        %v4126 = vpow.pop %v4125
        %v4127 = vmul.f32 %v4109, 1.442695
        %v4128 = vpow.pop %v4127
        %v4129 = vmul.f32 %v4110, 1.442695
        %v4130 = vpow.pop %v4129
        %v4131 = vmul.f32 %v4111, 1.442695
        %v4132 = vpow.pop %v4131
        %v4133 = vmul.f32 %v4112, 1.442695
        %v4134 = vpow.pop %v4133
        %v4135 = vmul.f32 %v4113, 1.442695
        %v4136 = vpow.pop %v4135
        %v4137 = vmul.f32 %v4114, 1.442695
        %v4138 = vpow.pop %v4137
        %v4139 = vmul.f32 %v4115, 1.442695
        %v4140 = vpow.pop %v4139
        %v4141 = vmul.f32 %v4116, 1.442695
        %v4142 = vpow.pop %v4141
        %v4143 = vmul.f32 %v4117, 1.442695
        %v4144 = vpow.pop %v4143
        %v4145 = vmul.f32 %v4118, 1.442695
        %v4146 = vpow.pop %v4145
        %v4147 = vmul.f32 %v4119, 1.442695
        %v4148 = vpow.pop %v4147
        %v4149 = vmul.f32 %v4120, 1.442695
        %v4150 = vpow.pop %v4149
        %v4151 = vmul.f32 %v4121, 1.442695
        %v4152 = vpow.pop %v4151
        %v4153 = vmul.f32 %v4122, 1.442695
        %v4154 = vpow.pop %v4153
        %s4155 = scalar_lea.vmem [#allocation4], 384
        %v4156 = vld [vmem:[%s4155] sm:$0xff]
        %v4157 = vld [vmem:[%s4155 + $0x8] sm:$0xff]
        %v4158 = vld [vmem:[%s4155 + $0x10] sm:$0xff]
        %v4159 = vld [vmem:[%s4155 + $0x18] sm:$0xff]
        %v4160 = vld [vmem:[%s4155 + $0x20] sm:$0xff]
        %v4161 = vld [vmem:[%s4155 + $0x28] sm:$0xff]
        %v4162 = vld [vmem:[%s4155 + $0x30] sm:$0xff]
        %v4163 = vld [vmem:[%s4155 + $0x38] sm:$0xff]
        %v4164 = vld [vmem:[%s4155 + $0x40] sm:$0xff]
        %v4165 = vld [vmem:[%s4155 + $0x48] sm:$0xff]
        %v4166 = vld [vmem:[%s4155 + $0x50] sm:$0xff]
        %v4167 = vld [vmem:[%s4155 + $0x58] sm:$0xff]
        %v4168 = vld [vmem:[%s4155 + $0x60] sm:$0xff]
        %v4169 = vld [vmem:[%s4155 + $0x68] sm:$0xff]
        %v4170 = vld [vmem:[%s4155 + $0x70] sm:$0xff]
        %v4171 = vld [vmem:[%s4155 + $0x78] sm:$0xff]
        %v4172 = vmul.f32 %v3996, %v4156
        %v4173 = vmul.f32 %v3998, %v4157
        %v4174 = vmul.f32 %v4000, %v4158
        %v4175 = vmul.f32 %v4002, %v4159
        %v4176 = vmul.f32 %v4004, %v4160
        %v4177 = vmul.f32 %v4006, %v4161
        %v4178 = vmul.f32 %v4008, %v4162
        %v4179 = vmul.f32 %v4010, %v4163
        %v4180 = vmul.f32 %v4012, %v4164
        %v4181 = vmul.f32 %v4014, %v4165
        %v4182 = vmul.f32 %v4016, %v4166
        %v4183 = vmul.f32 %v4018, %v4167
        %v4184 = vmul.f32 %v4020, %v4168
        %v4185 = vmul.f32 %v4022, %v4169
        %v4186 = vmul.f32 %v4024, %v4170
        %v4187 = vmul.f32 %v4026, %v4171
        %4188 = vadd.xlane.f32.xlu0 %v4124
        %v4189 = vpop.xlane.xlu0 %4188
        %4190 = vadd.xlane.f32.xlu0 %v4126
        %v4191 = vpop.xlane.xlu0 %4190
        %4192 = vadd.xlane.f32.xlu0 %v4128
        %v4193 = vpop.xlane.xlu0 %4192
        %4194 = vadd.xlane.f32.xlu0 %v4130
        %v4195 = vpop.xlane.xlu0 %4194
        %4196 = vadd.xlane.f32.xlu0 %v4132
        %v4197 = vpop.xlane.xlu0 %4196
        %4198 = vadd.xlane.f32.xlu0 %v4134
        %v4199 = vpop.xlane.xlu0 %4198
        %4200 = vadd.xlane.f32.xlu0 %v4136
        %v4201 = vpop.xlane.xlu0 %4200
        %4202 = vadd.xlane.f32.xlu0 %v4138
        %v4203 = vpop.xlane.xlu0 %4202
        %4204 = vadd.xlane.f32.xlu0 %v4140
        %v4205 = vpop.xlane.xlu0 %4204
        %4206 = vadd.xlane.f32.xlu0 %v4142
        %v4207 = vpop.xlane.xlu0 %4206
        %4208 = vadd.xlane.f32.xlu0 %v4144
        %v4209 = vpop.xlane.xlu0 %4208
        %4210 = vadd.xlane.f32.xlu0 %v4146
        %v4211 = vpop.xlane.xlu0 %4210
        %4212 = vadd.xlane.f32.xlu0 %v4148
        %v4213 = vpop.xlane.xlu0 %4212
        %4214 = vadd.xlane.f32.xlu0 %v4150
        %v4215 = vpop.xlane.xlu0 %4214
        %4216 = vadd.xlane.f32.xlu0 %v4152
        %v4217 = vpop.xlane.xlu0 %4216
        %4218 = vadd.xlane.f32.xlu0 %v4154
        %v4219 = vpop.xlane.xlu0 %4218
        %v4220 = vadd.f32 %v4172, %v4189
        %v4221 = vadd.f32 %v4173, %v4191
        %v4222 = vadd.f32 %v4174, %v4193
        %v4223 = vadd.f32 %v4175, %v4195
        %v4224 = vadd.f32 %v4176, %v4197
        %v4225 = vadd.f32 %v4177, %v4199
        %v4226 = vadd.f32 %v4178, %v4201
        %v4227 = vadd.f32 %v4179, %v4203
        %v4228 = vadd.f32 %v4180, %v4205
        %v4229 = vadd.f32 %v4181, %v4207
        %v4230 = vadd.f32 %v4182, %v4209
        %v4231 = vadd.f32 %v4183, %v4211
        %v4232 = vadd.f32 %v4184, %v4213
        %v4233 = vadd.f32 %v4185, %v4215
        %v4234 = vadd.f32 %v4186, %v4217
        %v4235 = vadd.f32 %v4187, %v4219
        %4236 = vst.msk [vmem:[%s4155] sm:$0xff] %vm1850, %v4220
        %4237 = vst.msk [vmem:[%s4155 + $0x8] sm:$0xff] %vm1850, %v4221
        %4238 = vst.msk [vmem:[%s4155 + $0x10] sm:$0xff] %vm1850, %v4222
        %4239 = vst.msk [vmem:[%s4155 + $0x18] sm:$0xff] %vm1850, %v4223
        %4240 = vst.msk [vmem:[%s4155 + $0x20] sm:$0xff] %vm1850, %v4224
        %4241 = vst.msk [vmem:[%s4155 + $0x28] sm:$0xff] %vm1850, %v4225
        %4242 = vst.msk [vmem:[%s4155 + $0x30] sm:$0xff] %vm1850, %v4226
        %4243 = vst.msk [vmem:[%s4155 + $0x38] sm:$0xff] %vm1850, %v4227
        %4244 = vst.msk [vmem:[%s4155 + $0x40] sm:$0xff] %vm1850, %v4228
        %4245 = vst.msk [vmem:[%s4155 + $0x48] sm:$0xff] %vm1850, %v4229
        %4246 = vst.msk [vmem:[%s4155 + $0x50] sm:$0xff] %vm1850, %v4230
        %4247 = vst.msk [vmem:[%s4155 + $0x58] sm:$0xff] %vm1850, %v4231
        %4248 = vst.msk [vmem:[%s4155 + $0x60] sm:$0xff] %vm1850, %v4232
        %4249 = vst.msk [vmem:[%s4155 + $0x68] sm:$0xff] %vm1850, %v4233
        %4250 = vst.msk [vmem:[%s4155 + $0x70] sm:$0xff] %vm1850, %v4234
        %4251 = vst.msk [vmem:[%s4155 + $0x78] sm:$0xff] %vm1850, %v4235
        %s4252 = scalar_lea.vmem [#allocation5], 384
        %v4253 = vld [vmem:[%s4252] sm:$0xff]
        %v4254 = vld [vmem:[%s4252 + $0x8] sm:$0xff]
        %v4255 = vld [vmem:[%s4252 + $0x10] sm:$0xff]
        %v4256 = vld [vmem:[%s4252 + $0x18] sm:$0xff]
        %v4257 = vld [vmem:[%s4252 + $0x20] sm:$0xff]
        %v4258 = vld [vmem:[%s4252 + $0x28] sm:$0xff]
        %v4259 = vld [vmem:[%s4252 + $0x30] sm:$0xff]
        %v4260 = vld [vmem:[%s4252 + $0x38] sm:$0xff]
        %v4261 = vld [vmem:[%s4252 + $0x40] sm:$0xff]
        %v4262 = vld [vmem:[%s4252 + $0x48] sm:$0xff]
        %v4263 = vld [vmem:[%s4252 + $0x50] sm:$0xff]
        %v4264 = vld [vmem:[%s4252 + $0x58] sm:$0xff]
        %v4265 = vld [vmem:[%s4252 + $0x60] sm:$0xff]
        %v4266 = vld [vmem:[%s4252 + $0x68] sm:$0xff]
        %v4267 = vld [vmem:[%s4252 + $0x70] sm:$0xff]
        %v4268 = vld [vmem:[%s4252 + $0x78] sm:$0xff]
        %4270 = vset.pattern.permute.xlu0 0
        %4271 = vperm.xlu0 %4270, %v3996
        %v4272 = vpop.permute.xlu0 %4271
        %4275 = vset.pattern.permute.xlu0 0
        %4276 = vperm.xlu0 %4275, %v3998
        %v4277 = vpop.permute.xlu0 %4276
        %4280 = vset.pattern.permute.xlu0 0
        %4281 = vperm.xlu0 %4280, %v4000
        %v4282 = vpop.permute.xlu0 %4281
        %4285 = vset.pattern.permute.xlu0 0
        %4286 = vperm.xlu0 %4285, %v4002
        %v4287 = vpop.permute.xlu0 %4286
        %4290 = vset.pattern.permute.xlu0 0
        %4291 = vperm.xlu0 %4290, %v4004
        %v4292 = vpop.permute.xlu0 %4291
        %4295 = vset.pattern.permute.xlu0 0
        %4296 = vperm.xlu0 %4295, %v4006
        %v4297 = vpop.permute.xlu0 %4296
        %4300 = vset.pattern.permute.xlu0 0
        %4301 = vperm.xlu0 %4300, %v4008
        %v4302 = vpop.permute.xlu0 %4301
        %4305 = vset.pattern.permute.xlu0 0
        %4306 = vperm.xlu0 %4305, %v4010
        %v4307 = vpop.permute.xlu0 %4306
        %4310 = vset.pattern.permute.xlu0 0
        %4311 = vperm.xlu0 %4310, %v4012
        %v4312 = vpop.permute.xlu0 %4311
        %4315 = vset.pattern.permute.xlu0 0
        %4316 = vperm.xlu0 %4315, %v4014
        %v4317 = vpop.permute.xlu0 %4316
        %4320 = vset.pattern.permute.xlu0 0
        %4321 = vperm.xlu0 %4320, %v4016
        %v4322 = vpop.permute.xlu0 %4321
        %4325 = vset.pattern.permute.xlu0 0
        %4326 = vperm.xlu0 %4325, %v4018
        %v4327 = vpop.permute.xlu0 %4326
        %4330 = vset.pattern.permute.xlu0 0
        %4331 = vperm.xlu0 %4330, %v4020
        %v4332 = vpop.permute.xlu0 %4331
        %4335 = vset.pattern.permute.xlu0 0
        %4336 = vperm.xlu0 %4335, %v4022
        %v4337 = vpop.permute.xlu0 %4336
        %4340 = vset.pattern.permute.xlu0 0
        %4341 = vperm.xlu0 %4340, %v4024
        %v4342 = vpop.permute.xlu0 %4341
        %4345 = vset.pattern.permute.xlu0 0
        %4346 = vperm.xlu0 %4345, %v4026
        %v4347 = vpop.permute.xlu0 %4346
        %v4349 = vmul.f32 %v4272, %v4253
        %v4350 = vmul.f32 %v4277, %v4254
        %v4351 = vmul.f32 %v4282, %v4255
        %v4352 = vmul.f32 %v4287, %v4256
        %v4353 = vmul.f32 %v4292, %v4257
        %v4354 = vmul.f32 %v4297, %v4258
        %v4355 = vmul.f32 %v4302, %v4259
        %v4356 = vmul.f32 %v4307, %v4260
        %v4357 = vmul.f32 %v4312, %v4261
        %v4358 = vmul.f32 %v4317, %v4262
        %v4359 = vmul.f32 %v4322, %v4263
        %v4360 = vmul.f32 %v4327, %v4264
        %v4361 = vmul.f32 %v4332, %v4265
        %v4362 = vmul.f32 %v4337, %v4266
        %v4363 = vmul.f32 %v4342, %v4267
        %v4364 = vmul.f32 %v4347, %v4268
        %v4365 = vpack.c.bf16 %v4126, %v4124
        %v4366 = vpack.c.bf16 %v4130, %v4128
        %v4367 = vpack.c.bf16 %v4134, %v4132
        %v4368 = vpack.c.bf16 %v4138, %v4136
        %v4369 = vpack.c.bf16 %v4142, %v4140
        %v4370 = vpack.c.bf16 %v4146, %v4144
        %v4371 = vpack.c.bf16 %v4150, %v4148
        %v4372 = vpack.c.bf16 %v4154, %v4152
        %4373 = vrot.lane.b32.xlu0 %v1368, 32
        %v4374 = vpop.permute.xlu0 %4373
        %4375 = vrot.lane.b32.xlu0 %v1369, 32
        %v4376 = vpop.permute.xlu0 %4375
        %4377 = vrot.lane.b32.xlu0 %v1370, 32
        %v4378 = vpop.permute.xlu0 %4377
        %4379 = vrot.lane.b32.xlu0 %v1371, 32
        %v4380 = vpop.permute.xlu0 %4379
        %4381 = vrot.lane.b32.xlu0 %v1372, 32
        %v4382 = vpop.permute.xlu0 %4381
        %4383 = vrot.lane.b32.xlu0 %v1373, 32
        %v4384 = vpop.permute.xlu0 %4383
        %4385 = vrot.lane.b32.xlu0 %v1374, 32
        %v4386 = vpop.permute.xlu0 %4385
        %4387 = vrot.lane.b32.xlu0 %v1375, 32
        %v4388 = vpop.permute.xlu0 %4387
        %4397 = vmatprep.subr.bf16.mxu0 0
        %4398 = vmatpush1.bf16.msra.mxu0 %v4374
        %4399 = vmatprep.subr.bf16.mxu0 0
        %4400 = vmatpush1.bf16.msra.mxu0 %v4376
        %4401 = vmatprep.subr.bf16.mxu0 0
        %4402 = vmatpush1.bf16.msra.mxu0 %v4378
        %4403 = vmatprep.subr.bf16.mxu0 0
        %4404 = vmatpush1.bf16.msra.mxu0 %v4380
        %4405 = vmatprep.subr.bf16.mxu0 0
        %4406 = vmatpush1.bf16.msra.mxu0 %v4382
        %4407 = vmatprep.subr.bf16.mxu0 0
        %4408 = vmatpush1.bf16.msra.mxu0 %v4384
        %4409 = vmatprep.subr.bf16.mxu0 0
        %4410 = vmatpush1.bf16.msra.mxu0 %v4386
        %4411 = vmatprep.subr.bf16.mxu0 0
        %4412 = vmatpush1.bf16.msra.mxu0 %v4388
        %4413 = vmatprep.subr.bf16.mxu0 0
        %4414 = vmatpush1.bf16.msra.mxu0 0
        %4415 = vmatprep.subr.bf16.mxu0 0
        %4416 = vmatpush1.bf16.msra.mxu0 0
        %4417 = vmatprep.subr.bf16.mxu0 0
        %4418 = vmatpush1.bf16.msra.mxu0 0
        %4419 = vmatprep.subr.bf16.mxu0 0
        %4420 = vmatpush1.bf16.msra.mxu0 0
        %4421 = vmatprep.subr.bf16.mxu0 0
        %4422 = vmatpush1.bf16.msra.mxu0 0
        %4423 = vmatprep.subr.bf16.mxu0 0
        %4424 = vmatpush1.bf16.msra.mxu0 0
        %4425 = vmatprep.subr.bf16.mxu0 0
        %4426 = vmatpush1.bf16.msra.mxu0 0
        %4427 = vmatprep.subr.bf16.mxu0 0
        %4428 = vmatpush1.bf16.msra.mxu0 0
        %4429 = vmatprep.mubr.bf16.mxu0 0
        %4430 = vmatmul.mubr.bf16.gmra.mrb[0].mxu0 %v4365
        %v4431 = vpop.f32.mrb[0].mxu0
        %v4432 = vadd.f32 0.0, %v4431
        %v4433 = vpop.f32.mrb[0].mxu0
        %v4434 = vpop.f32.mrb[0].mxu0
        %v4435 = vadd.f32 0.0, %v4434
        %v4436 = vpop.f32.mrb[0].mxu0
        %4437 = vmatprep.mubr.bf16.mxu0 0
        %4438 = vmatmul.mubr.bf16.gmra.mrb[0].mxu0 %v4366
        %v4439 = vpop.f32.mrb[0].mxu0
        %v4440 = vadd.f32 0.0, %v4439
        %v4441 = vpop.f32.mrb[0].mxu0
        %v4442 = vpop.f32.mrb[0].mxu0
        %v4443 = vadd.f32 0.0, %v4442
        %v4444 = vpop.f32.mrb[0].mxu0
        %4445 = vmatprep.mubr.bf16.mxu0 0
        %4446 = vmatmul.mubr.bf16.gmra.mrb[0].mxu0 %v4367
        %v4447 = vpop.f32.mrb[0].mxu0
        %v4448 = vadd.f32 0.0, %v4447
        %v4449 = vpop.f32.mrb[0].mxu0
        %v4450 = vpop.f32.mrb[0].mxu0
        %v4451 = vadd.f32 0.0, %v4450
        %v4452 = vpop.f32.mrb[0].mxu0
        %4453 = vmatprep.mubr.bf16.mxu0 0
        %4454 = vmatmul.mubr.bf16.gmra.mrb[0].mxu0 %v4368
        %v4455 = vpop.f32.mrb[0].mxu0
        %v4456 = vadd.f32 0.0, %v4455
        %v4457 = vpop.f32.mrb[0].mxu0
        %v4458 = vpop.f32.mrb[0].mxu0
        %v4459 = vadd.f32 0.0, %v4458
        %v4460 = vpop.f32.mrb[0].mxu0
        %4461 = vmatprep.mubr.bf16.mxu0 0
        %4462 = vmatmul.mubr.bf16.gmra.mrb[0].mxu0 %v4369
        %v4463 = vpop.f32.mrb[0].mxu0
        %v4464 = vadd.f32 0.0, %v4463
        %v4465 = vpop.f32.mrb[0].mxu0
        %v4466 = vpop.f32.mrb[0].mxu0
        %v4467 = vadd.f32 0.0, %v4466
        %v4468 = vpop.f32.mrb[0].mxu0
        %4469 = vmatprep.mubr.bf16.mxu0 0
        %4470 = vmatmul.mubr.bf16.gmra.mrb[0].mxu0 %v4370
        %v4471 = vpop.f32.mrb[0].mxu0
        %v4472 = vadd.f32 0.0, %v4471
        %v4473 = vpop.f32.mrb[0].mxu0
        %v4474 = vpop.f32.mrb[0].mxu0
        %v4475 = vadd.f32 0.0, %v4474
        %v4476 = vpop.f32.mrb[0].mxu0
        %4477 = vmatprep.mubr.bf16.mxu0 0
        %4478 = vmatmul.mubr.bf16.gmra.mrb[0].mxu0 %v4371
        %v4479 = vpop.f32.mrb[0].mxu0
        %v4480 = vadd.f32 0.0, %v4479
        %v4481 = vpop.f32.mrb[0].mxu0
        %v4482 = vpop.f32.mrb[0].mxu0
        %v4483 = vadd.f32 0.0, %v4482
        %v4484 = vpop.f32.mrb[0].mxu0
        %4485 = vmatprep.mubr.bf16.mxu0 0
        %4486 = vmatmul.mubr.bf16.gmra.mrb[0].mxu0 %v4372
        %v4487 = vpop.f32.mrb[0].mxu0
        %v4488 = vadd.f32 0.0, %v4487
        %v4489 = vpop.f32.mrb[0].mxu0
        %v4490 = vpop.f32.mrb[0].mxu0
        %v4491 = vadd.f32 0.0, %v4490
        %v4492 = vpop.f32.mrb[0].mxu0
        %4493 = vdwg.mxu0
        %v4494 = vadd.f32 %v4349, %v4432
        %v4495 = vadd.f32 %v4350, %v4435
        %v4496 = vadd.f32 %v4351, %v4440
        %v4497 = vadd.f32 %v4352, %v4443
        %v4498 = vadd.f32 %v4353, %v4448
        %v4499 = vadd.f32 %v4354, %v4451
        %v4500 = vadd.f32 %v4355, %v4456
        %v4501 = vadd.f32 %v4356, %v4459
        %v4502 = vadd.f32 %v4357, %v4464
        %v4503 = vadd.f32 %v4358, %v4467
        %v4504 = vadd.f32 %v4359, %v4472
        %v4505 = vadd.f32 %v4360, %v4475
        %v4506 = vadd.f32 %v4361, %v4480
        %v4507 = vadd.f32 %v4362, %v4483
        %v4508 = vadd.f32 %v4363, %v4488
        %v4509 = vadd.f32 %v4364, %v4491
        %4510 = vst.msk [vmem:[%s4252] sm:$0xff] %vm1384, %v4494
        %4511 = vst.msk [vmem:[%s4252 + $0x8] sm:$0xff] %vm1384, %v4495
        %4512 = vst.msk [vmem:[%s4252 + $0x10] sm:$0xff] %vm1384, %v4496
        %4513 = vst.msk [vmem:[%s4252 + $0x18] sm:$0xff] %vm1384, %v4497
        %4514 = vst.msk [vmem:[%s4252 + $0x20] sm:$0xff] %vm1384, %v4498
        %4515 = vst.msk [vmem:[%s4252 + $0x28] sm:$0xff] %vm1384, %v4499
        %4516 = vst.msk [vmem:[%s4252 + $0x30] sm:$0xff] %vm1384, %v4500
        %4517 = vst.msk [vmem:[%s4252 + $0x38] sm:$0xff] %vm1384, %v4501
        %4518 = vst.msk [vmem:[%s4252 + $0x40] sm:$0xff] %vm1384, %v4502
        %4519 = vst.msk [vmem:[%s4252 + $0x48] sm:$0xff] %vm1384, %v4503
        %4520 = vst.msk [vmem:[%s4252 + $0x50] sm:$0xff] %vm1384, %v4504
        %4521 = vst.msk [vmem:[%s4252 + $0x58] sm:$0xff] %vm1384, %v4505
        %4522 = vst.msk [vmem:[%s4252 + $0x60] sm:$0xff] %vm1384, %v4506
        %4523 = vst.msk [vmem:[%s4252 + $0x68] sm:$0xff] %vm1384, %v4507
        %4524 = vst.msk [vmem:[%s4252 + $0x70] sm:$0xff] %vm1384, %v4508
        %4525 = vst.msk [vmem:[%s4252 + $0x78] sm:$0xff] %vm1384, %v4509
        %4526 = vst.msk [vmem:[%s3914] sm:$0xff] %vm1850, %v3963
        %4527 = vst.msk [vmem:[%s3914 + $0x8] sm:$0xff] %vm1850, %v3964
        %4528 = vst.msk [vmem:[%s3914 + $0x10] sm:$0xff] %vm1850, %v3965
        %4529 = vst.msk [vmem:[%s3914 + $0x18] sm:$0xff] %vm1850, %v3966
        %4530 = vst.msk [vmem:[%s3914 + $0x20] sm:$0xff] %vm1850, %v3967
        %4531 = vst.msk [vmem:[%s3914 + $0x28] sm:$0xff] %vm1850, %v3968
        %4532 = vst.msk [vmem:[%s3914 + $0x30] sm:$0xff] %vm1850, %v3969
        %4533 = vst.msk [vmem:[%s3914 + $0x38] sm:$0xff] %vm1850, %v3970
        %4534 = vst.msk [vmem:[%s3914 + $0x40] sm:$0xff] %vm1850, %v3971
        %4535 = vst.msk [vmem:[%s3914 + $0x48] sm:$0xff] %vm1850, %v3972
        %4536 = vst.msk [vmem:[%s3914 + $0x50] sm:$0xff] %vm1850, %v3973
        %4537 = vst.msk [vmem:[%s3914 + $0x58] sm:$0xff] %vm1850, %v3974
        %4538 = vst.msk [vmem:[%s3914 + $0x60] sm:$0xff] %vm1850, %v3975
        %4539 = vst.msk [vmem:[%s3914 + $0x68] sm:$0xff] %vm1850, %v3976
        %4540 = vst.msk [vmem:[%s3914 + $0x70] sm:$0xff] %vm1850, %v3977
        %4541 = vst.msk [vmem:[%s3914 + $0x78] sm:$0xff] %vm1850, %v3978
        %p4542 = scmp.eq.s32.totalorder %s36, 1
        // Predicated region
        $region77: #{tpu_custom_call.1} parent=47 // pred_check
          %p4543 = pneg %p4542
        $region78: #{tpu_custom_call.1} parent=47 // pred_check_branch
          %4545 = sbr.rel (%p4543) target = $region80
        $region79: #{tpu_custom_call.1} parent=47 // pred_region
          %v4546 = vld [vmem:[#allocation4] sm:$0xff]
          %v4547 = vld [vmem:[#allocation4 + $0x8] sm:$0xff]
          %v4548 = vld [vmem:[#allocation4 + $0x10] sm:$0xff]
          %v4549 = vld [vmem:[#allocation4 + $0x18] sm:$0xff]
          %v4550 = vld [vmem:[#allocation4 + $0x20] sm:$0xff]
          %v4551 = vld [vmem:[#allocation4 + $0x28] sm:$0xff]
          %v4552 = vld [vmem:[#allocation4 + $0x30] sm:$0xff]
          %v4553 = vld [vmem:[#allocation4 + $0x38] sm:$0xff]
          %v4554 = vld [vmem:[#allocation4 + $0x40] sm:$0xff]
          %v4555 = vld [vmem:[#allocation4 + $0x48] sm:$0xff]
          %v4556 = vld [vmem:[#allocation4 + $0x50] sm:$0xff]
          %v4557 = vld [vmem:[#allocation4 + $0x58] sm:$0xff]
          %v4558 = vld [vmem:[#allocation4 + $0x60] sm:$0xff]
          %v4559 = vld [vmem:[#allocation4 + $0x68] sm:$0xff]
          %v4560 = vld [vmem:[#allocation4 + $0x70] sm:$0xff]
          %v4561 = vld [vmem:[#allocation4 + $0x78] sm:$0xff]
          %v4562 = vrcp.pop %v4546
          %v4563 = vrcp.pop %v4547
          %v4564 = vrcp.pop %v4548
          %v4565 = vrcp.pop %v4549
          %v4566 = vrcp.pop %v4550
          %v4567 = vrcp.pop %v4551
          %v4568 = vrcp.pop %v4552
          %v4569 = vrcp.pop %v4553
          %v4570 = vrcp.pop %v4554
          %v4571 = vrcp.pop %v4555
          %v4572 = vrcp.pop %v4556
          %v4573 = vrcp.pop %v4557
          %v4574 = vrcp.pop %v4558
          %v4575 = vrcp.pop %v4559
          %v4576 = vrcp.pop %v4560
          %v4577 = vrcp.pop %v4561
          %v4578 = vld [vmem:[#allocation5] sm:$0xff]
          %v4579 = vld [vmem:[#allocation5 + $0x8] sm:$0xff]
          %v4580 = vld [vmem:[#allocation5 + $0x10] sm:$0xff]
          %v4581 = vld [vmem:[#allocation5 + $0x18] sm:$0xff]
          %v4582 = vld [vmem:[#allocation5 + $0x20] sm:$0xff]
          %v4583 = vld [vmem:[#allocation5 + $0x28] sm:$0xff]
          %v4584 = vld [vmem:[#allocation5 + $0x30] sm:$0xff]
          %v4585 = vld [vmem:[#allocation5 + $0x38] sm:$0xff]
          %v4586 = vld [vmem:[#allocation5 + $0x40] sm:$0xff]
          %v4587 = vld [vmem:[#allocation5 + $0x48] sm:$0xff]
          %v4588 = vld [vmem:[#allocation5 + $0x50] sm:$0xff]
          %v4589 = vld [vmem:[#allocation5 + $0x58] sm:$0xff]
          %v4590 = vld [vmem:[#allocation5 + $0x60] sm:$0xff]
          %v4591 = vld [vmem:[#allocation5 + $0x68] sm:$0xff]
          %v4592 = vld [vmem:[#allocation5 + $0x70] sm:$0xff]
          %v4593 = vld [vmem:[#allocation5 + $0x78] sm:$0xff]
          %4595 = vset.pattern.permute.xlu0 0
          %4596 = vperm.xlu0 %4595, %v4562
          %v4597 = vpop.permute.xlu0 %4596
          %4600 = vset.pattern.permute.xlu0 0
          %4601 = vperm.xlu0 %4600, %v4563
          %v4602 = vpop.permute.xlu0 %4601
          %4605 = vset.pattern.permute.xlu0 0
          %4606 = vperm.xlu0 %4605, %v4564
          %v4607 = vpop.permute.xlu0 %4606
          %4610 = vset.pattern.permute.xlu0 0
          %4611 = vperm.xlu0 %4610, %v4565
          %v4612 = vpop.permute.xlu0 %4611
          %4615 = vset.pattern.permute.xlu0 0
          %4616 = vperm.xlu0 %4615, %v4566
          %v4617 = vpop.permute.xlu0 %4616
          %4620 = vset.pattern.permute.xlu0 0
          %4621 = vperm.xlu0 %4620, %v4567
          %v4622 = vpop.permute.xlu0 %4621
          %4625 = vset.pattern.permute.xlu0 0
          %4626 = vperm.xlu0 %4625, %v4568
          %v4627 = vpop.permute.xlu0 %4626
          %4630 = vset.pattern.permute.xlu0 0
          %4631 = vperm.xlu0 %4630, %v4569
          %v4632 = vpop.permute.xlu0 %4631
          %4635 = vset.pattern.permute.xlu0 0
          %4636 = vperm.xlu0 %4635, %v4570
          %v4637 = vpop.permute.xlu0 %4636
          %4640 = vset.pattern.permute.xlu0 0
          %4641 = vperm.xlu0 %4640, %v4571
          %v4642 = vpop.permute.xlu0 %4641
          %4645 = vset.pattern.permute.xlu0 0
          %4646 = vperm.xlu0 %4645, %v4572
          %v4647 = vpop.permute.xlu0 %4646
          %4650 = vset.pattern.permute.xlu0 0
          %4651 = vperm.xlu0 %4650, %v4573
          %v4652 = vpop.permute.xlu0 %4651
          %4655 = vset.pattern.permute.xlu0 0
          %4656 = vperm.xlu0 %4655, %v4574
          %v4657 = vpop.permute.xlu0 %4656
          %4660 = vset.pattern.permute.xlu0 0
          %4661 = vperm.xlu0 %4660, %v4575
          %v4662 = vpop.permute.xlu0 %4661
          %4665 = vset.pattern.permute.xlu0 0
          %4666 = vperm.xlu0 %4665, %v4576
          %v4667 = vpop.permute.xlu0 %4666
          %4670 = vset.pattern.permute.xlu0 0
          %4671 = vperm.xlu0 %4670, %v4577
          %v4672 = vpop.permute.xlu0 %4671
          %v4674 = vmul.f32 %v4578, %v4597
          %v4675 = vmul.f32 %v4579, %v4602
          %v4676 = vmul.f32 %v4580, %v4607
          %v4677 = vmul.f32 %v4581, %v4612
          %v4678 = vmul.f32 %v4582, %v4617
          %v4679 = vmul.f32 %v4583, %v4622
          %v4680 = vmul.f32 %v4584, %v4627
          %v4681 = vmul.f32 %v4585, %v4632
          %v4682 = vmul.f32 %v4586, %v4637
          %v4683 = vmul.f32 %v4587, %v4642
          %v4684 = vmul.f32 %v4588, %v4647
          %v4685 = vmul.f32 %v4589, %v4652
          %v4686 = vmul.f32 %v4590, %v4657
          %v4687 = vmul.f32 %v4591, %v4662
          %v4688 = vmul.f32 %v4592, %v4667
          %v4689 = vmul.f32 %v4593, %v4672
          %v4690 = vpack.c.bf16 %v4675, %v4674
          %v4691 = vpack.c.bf16 %v4677, %v4676
          %v4692 = vpack.c.bf16 %v4679, %v4678
          %v4693 = vpack.c.bf16 %v4681, %v4680
          %v4694 = vpack.c.bf16 %v4683, %v4682
          %v4695 = vpack.c.bf16 %v4685, %v4684
          %v4696 = vpack.c.bf16 %v4687, %v4686
          %v4697 = vpack.c.bf16 %v4689, %v4688
          %v4698 = vld [vmem:[%s2551] sm:$0xff]
          %v4699 = vld [vmem:[%s2551 + $0x8] sm:$0xff]
          %v4700 = vld [vmem:[%s2551 + $0x10] sm:$0xff]
          %v4701 = vld [vmem:[%s2551 + $0x18] sm:$0xff]
          %v4702 = vld [vmem:[%s2551 + $0x20] sm:$0xff]
          %v4703 = vld [vmem:[%s2551 + $0x28] sm:$0xff]
          %v4704 = vld [vmem:[%s2551 + $0x30] sm:$0xff]
          %v4705 = vld [vmem:[%s2551 + $0x38] sm:$0xff]
          %v4706 = vld [vmem:[%s2551 + $0x40] sm:$0xff]
          %v4707 = vld [vmem:[%s2551 + $0x48] sm:$0xff]
          %v4708 = vld [vmem:[%s2551 + $0x50] sm:$0xff]
          %v4709 = vld [vmem:[%s2551 + $0x58] sm:$0xff]
          %v4710 = vld [vmem:[%s2551 + $0x60] sm:$0xff]
          %v4711 = vld [vmem:[%s2551 + $0x68] sm:$0xff]
          %v4712 = vld [vmem:[%s2551 + $0x70] sm:$0xff]
          %v4713 = vld [vmem:[%s2551 + $0x78] sm:$0xff]
          %v4714 = vrcp.pop %v4698
          %v4715 = vrcp.pop %v4699
          %v4716 = vrcp.pop %v4700
          %v4717 = vrcp.pop %v4701
          %v4718 = vrcp.pop %v4702
          %v4719 = vrcp.pop %v4703
          %v4720 = vrcp.pop %v4704
          %v4721 = vrcp.pop %v4705
          %v4722 = vrcp.pop %v4706
          %v4723 = vrcp.pop %v4707
          %v4724 = vrcp.pop %v4708
          %v4725 = vrcp.pop %v4709
          %v4726 = vrcp.pop %v4710
          %v4727 = vrcp.pop %v4711
          %v4728 = vrcp.pop %v4712
          %v4729 = vrcp.pop %v4713
          %v4730 = vld [vmem:[%s2648] sm:$0xff]
          %v4731 = vld [vmem:[%s2648 + $0x8] sm:$0xff]
          %v4732 = vld [vmem:[%s2648 + $0x10] sm:$0xff]
          %v4733 = vld [vmem:[%s2648 + $0x18] sm:$0xff]
          %v4734 = vld [vmem:[%s2648 + $0x20] sm:$0xff]
          %v4735 = vld [vmem:[%s2648 + $0x28] sm:$0xff]
          %v4736 = vld [vmem:[%s2648 + $0x30] sm:$0xff]
          %v4737 = vld [vmem:[%s2648 + $0x38] sm:$0xff]
          %v4738 = vld [vmem:[%s2648 + $0x40] sm:$0xff]
          %v4739 = vld [vmem:[%s2648 + $0x48] sm:$0xff]
          %v4740 = vld [vmem:[%s2648 + $0x50] sm:$0xff]
          %v4741 = vld [vmem:[%s2648 + $0x58] sm:$0xff]
          %v4742 = vld [vmem:[%s2648 + $0x60] sm:$0xff]
          %v4743 = vld [vmem:[%s2648 + $0x68] sm:$0xff]
          %v4744 = vld [vmem:[%s2648 + $0x70] sm:$0xff]
          %v4745 = vld [vmem:[%s2648 + $0x78] sm:$0xff]
          %4747 = vset.pattern.permute.xlu0 0
          %4748 = vperm.xlu0 %4747, %v4714
          %v4749 = vpop.permute.xlu0 %4748
          %4752 = vset.pattern.permute.xlu0 0
          %4753 = vperm.xlu0 %4752, %v4715
          %v4754 = vpop.permute.xlu0 %4753
          %4757 = vset.pattern.permute.xlu0 0
          %4758 = vperm.xlu0 %4757, %v4716
          %v4759 = vpop.permute.xlu0 %4758
          %4762 = vset.pattern.permute.xlu0 0
          %4763 = vperm.xlu0 %4762, %v4717
          %v4764 = vpop.permute.xlu0 %4763
          %4767 = vset.pattern.permute.xlu0 0
          %4768 = vperm.xlu0 %4767, %v4718
          %v4769 = vpop.permute.xlu0 %4768
          %4772 = vset.pattern.permute.xlu0 0
          %4773 = vperm.xlu0 %4772, %v4719
          %v4774 = vpop.permute.xlu0 %4773
          %4777 = vset.pattern.permute.xlu0 0
          %4778 = vperm.xlu0 %4777, %v4720
          %v4779 = vpop.permute.xlu0 %4778
          %4782 = vset.pattern.permute.xlu0 0
          %4783 = vperm.xlu0 %4782, %v4721
          %v4784 = vpop.permute.xlu0 %4783
          %4787 = vset.pattern.permute.xlu0 0
          %4788 = vperm.xlu0 %4787, %v4722
          %v4789 = vpop.permute.xlu0 %4788
          %4792 = vset.pattern.permute.xlu0 0
          %4793 = vperm.xlu0 %4792, %v4723
          %v4794 = vpop.permute.xlu0 %4793
          %4797 = vset.pattern.permute.xlu0 0
          %4798 = vperm.xlu0 %4797, %v4724
          %v4799 = vpop.permute.xlu0 %4798
          %4802 = vset.pattern.permute.xlu0 0
          %4803 = vperm.xlu0 %4802, %v4725
          %v4804 = vpop.permute.xlu0 %4803
          %4807 = vset.pattern.permute.xlu0 0
          %4808 = vperm.xlu0 %4807, %v4726
          %v4809 = vpop.permute.xlu0 %4808
          %4812 = vset.pattern.permute.xlu0 0
          %4813 = vperm.xlu0 %4812, %v4727
          %v4814 = vpop.permute.xlu0 %4813
          %4817 = vset.pattern.permute.xlu0 0
          %4818 = vperm.xlu0 %4817, %v4728
          %v4819 = vpop.permute.xlu0 %4818
          %4822 = vset.pattern.permute.xlu0 0
          %4823 = vperm.xlu0 %4822, %v4729
          %v4824 = vpop.permute.xlu0 %4823
          %v4826 = vmul.f32 %v4730, %v4749
          %v4827 = vmul.f32 %v4731, %v4754
          %v4828 = vmul.f32 %v4732, %v4759
          %v4829 = vmul.f32 %v4733, %v4764
          %v4830 = vmul.f32 %v4734, %v4769
          %v4831 = vmul.f32 %v4735, %v4774
          %v4832 = vmul.f32 %v4736, %v4779
          %v4833 = vmul.f32 %v4737, %v4784
          %v4834 = vmul.f32 %v4738, %v4789
          %v4835 = vmul.f32 %v4739, %v4794
          %v4836 = vmul.f32 %v4740, %v4799
          %v4837 = vmul.f32 %v4741, %v4804
          %v4838 = vmul.f32 %v4742, %v4809
          %v4839 = vmul.f32 %v4743, %v4814
          %v4840 = vmul.f32 %v4744, %v4819
          %v4841 = vmul.f32 %v4745, %v4824
          %v4842 = vpack.c.bf16 %v4827, %v4826
          %v4843 = vpack.c.bf16 %v4829, %v4828
          %v4844 = vpack.c.bf16 %v4831, %v4830
          %v4845 = vpack.c.bf16 %v4833, %v4832
          %v4846 = vpack.c.bf16 %v4835, %v4834
          %v4847 = vpack.c.bf16 %v4837, %v4836
          %v4848 = vpack.c.bf16 %v4839, %v4838
          %v4849 = vpack.c.bf16 %v4841, %v4840
          %v4850 = vld [vmem:[%s3357] sm:$0xff]
          %v4851 = vld [vmem:[%s3357 + $0x8] sm:$0xff]
          %v4852 = vld [vmem:[%s3357 + $0x10] sm:$0xff]
          %v4853 = vld [vmem:[%s3357 + $0x18] sm:$0xff]
          %v4854 = vld [vmem:[%s3357 + $0x20] sm:$0xff]
          %v4855 = vld [vmem:[%s3357 + $0x28] sm:$0xff]
          %v4856 = vld [vmem:[%s3357 + $0x30] sm:$0xff]
          %v4857 = vld [vmem:[%s3357 + $0x38] sm:$0xff]
          %v4858 = vld [vmem:[%s3357 + $0x40] sm:$0xff]
          %v4859 = vld [vmem:[%s3357 + $0x48] sm:$0xff]
          %v4860 = vld [vmem:[%s3357 + $0x50] sm:$0xff]
          %v4861 = vld [vmem:[%s3357 + $0x58] sm:$0xff]
          %v4862 = vld [vmem:[%s3357 + $0x60] sm:$0xff]
          %v4863 = vld [vmem:[%s3357 + $0x68] sm:$0xff]
          %v4864 = vld [vmem:[%s3357 + $0x70] sm:$0xff]
          %v4865 = vld [vmem:[%s3357 + $0x78] sm:$0xff]
          %v4866 = vrcp.pop %v4850
          %v4867 = vrcp.pop %v4851
          %v4868 = vrcp.pop %v4852
          %v4869 = vrcp.pop %v4853
          %v4870 = vrcp.pop %v4854
          %v4871 = vrcp.pop %v4855
          %v4872 = vrcp.pop %v4856
          %v4873 = vrcp.pop %v4857
          %v4874 = vrcp.pop %v4858
          %v4875 = vrcp.pop %v4859
          %v4876 = vrcp.pop %v4860
          %v4877 = vrcp.pop %v4861
          %v4878 = vrcp.pop %v4862
          %v4879 = vrcp.pop %v4863
          %v4880 = vrcp.pop %v4864
          %v4881 = vrcp.pop %v4865
          %v4882 = vld [vmem:[%s3454] sm:$0xff]
          %v4883 = vld [vmem:[%s3454 + $0x8] sm:$0xff]
          %v4884 = vld [vmem:[%s3454 + $0x10] sm:$0xff]
          %v4885 = vld [vmem:[%s3454 + $0x18] sm:$0xff]
          %v4886 = vld [vmem:[%s3454 + $0x20] sm:$0xff]
          %v4887 = vld [vmem:[%s3454 + $0x28] sm:$0xff]
          %v4888 = vld [vmem:[%s3454 + $0x30] sm:$0xff]
          %v4889 = vld [vmem:[%s3454 + $0x38] sm:$0xff]
          %v4890 = vld [vmem:[%s3454 + $0x40] sm:$0xff]
          %v4891 = vld [vmem:[%s3454 + $0x48] sm:$0xff]
          %v4892 = vld [vmem:[%s3454 + $0x50] sm:$0xff]
          %v4893 = vld [vmem:[%s3454 + $0x58] sm:$0xff]
          %v4894 = vld [vmem:[%s3454 + $0x60] sm:$0xff]
          %v4895 = vld [vmem:[%s3454 + $0x68] sm:$0xff]
          %v4896 = vld [vmem:[%s3454 + $0x70] sm:$0xff]
          %v4897 = vld [vmem:[%s3454 + $0x78] sm:$0xff]
          %4899 = vset.pattern.permute.xlu0 0
          %4900 = vperm.xlu0 %4899, %v4866
          %v4901 = vpop.permute.xlu0 %4900
          %4904 = vset.pattern.permute.xlu0 0
          %4905 = vperm.xlu0 %4904, %v4867
          %v4906 = vpop.permute.xlu0 %4905
          %4909 = vset.pattern.permute.xlu0 0
          %4910 = vperm.xlu0 %4909, %v4868
          %v4911 = vpop.permute.xlu0 %4910
          %4914 = vset.pattern.permute.xlu0 0
          %4915 = vperm.xlu0 %4914, %v4869
          %v4916 = vpop.permute.xlu0 %4915
          %4919 = vset.pattern.permute.xlu0 0
          %4920 = vperm.xlu0 %4919, %v4870
          %v4921 = vpop.permute.xlu0 %4920
          %4924 = vset.pattern.permute.xlu0 0
          %4925 = vperm.xlu0 %4924, %v4871
          %v4926 = vpop.permute.xlu0 %4925
          %4929 = vset.pattern.permute.xlu0 0
          %4930 = vperm.xlu0 %4929, %v4872
          %v4931 = vpop.permute.xlu0 %4930
          %4934 = vset.pattern.permute.xlu0 0
          %4935 = vperm.xlu0 %4934, %v4873
          %v4936 = vpop.permute.xlu0 %4935
          %4939 = vset.pattern.permute.xlu0 0
          %4940 = vperm.xlu0 %4939, %v4874
          %v4941 = vpop.permute.xlu0 %4940
          %4944 = vset.pattern.permute.xlu0 0
          %4945 = vperm.xlu0 %4944, %v4875
          %v4946 = vpop.permute.xlu0 %4945
          %4949 = vset.pattern.permute.xlu0 0
          %4950 = vperm.xlu0 %4949, %v4876
          %v4951 = vpop.permute.xlu0 %4950
          %4954 = vset.pattern.permute.xlu0 0
          %4955 = vperm.xlu0 %4954, %v4877
          %v4956 = vpop.permute.xlu0 %4955
          %4959 = vset.pattern.permute.xlu0 0
          %4960 = vperm.xlu0 %4959, %v4878
          %v4961 = vpop.permute.xlu0 %4960
          %4964 = vset.pattern.permute.xlu0 0
          %4965 = vperm.xlu0 %4964, %v4879
          %v4966 = vpop.permute.xlu0 %4965
          %4969 = vset.pattern.permute.xlu0 0
          %4970 = vperm.xlu0 %4969, %v4880
          %v4971 = vpop.permute.xlu0 %4970
          %4974 = vset.pattern.permute.xlu0 0
          %4975 = vperm.xlu0 %4974, %v4881
          %v4976 = vpop.permute.xlu0 %4975
          %v4978 = vmul.f32 %v4882, %v4901
          %v4979 = vmul.f32 %v4883, %v4906
          %v4980 = vmul.f32 %v4884, %v4911
          %v4981 = vmul.f32 %v4885, %v4916
          %v4982 = vmul.f32 %v4886, %v4921
          %v4983 = vmul.f32 %v4887, %v4926
          %v4984 = vmul.f32 %v4888, %v4931
          %v4985 = vmul.f32 %v4889, %v4936
          %v4986 = vmul.f32 %v4890, %v4941
          %v4987 = vmul.f32 %v4891, %v4946
          %v4988 = vmul.f32 %v4892, %v4951
          %v4989 = vmul.f32 %v4893, %v4956
          %v4990 = vmul.f32 %v4894, %v4961
          %v4991 = vmul.f32 %v4895, %v4966
          %v4992 = vmul.f32 %v4896, %v4971
          %v4993 = vmul.f32 %v4897, %v4976
          %v4994 = vpack.c.bf16 %v4979, %v4978
          %v4995 = vpack.c.bf16 %v4981, %v4980
          %v4996 = vpack.c.bf16 %v4983, %v4982
          %v4997 = vpack.c.bf16 %v4985, %v4984
          %v4998 = vpack.c.bf16 %v4987, %v4986
          %v4999 = vpack.c.bf16 %v4989, %v4988
          %v5000 = vpack.c.bf16 %v4991, %v4990
          %v5001 = vpack.c.bf16 %v4993, %v4992
          %v5002 = vld [vmem:[%s4155] sm:$0xff]
          %v5003 = vld [vmem:[%s4155 + $0x8] sm:$0xff]
          %v5004 = vld [vmem:[%s4155 + $0x10] sm:$0xff]
          %v5005 = vld [vmem:[%s4155 + $0x18] sm:$0xff]
          %v5006 = vld [vmem:[%s4155 + $0x20] sm:$0xff]
          %v5007 = vld [vmem:[%s4155 + $0x28] sm:$0xff]
          %v5008 = vld [vmem:[%s4155 + $0x30] sm:$0xff]
          %v5009 = vld [vmem:[%s4155 + $0x38] sm:$0xff]
          %v5010 = vld [vmem:[%s4155 + $0x40] sm:$0xff]
          %v5011 = vld [vmem:[%s4155 + $0x48] sm:$0xff]
          %v5012 = vld [vmem:[%s4155 + $0x50] sm:$0xff]
          %v5013 = vld [vmem:[%s4155 + $0x58] sm:$0xff]
          %v5014 = vld [vmem:[%s4155 + $0x60] sm:$0xff]
          %v5015 = vld [vmem:[%s4155 + $0x68] sm:$0xff]
          %v5016 = vld [vmem:[%s4155 + $0x70] sm:$0xff]
          %v5017 = vld [vmem:[%s4155 + $0x78] sm:$0xff]
          %v5018 = vrcp.pop %v5002
          %v5019 = vrcp.pop %v5003
          %v5020 = vrcp.pop %v5004
          %v5021 = vrcp.pop %v5005
          %v5022 = vrcp.pop %v5006
          %v5023 = vrcp.pop %v5007
          %v5024 = vrcp.pop %v5008
          %v5025 = vrcp.pop %v5009
          %v5026 = vrcp.pop %v5010
          %v5027 = vrcp.pop %v5011
          %v5028 = vrcp.pop %v5012
          %v5029 = vrcp.pop %v5013
          %v5030 = vrcp.pop %v5014
          %v5031 = vrcp.pop %v5015
          %v5032 = vrcp.pop %v5016
          %v5033 = vrcp.pop %v5017
          %v5034 = vld [vmem:[%s4252] sm:$0xff]
          %v5035 = vld [vmem:[%s4252 + $0x8] sm:$0xff]
          %v5036 = vld [vmem:[%s4252 + $0x10] sm:$0xff]
          %v5037 = vld [vmem:[%s4252 + $0x18] sm:$0xff]
          %v5038 = vld [vmem:[%s4252 + $0x20] sm:$0xff]
          %v5039 = vld [vmem:[%s4252 + $0x28] sm:$0xff]
          %v5040 = vld [vmem:[%s4252 + $0x30] sm:$0xff]
          %v5041 = vld [vmem:[%s4252 + $0x38] sm:$0xff]
          %v5042 = vld [vmem:[%s4252 + $0x40] sm:$0xff]
          %v5043 = vld [vmem:[%s4252 + $0x48] sm:$0xff]
          %v5044 = vld [vmem:[%s4252 + $0x50] sm:$0xff]
          %v5045 = vld [vmem:[%s4252 + $0x58] sm:$0xff]
          %v5046 = vld [vmem:[%s4252 + $0x60] sm:$0xff]
          %v5047 = vld [vmem:[%s4252 + $0x68] sm:$0xff]
          %v5048 = vld [vmem:[%s4252 + $0x70] sm:$0xff]
          %v5049 = vld [vmem:[%s4252 + $0x78] sm:$0xff]
          %5051 = vset.pattern.permute.xlu0 0
          %5052 = vperm.xlu0 %5051, %v5018
          %v5053 = vpop.permute.xlu0 %5052
          %5056 = vset.pattern.permute.xlu0 0
          %5057 = vperm.xlu0 %5056, %v5019
          %v5058 = vpop.permute.xlu0 %5057
          %5061 = vset.pattern.permute.xlu0 0
          %5062 = vperm.xlu0 %5061, %v5020
          %v5063 = vpop.permute.xlu0 %5062
          %5066 = vset.pattern.permute.xlu0 0
          %5067 = vperm.xlu0 %5066, %v5021
          %v5068 = vpop.permute.xlu0 %5067
          %5071 = vset.pattern.permute.xlu0 0
          %5072 = vperm.xlu0 %5071, %v5022
          %v5073 = vpop.permute.xlu0 %5072
          %5076 = vset.pattern.permute.xlu0 0
          %5077 = vperm.xlu0 %5076, %v5023
          %v5078 = vpop.permute.xlu0 %5077
          %5081 = vset.pattern.permute.xlu0 0
          %5082 = vperm.xlu0 %5081, %v5024
          %v5083 = vpop.permute.xlu0 %5082
          %5086 = vset.pattern.permute.xlu0 0
          %5087 = vperm.xlu0 %5086, %v5025
          %v5088 = vpop.permute.xlu0 %5087
          %5091 = vset.pattern.permute.xlu0 0
          %5092 = vperm.xlu0 %5091, %v5026
          %v5093 = vpop.permute.xlu0 %5092
          %5096 = vset.pattern.permute.xlu0 0
          %5097 = vperm.xlu0 %5096, %v5027
          %v5098 = vpop.permute.xlu0 %5097
          %5101 = vset.pattern.permute.xlu0 0
          %5102 = vperm.xlu0 %5101, %v5028
          %v5103 = vpop.permute.xlu0 %5102
          %5106 = vset.pattern.permute.xlu0 0
          %5107 = vperm.xlu0 %5106, %v5029
          %v5108 = vpop.permute.xlu0 %5107
          %5111 = vset.pattern.permute.xlu0 0
          %5112 = vperm.xlu0 %5111, %v5030
          %v5113 = vpop.permute.xlu0 %5112
          %5116 = vset.pattern.permute.xlu0 0
          %5117 = vperm.xlu0 %5116, %v5031
          %v5118 = vpop.permute.xlu0 %5117
          %5121 = vset.pattern.permute.xlu0 0
          %5122 = vperm.xlu0 %5121, %v5032
          %v5123 = vpop.permute.xlu0 %5122
          %5126 = vset.pattern.permute.xlu0 0
          %5127 = vperm.xlu0 %5126, %v5033
          %v5128 = vpop.permute.xlu0 %5127
          %v5130 = vmul.f32 %v5034, %v5053
          %v5131 = vmul.f32 %v5035, %v5058
          %v5132 = vmul.f32 %v5036, %v5063
          %v5133 = vmul.f32 %v5037, %v5068
          %v5134 = vmul.f32 %v5038, %v5073
          %v5135 = vmul.f32 %v5039, %v5078
          %v5136 = vmul.f32 %v5040, %v5083
          %v5137 = vmul.f32 %v5041, %v5088
          %v5138 = vmul.f32 %v5042, %v5093
          %v5139 = vmul.f32 %v5043, %v5098
          %v5140 = vmul.f32 %v5044, %v5103
          %v5141 = vmul.f32 %v5045, %v5108
          %v5142 = vmul.f32 %v5046, %v5113
          %v5143 = vmul.f32 %v5047, %v5118
          %v5144 = vmul.f32 %v5048, %v5123
          %v5145 = vmul.f32 %v5049, %v5128
          %v5146 = vpack.c.bf16 %v5131, %v5130
          %v5147 = vpack.c.bf16 %v5133, %v5132
          %v5148 = vpack.c.bf16 %v5135, %v5134
          %v5149 = vpack.c.bf16 %v5137, %v5136
          %v5150 = vpack.c.bf16 %v5139, %v5138
          %v5151 = vpack.c.bf16 %v5141, %v5140
          %v5152 = vpack.c.bf16 %v5143, %v5142
          %v5153 = vpack.c.bf16 %v5145, %v5144
          %5162 = vrot.lane.b32.xlu0 %v4842, 32
          %v5163 = vpop.permute.xlu0 %5162
          %5164 = vrot.lane.b32.xlu0 %v4843, 32
          %v5165 = vpop.permute.xlu0 %5164
          %5166 = vrot.lane.b32.xlu0 %v4844, 32
          %v5167 = vpop.permute.xlu0 %5166
          %5168 = vrot.lane.b32.xlu0 %v4845, 32
          %v5169 = vpop.permute.xlu0 %5168
          %5170 = vrot.lane.b32.xlu0 %v4846, 32
          %v5171 = vpop.permute.xlu0 %5170
          %5172 = vrot.lane.b32.xlu0 %v4847, 32
          %v5173 = vpop.permute.xlu0 %5172
          %5174 = vrot.lane.b32.xlu0 %v4848, 32
          %v5175 = vpop.permute.xlu0 %5174
          %5176 = vrot.lane.b32.xlu0 %v4849, 32
          %v5177 = vpop.permute.xlu0 %5176
          %5186 = vrot.lane.b32.xlu0 %v4994, 64
          %v5187 = vpop.permute.xlu0 %5186
          %5188 = vrot.lane.b32.xlu0 %v4995, 64
          %v5189 = vpop.permute.xlu0 %5188
          %5190 = vrot.lane.b32.xlu0 %v4996, 64
          %v5191 = vpop.permute.xlu0 %5190
          %5192 = vrot.lane.b32.xlu0 %v4997, 64
          %v5193 = vpop.permute.xlu0 %5192
          %5194 = vrot.lane.b32.xlu0 %v4998, 64
          %v5195 = vpop.permute.xlu0 %5194
          %5196 = vrot.lane.b32.xlu0 %v4999, 64
          %v5197 = vpop.permute.xlu0 %5196
          %5198 = vrot.lane.b32.xlu0 %v5000, 64
          %v5199 = vpop.permute.xlu0 %5198
          %5200 = vrot.lane.b32.xlu0 %v5001, 64
          %v5201 = vpop.permute.xlu0 %5200
          %5210 = vrot.lane.b32.xlu0 %v5146, 96
          %v5211 = vpop.permute.xlu0 %5210
          %5212 = vrot.lane.b32.xlu0 %v5147, 96
          %v5213 = vpop.permute.xlu0 %5212
          %5214 = vrot.lane.b32.xlu0 %v5148, 96
          %v5215 = vpop.permute.xlu0 %5214
          %5216 = vrot.lane.b32.xlu0 %v5149, 96
          %v5217 = vpop.permute.xlu0 %5216
          %5218 = vrot.lane.b32.xlu0 %v5150, 96
          %v5219 = vpop.permute.xlu0 %5218
          %5220 = vrot.lane.b32.xlu0 %v5151, 96
          %v5221 = vpop.permute.xlu0 %5220
          %5222 = vrot.lane.b32.xlu0 %v5152, 96
          %v5223 = vpop.permute.xlu0 %5222
          %5224 = vrot.lane.b32.xlu0 %v5153, 96
          %v5225 = vpop.permute.xlu0 %5224
          %v5228 = vsel %vm1384, %v4690, %v5163
          %v5231 = vsel %vm1384, %v4691, %v5165
          %v5234 = vsel %vm1384, %v4692, %v5167
          %v5237 = vsel %vm1384, %v4693, %v5169
          %v5240 = vsel %vm1384, %v4694, %v5171
          %v5243 = vsel %vm1384, %v4695, %v5173
          %v5246 = vsel %vm1384, %v4696, %v5175
          %v5249 = vsel %vm1384, %v4697, %v5177
          %vm5250 = vcmask 523264
          %v5252 = vsel %vm5250, %v5228, %v5187
          %v5254 = vsel %vm5250, %v5231, %v5189
          %v5256 = vsel %vm5250, %v5234, %v5191
          %v5258 = vsel %vm5250, %v5237, %v5193
          %v5260 = vsel %vm5250, %v5240, %v5195
          %v5262 = vsel %vm5250, %v5243, %v5197
          %v5264 = vsel %vm5250, %v5246, %v5199
          %v5266 = vsel %vm5250, %v5249, %v5201
          %vm5267 = vcmask 785408
          %v5269 = vsel %vm5267, %v5252, %v5211
          %v5272 = vsel %vm5267, %v5254, %v5213
          %v5275 = vsel %vm5267, %v5256, %v5215
          %v5278 = vsel %vm5267, %v5258, %v5217
          %v5281 = vsel %vm5267, %v5260, %v5219
          %v5284 = vsel %vm5267, %v5262, %v5221
          %v5287 = vsel %vm5267, %v5264, %v5223
          %v5290 = vsel %vm5267, %v5266, %v5225
          %v5292 = vld [vmem:[#allocation15] sm:$0xf]
          %v5293 = vld [vmem:[#allocation15 + $0x4] sm:$0xf]
          %v5294 = vld [vmem:[#allocation15 + $0x8] sm:$0xf]
          %v5295 = vld [vmem:[#allocation15 + $0xc] sm:$0xf]
          %v5296 = vld [vmem:[#allocation15 + $0x10] sm:$0xf]
          %v5297 = vld [vmem:[#allocation15 + $0x14] sm:$0xf]
          %v5298 = vld [vmem:[#allocation15 + $0x18] sm:$0xf]
          %v5299 = vld [vmem:[#allocation15 + $0x1c] sm:$0xf]
          %v5300 = vld [vmem:[#allocation15 + $0x20] sm:$0xf]
          %v5301 = vld [vmem:[#allocation15 + $0x24] sm:$0xf]
          %v5302 = vld [vmem:[#allocation15 + $0x28] sm:$0xf]
          %v5303 = vld [vmem:[#allocation15 + $0x2c] sm:$0xf]
          %v5304 = vld [vmem:[#allocation15 + $0x30] sm:$0xf]
          %v5305 = vld [vmem:[#allocation15 + $0x34] sm:$0xf]
          %v5306 = vld [vmem:[#allocation15 + $0x38] sm:$0xf]
          %v5307 = vld [vmem:[#allocation15 + $0x3c] sm:$0xf]
          %v5308 = vld [vmem:[%s6] sm:$0x1]
          %v5310 = vlaneseq
          %v5311 = vshrl.u32 %v5310, 7
          %v5312 = vsub.s32 0, %v5311
          %v5313 = vrot.slane %v5308, %v5312
          %v5331 = vunpack.c.l.b16 %v5292
          %v5332 = vunpack.c.l.b16 %v5293
          %v5333 = vunpack.c.l.b16 %v5294
          %v5334 = vunpack.c.l.b16 %v5295
          %v5335 = vunpack.c.l.b16 %v5296
          %v5336 = vunpack.c.l.b16 %v5297
          %v5337 = vunpack.c.l.b16 %v5298
          %v5338 = vunpack.c.l.b16 %v5299
          %v5339 = vunpack.c.l.b16 %v5300
          %v5340 = vunpack.c.l.b16 %v5301
          %v5341 = vunpack.c.l.b16 %v5302
          %v5342 = vunpack.c.l.b16 %v5303
          %v5343 = vunpack.c.l.b16 %v5304
          %v5344 = vunpack.c.l.b16 %v5305
          %v5345 = vunpack.c.l.b16 %v5306
          %v5346 = vunpack.c.l.b16 %v5307
          %v5347 = vpack.c.b16 %v5332, %v5331
          %v5348 = vpack.c.b16 %v5334, %v5333
          %v5349 = vpack.c.b16 %v5336, %v5335
          %v5350 = vpack.c.b16 %v5338, %v5337
          %v5351 = vpack.c.b16 %v5340, %v5339
          %v5352 = vpack.c.b16 %v5342, %v5341
          %v5353 = vpack.c.b16 %v5344, %v5343
          %v5354 = vpack.c.b16 %v5346, %v5345
          %5363 = vmatprep.subr.bf16.mxu0 0
          %5364 = vmatpush1.bf16.msra.mxu0 %v5347
          %5365 = vmatprep.subr.bf16.mxu0 0
          %5366 = vmatpush1.bf16.msra.mxu0 %v5348
          %5367 = vmatprep.subr.bf16.mxu0 0
          %5368 = vmatpush1.bf16.msra.mxu0 %v5349
          %5369 = vmatprep.subr.bf16.mxu0 0
          %5370 = vmatpush1.bf16.msra.mxu0 %v5350
          %5371 = vmatprep.subr.bf16.mxu0 0
          %5372 = vmatpush1.bf16.msra.mxu0 %v5351
          %5373 = vmatprep.subr.bf16.mxu0 0
          %5374 = vmatpush1.bf16.msra.mxu0 %v5352
          %5375 = vmatprep.subr.bf16.mxu0 0
          %5376 = vmatpush1.bf16.msra.mxu0 %v5353
          %5377 = vmatprep.subr.bf16.mxu0 0
          %5378 = vmatpush1.bf16.msra.mxu0 %v5354
          %5379 = vmatprep.subr.bf16.mxu0 0
          %5380 = vmatpush1.bf16.msra.mxu0 0
          %5381 = vmatprep.subr.bf16.mxu0 0
          %5382 = vmatpush1.bf16.msra.mxu0 0
          %5383 = vmatprep.subr.bf16.mxu0 0
          %5384 = vmatpush1.bf16.msra.mxu0 0
          %5385 = vmatprep.subr.bf16.mxu0 0
          %5386 = vmatpush1.bf16.msra.mxu0 0
          %5387 = vmatprep.subr.bf16.mxu0 0
          %5388 = vmatpush1.bf16.msra.mxu0 0
          %5389 = vmatprep.subr.bf16.mxu0 0
          %5390 = vmatpush1.bf16.msra.mxu0 0
          %5391 = vmatprep.subr.bf16.mxu0 0
          %5392 = vmatpush1.bf16.msra.mxu0 0
          %5393 = vmatprep.subr.bf16.mxu0 0
          %5394 = vmatpush1.bf16.msra.mxu0 0
          %5395 = vmatprep.mubr.bf16.mxu0 0
          %5396 = vmatmul.mubr.bf16.gmra.mrb[0].mxu0 %v5269
          %v5397 = vpop.f32.mrb[0].mxu0
          %v5398 = vadd.f32 %v5313, %v5397
          %v5399 = vpop.f32.mrb[0].mxu0
          %v5400 = vpop.f32.mrb[0].mxu0
          %v5401 = vadd.f32 %v5313, %v5400
          %v5402 = vpop.f32.mrb[0].mxu0
          %5403 = vmatprep.mubr.bf16.mxu0 0
          %5404 = vmatmul.mubr.bf16.gmra.mrb[0].mxu0 %v5272
          %v5405 = vpop.f32.mrb[0].mxu0
          %v5406 = vadd.f32 %v5313, %v5405
          %v5407 = vpop.f32.mrb[0].mxu0
          %v5408 = vpop.f32.mrb[0].mxu0
          %v5409 = vadd.f32 %v5313, %v5408
          %v5410 = vpop.f32.mrb[0].mxu0
          %5411 = vmatprep.mubr.bf16.mxu0 0
          %5412 = vmatmul.mubr.bf16.gmra.mrb[0].mxu0 %v5275
          %v5413 = vpop.f32.mrb[0].mxu0
          %v5414 = vadd.f32 %v5313, %v5413
          %v5415 = vpop.f32.mrb[0].mxu0
          %v5416 = vpop.f32.mrb[0].mxu0
          %v5417 = vadd.f32 %v5313, %v5416
          %v5418 = vpop.f32.mrb[0].mxu0
          %5419 = vmatprep.mubr.bf16.mxu0 0
          %5420 = vmatmul.mubr.bf16.gmra.mrb[0].mxu0 %v5278
          %v5421 = vpop.f32.mrb[0].mxu0
          %v5422 = vadd.f32 %v5313, %v5421
          %v5423 = vpop.f32.mrb[0].mxu0
          %v5424 = vpop.f32.mrb[0].mxu0
          %v5425 = vadd.f32 %v5313, %v5424
          %v5426 = vpop.f32.mrb[0].mxu0
          %5427 = vmatprep.mubr.bf16.mxu0 0
          %5428 = vmatmul.mubr.bf16.gmra.mrb[0].mxu0 %v5281
          %v5429 = vpop.f32.mrb[0].mxu0
          %v5430 = vadd.f32 %v5313, %v5429
          %v5431 = vpop.f32.mrb[0].mxu0
          %v5432 = vpop.f32.mrb[0].mxu0
          %v5433 = vadd.f32 %v5313, %v5432
          %v5434 = vpop.f32.mrb[0].mxu0
          %5435 = vmatprep.mubr.bf16.mxu0 0
          %5436 = vmatmul.mubr.bf16.gmra.mrb[0].mxu0 %v5284
          %v5437 = vpop.f32.mrb[0].mxu0
          %v5438 = vadd.f32 %v5313, %v5437
          %v5439 = vpop.f32.mrb[0].mxu0
          %v5440 = vpop.f32.mrb[0].mxu0
          %v5441 = vadd.f32 %v5313, %v5440
          %v5442 = vpop.f32.mrb[0].mxu0
          %5443 = vmatprep.mubr.bf16.mxu0 0
          %5444 = vmatmul.mubr.bf16.gmra.mrb[0].mxu0 %v5287
          %v5445 = vpop.f32.mrb[0].mxu0
          %v5446 = vadd.f32 %v5313, %v5445
          %v5447 = vpop.f32.mrb[0].mxu0
          %v5448 = vpop.f32.mrb[0].mxu0
          %v5449 = vadd.f32 %v5313, %v5448
          %v5450 = vpop.f32.mrb[0].mxu0
          %5451 = vmatprep.mubr.bf16.mxu0 0
          %5452 = vmatmul.mubr.bf16.gmra.mrb[0].mxu0 %v5290
          %v5453 = vpop.f32.mrb[0].mxu0
          %v5454 = vadd.f32 %v5313, %v5453
          %v5455 = vpop.f32.mrb[0].mxu0
          %v5456 = vpop.f32.mrb[0].mxu0
          %v5457 = vadd.f32 %v5313, %v5456
          %v5458 = vpop.f32.mrb[0].mxu0
          %5459 = vdwg.mxu0
          %5460 = vst [vmem:[%s423] sm:$0xff] %v5398
          %5461 = vst [vmem:[%s423 + $0x8] sm:$0xff] %v5401
          %5462 = vst [vmem:[%s423 + $0x10] sm:$0xff] %v5406
          %5463 = vst [vmem:[%s423 + $0x18] sm:$0xff] %v5409
          %5464 = vst [vmem:[%s423 + $0x20] sm:$0xff] %v5414
          %5465 = vst [vmem:[%s423 + $0x28] sm:$0xff] %v5417
          %5466 = vst [vmem:[%s423 + $0x30] sm:$0xff] %v5422
          %5467 = vst [vmem:[%s423 + $0x38] sm:$0xff] %v5425
          %5468 = vst [vmem:[%s423 + $0x40] sm:$0xff] %v5430
          %5469 = vst [vmem:[%s423 + $0x48] sm:$0xff] %v5433
          %5470 = vst [vmem:[%s423 + $0x50] sm:$0xff] %v5438
          %5471 = vst [vmem:[%s423 + $0x58] sm:$0xff] %v5441
          %5472 = vst [vmem:[%s423 + $0x60] sm:$0xff] %v5446
          %5473 = vst [vmem:[%s423 + $0x68] sm:$0xff] %v5449
          %5474 = vst [vmem:[%s423 + $0x70] sm:$0xff] %v5454
          %5475 = vst [vmem:[%s423 + $0x78] sm:$0xff] %v5457
        $region80: #{tpu_custom_call.1} parent=47 // pred_fallthru
          _
        %s5476 = sand.u32 %s219, 1
        %s5477 = scalar_lea.sflag [#allocation8], %s5476
        %s5478 = sand.u32 %s219, 1
        %s5479 = smul.addr %s5478, 128
        %s5480 = scalar_lea.vmem [#allocation17], %s5479
        // Predicated region
        $region81: #{tpu_custom_call.1} parent=47 // pred_check
          %p5481 = pneg %p229
        $region82: #{tpu_custom_call.1} parent=47 // pred_check_branch
          %5483 = sbr.rel (%p5481) target = $region84
        $region83: #{tpu_custom_call.1} parent=47 // pred_region
          %s5484 = smul.u32 16, %s35
          %s5486 = ssub.s32 2048, 2048
          %5487 = vsyncadd %s5477, %s5486
          %s5488 = smul.addr %s34, 32
          %s5489 = sadd.s32 %s5484, %s5488
          %s5490 = smul.addr %s5489, 128
          %s5491 = scalar_lea.hbm %s7, %s5490
          %s5492 = sshll.u32 %s5480, 4
          %s5493 = int_to_ptr.vmem [resolvable:$true] %s5492
          %5498 = dma.vmem_to_hbm [thread:$0]  %s5493, 2048, %s5491, %s5477, 128, 128, 8
        $region84: #{tpu_custom_call.1} parent=47 // pred_fallthru
          _
      $region48: #{tpu_custom_call.1} parent=5 // pred_fallthru
        _
      %p5499 = scmp.le.s32.totalorder 2, %s24
      // Predicated region
      $region85: #{tpu_custom_call.1} parent=5 // pred_check
        %p5500 = pneg %p5499
      $region86: #{tpu_custom_call.1} parent=5 // pred_check_branch
        %5502 = sbr.rel (%p5500) target = $region88
      $region87: #{tpu_custom_call.1} parent=5 // pred_region
        %s5503 = ssub.s32 %s24, 2
        // Predicated region
        $region89: #{tpu_custom_call.1} parent=87 // pred_check
          %p5504 = pneg %p235
        $region90: #{tpu_custom_call.1} parent=87 // pred_check_branch
          %5506 = sbr.rel (%p5504) target = $region92
        $region91: #{tpu_custom_call.1} parent=87 // pred_region
          %s5507 = sand.u32 %s220, 1
          %s5508 = scalar_lea.sflag [#allocation8], %s5507
          %s5509 = sand.u32 %s220, 1
          %s5510 = smul.addr %s5509, 128
          %s5511 = scalar_lea.vmem [#allocation17], %s5510
          %5512 = dma.done %s5508, 2048
        $region92: #{tpu_custom_call.1} parent=87 // pred_fallthru
          _
      $region88: #{tpu_custom_call.1} parent=5 // pred_fallthru
        _
    $region6: #{tpu_custom_call.1} parent=1 // loop_footer
      %s28 = sadd.s32 1, %s24
    $region7: #{tpu_custom_call.1} parent=1 // loop_footer_branch
      %23 = sbr.rel target = $region3
    $region8: #{tpu_custom_call.1} parent=1 // loop_exit
      _
    %5513 = vsyncpa [#allocation7], 1
    %s5514 = scalar_lea.sflag [#allocation7], 1
    %5515 = vsyncpa %s5514, 1
    %5516 = vsyncpa [#allocation10], 1
    %s5517 = scalar_lea.sflag [#allocation10], 1
    %5518 = vsyncpa %s5517, 1
    %5519 = vsyncpa [#allocation13], 1
    %5520 = vsyncpa [#allocation16], 1
    %5521 = vsyncpa [#allocation8], 1
    %s5522 = scalar_lea.sflag [#allocation8], 1
    %5523 = vsyncpa %s5522, 1

</llo_original>
